<compile_context>
chip_gen: v7x
topology: tpu7x:2x2x1
jax: 0.10.0
libtpu: 0.0.40
codegen_flags: <defaults>
</compile_context>

<pallas_src>
import functools

import numpy as np

import jax
import jax.numpy as jnp
from jax.experimental import pallas as pl
from jax.experimental.pallas import tpu as pltpu


def _leaky_relu(x, negative_slope=0.01):
    # Matches torch.nn.functional.leaky_relu default slope.
    return jnp.where(x > 0, x, negative_slope * x)


def _round_up(x, m):
    return ((x + m - 1) // m) * m


# ----------------------------- kernels -----------------------------

def _gcn0_kernel(col_ref, cnt_ref, adj_ref, x_ref, w0_ref, h1_ref, acc_ref):
    """h1[i-tile] = leaky_relu((sum over nonzero adj tiles A_hat[i,k] @ X[k]) @ W0)."""
    i = pl.program_id(0)
    j = pl.program_id(1)

    @pl.when(j == 0)
    def _():
        acc_ref[...] = jnp.zeros_like(acc_ref)

    # Only the first cnt[i] steps along j are truly nonzero adjacency tiles of this row
    # tile (block-diagonal batched graph). Padded steps reuse the previous column index
    # (DMA deduped by Pallas) and skip compute here.
    @pl.when(j < cnt_ref[i])
    def _():
        acc_ref[...] += jnp.dot(adj_ref[...], x_ref[...],
                                preferred_element_type=jnp.float32)

    @pl.when(j == pl.num_programs(1) - 1)
    def _():
        w0 = w0_ref[...].astype(jnp.float32)
        h = jnp.dot(acc_ref[...], w0, preferred_element_type=jnp.float32)
        h1_ref[...] = _leaky_relu(h).astype(h1_ref.dtype)


def _gcn1_head_kernel(col_ref, cnt_ref, adj_ref, h1_ref, w1_ref, wfc1_ref,
                      wfc2_ref, batch_ref, pool_ref, acc_ref):
    """Second GCN layer + fc1 + fc2 + per-row-tile global_add_pool partial sums."""
    i = pl.program_id(0)
    j = pl.program_id(1)

    @pl.when(j == 0)
    def _():
        acc_ref[...] = jnp.zeros_like(acc_ref)

    @pl.when(j < cnt_ref[i])
    def _():
        acc_ref[...] += jnp.dot(adj_ref[...], h1_ref[...],
                                preferred_element_type=jnp.float32)

    @pl.when(j == pl.num_programs(1) - 1)
    def _():
        w1 = w1_ref[...].astype(jnp.float32)
        wf1 = wfc1_ref[...].astype(jnp.float32)
        wf2 = wfc2_ref[...].astype(jnp.float32)
        h2 = _leaky_relu(jnp.dot(acc_ref[...], w1, preferred_element_type=jnp.float32))
        y = _leaky_relu(jnp.dot(h2, wf1, preferred_element_type=jnp.float32))
        y = _leaky_relu(jnp.dot(y, wf2, preferred_element_type=jnp.float32))
        # In-kernel segment sum (global_add_pool partial) for this row tile.
        gids = batch_ref[...]                                        # (1, T) int32
        num_g = pool_ref.shape[1]
        onehot = (jax.lax.broadcasted_iota(jnp.int32, (num_g, gids.shape[1]), 0)
                  == gids).astype(jnp.float32)                        # (G, T)
        pool_ref[0] = jnp.dot(onehot, y, preferred_element_type=jnp.float32)


# --------------------------- host-side glue ---------------------------

def _gcn_norm_dense_padded(edge_index, num_nodes, npad, edge_w=None):
    """Padded dense D^{-1/2}(A + remaining_self_loops)D^{-1/2} (PyG gcn_norm,
    GCNConv default normalize=True), built directly at padded size and cast to bf16."""
    src, dst = edge_index[0], edge_index[1]
    if edge_w is None:
        edge_w = jnp.ones(src.shape[0], dtype=jnp.float32)
    a = jnp.zeros((npad, npad), jnp.float32).at[dst, src].add(edge_w)
    has_self = jnp.zeros((num_nodes,), jnp.int32).at[src].max(
        (src == dst).astype(jnp.int32))
    diag = jnp.zeros((npad,), jnp.float32).at[:num_nodes].set(
        jnp.where(has_self > 0, 0.0, 1.0))                  # add_remaining_self_loops
    a = a + jnp.diag(diag)
    deg = a.sum(axis=1)
    d = jnp.where(deg > 0, jax.lax.rsqrt(deg), 0.0)
    return (d[:, None] * a * d[None, :]).astype(jnp.bfloat16)


def _tile_structure(edge_index_np, n, t, nt):
    """Per-row-tile nonzero adjacency-tile columns (host/numpy, O(E)).
    Returns flattened 1-D column table (padded steps repeat the last valid column so
    Pallas dedups their DMA), per-row counts, max_nnz, and total nonzero-tile count."""
    src = np.asarray(edge_index_np[0])
    dst = np.asarray(edge_index_np[1])
    mask = np.zeros((nt, nt), dtype=bool)
    if src.size:
        mask[dst // t, src // t] = True
    node_tiles = np.arange(n) // t
    mask[node_tiles, node_tiles] = True           # self loops populate the diagonal
    counts = mask.sum(axis=1).astype(np.int32)
    max_nnz = max(int(counts.max()) if counts.size else 1, 1)
    col = np.zeros((nt, max_nnz), dtype=np.int32)
    for i in range(nt):
        nz = np.nonzero(mask[i])[0].astype(np.int32)
        if nz.size == 0:
            col[i, :] = i
        else:
            col[i, :nz.size] = nz
            col[i, nz.size:] = nz[-1]
    return col.reshape(-1), counts, max_nnz, int(counts.sum())


class CriticParams:
    """Deterministic parameter init; weights stored pre-transposed to (in, out)."""

    def __init__(self, in_size, out_size, hide_size_list, n_gcn, key):
        assert len(hide_size_list) == n_gcn + 1
        self.size_list = [in_size] + list(hide_size_list) + [out_size]
        keys = jax.random.split(key, n_gcn + 2)
        self.gcn_w = []
        for i in range(n_gcn):
            fi, fo = self.size_list[i], self.size_list[i + 1]
            self.gcn_w.append(jax.random.normal(keys[i], (fi, fo), jnp.float32)
                              / jnp.sqrt(jnp.float32(fi)))
        fi, fo = self.size_list[n_gcn], self.size_list[n_gcn + 1]
        self.fc1_w = jax.random.normal(keys[n_gcn], (fi, fo), jnp.float32) / jnp.sqrt(
            jnp.float32(fi))
        fi2, fo2 = self.size_list[n_gcn + 1], self.size_list[-1]
        self.fc2_w = jax.random.normal(keys[n_gcn + 1], (fi2, fo2), jnp.float32) / jnp.sqrt(
            jnp.float32(fi2))


_VMEM_LIMIT = 28 * 1024 * 1024   # explicit scoped-VMEM limit (v5e default is only 16 MiB)


@functools.partial(jax.jit,
                   static_argnames=("num_graphs", "t", "nt", "max_nnz", "nnz_tiles"))
def _critic_forward_impl(params_tree, x, edge_index, batch, col_flat, counts, edge_w,
                         num_graphs, t, nt, max_nnz, nnz_tiles):
    gcn_w0, gcn_w1, fc1_w, fc2_w = params_tree
    n, in_dim = x.shape
    h1_dim = gcn_w0.shape[1]
    h2_dim = gcn_w1.shape[1]
    h3_dim = fc1_w.shape[1]
    out_dim = fc2_w.shape[1]
    npad = nt * t

    # Padded, normalized, bf16 adjacency built in one pass.
    adj_b = _gcn_norm_dense_padded(edge_index, n, npad, edge_w)
    x_b = jnp.zeros((npad, in_dim), jnp.bfloat16).at[:n].set(x.astype(jnp.bfloat16))
    batch_p = jnp.full((1, npad), num_graphs, jnp.int32).at[0, :n].set(
        batch.astype(jnp.int32))                    # padded rows -> graph id G (masked out)

    w0_b = gcn_w0.astype(jnp.bfloat16)
    w1_b = gcn_w1.astype(jnp.bfloat16)
    wf1_b = fc1_w.astype(jnp.bfloat16)
    wf2_b = fc2_w.astype(jnp.bfloat16)

    # Nonzero-tile-only reduction: adj block (i, col[i*max_nnz+j]); the feature panel
    # follows the same column so padded (repeated) steps dedup both DMAs.
    adj_spec = pl.BlockSpec((t, t), lambda i, j, col, cnt: (i, col[i * max_nnz + j]))

    compiler_params = pltpu.CompilerParams(
        dimension_semantics=("parallel", "arbitrary"),
        vmem_limit_bytes=_VMEM_LIMIT)

    # --- kernel A: GCN layer 0, h1 = leaky_relu((A_hat @ X) @ W0) ---
    h1 = pl.pallas_call(
        _gcn0_kernel,
        out_shape=jax.ShapeDtypeStruct((npad, h1_dim), jnp.bfloat16),
        grid_spec=pltpu.PrefetchScalarGridSpec(
            num_scalar_prefetch=2,
            grid=(nt, max_nnz),
            in_specs=[
                adj_spec,
                pl.BlockSpec((t, in_dim), lambda i, j, col, cnt: (col[i * max_nnz + j], 0)),
                pl.BlockSpec((in_dim, h1_dim), lambda i, j, col, cnt: (0, 0)),
            ],
            out_specs=pl.BlockSpec((t, h1_dim), lambda i, j, col, cnt: (i, 0)),
            scratch_shapes=[pltpu.VMEM((t, in_dim), jnp.float32)],
        ),
        compiler_params=compiler_params,
        cost_estimate=pl.CostEstimate(
            flops=2 * nnz_tiles * t * t * in_dim + 2 * npad * in_dim * h1_dim,
            transcendentals=0,
            bytes_accessed=2 * nnz_tiles * t * t
                           + 2 * npad * (in_dim + h1_dim)
                           + 2 * in_dim * h1_dim),
    )(col_flat, counts, adj_b, x_b, w0_b)

    # --- kernel B: GCN layer 1 + fc1 + fc2 + global_add_pool partials ---
    partial_pool = pl.pallas_call(
        _gcn1_head_kernel,
        out_shape=jax.ShapeDtypeStruct((nt, num_graphs, out_dim), jnp.float32),
        grid_spec=pltpu.PrefetchScalarGridSpec(
            num_scalar_prefetch=2,
            grid=(nt, max_nnz),
            in_specs=[
                adj_spec,
                pl.BlockSpec((t, h1_dim), lambda i, j, col, cnt: (col[i * max_nnz + j], 0)),
                pl.BlockSpec((h1_dim, h2_dim), lambda i, j, col, cnt: (0, 0)),
                pl.BlockSpec((h2_dim, h3_dim), lambda i, j, col, cnt: (0, 0)),
                pl.BlockSpec((h3_dim, out_dim), lambda i, j, col, cnt: (0, 0)),
                pl.BlockSpec((1, t), lambda i, j, col, cnt: (0, i)),
            ],
            out_specs=pl.BlockSpec((1, num_graphs, out_dim),
                                   lambda i, j, col, cnt: (i, 0, 0)),
            scratch_shapes=[pltpu.VMEM((t, h1_dim), jnp.float32)],
        ),
        compiler_params=compiler_params,
        cost_estimate=pl.CostEstimate(
            flops=2 * nnz_tiles * t * t * h1_dim
                  + 2 * npad * (h1_dim * h2_dim + h2_dim * h3_dim + h3_dim * out_dim)
                  + 2 * npad * num_graphs * out_dim,
            transcendentals=0,
            bytes_accessed=2 * nnz_tiles * t * t + 2 * npad * h1_dim
                           + 4 * nt * num_graphs * out_dim),
    )(col_flat, counts, adj_b, h1, w1_b, wf1_b, wf2_b, batch_p)

    # Tiny (nt, G, out) partial-pool reduction done outside the kernel.
    return jnp.sum(partial_pool, axis=0)


def critic_forward(params_tree, x, edge_index, batch, num_graphs, edge_w=None,
                   tile=2048):
    """Wrapper: host-side (numpy, O(E)) tile-sparsity structure -> jitted Pallas impl.
    Tile default 2048 amortizes the ~0.35 us/step grid overhead on the HBM-bound adj
    stream; hard cap 2048 keeps the double-buffered bf16 adj tile (<=16 MiB) inside
    v7x's 64 MiB physical VMEM."""
    n = x.shape[0]
    t = min(min(tile, 2048), _round_up(n, 128))
    npad = _round_up(n, t)
    nt = npad // t
    col_flat, counts, max_nnz, nnz_tiles = _tile_structure(
        np.asarray(edge_index), n, t, nt)
    return _critic_forward_impl(
        params_tree, x, edge_index, batch,
        jnp.asarray(col_flat), jnp.asarray(counts), edge_w,
        num_graphs=num_graphs, t=t, nt=nt, max_nnz=max_nnz, nnz_tiles=nnz_tiles)


def reference_forward(params_tree, x, edge_index, batch, num_graphs, edge_w=None):
    """Pure-JAX reference mirroring the kernel's bf16-input / f32-accumulate math."""
    gcn_w0, gcn_w1, fc1_w, fc2_w = params_tree
    n = x.shape[0]
    adj = _gcn_norm_dense_padded(edge_index, n, n, edge_w)        # bf16 (n, n)
    xb = x.astype(jnp.bfloat16)
    w0 = gcn_w0.astype(jnp.bfloat16).astype(jnp.float32)
    w1 = gcn_w1.astype(jnp.bfloat16).astype(jnp.float32)
    wf1 = fc1_w.astype(jnp.bfloat16).astype(jnp.float32)
    wf2 = fc2_w.astype(jnp.bfloat16).astype(jnp.float32)

    m0 = jnp.dot(adj, xb, preferred_element_type=jnp.float32)
    h1 = _leaky_relu(jnp.dot(m0, w0))
    m1 = jnp.dot(adj, h1.astype(jnp.bfloat16), preferred_element_type=jnp.float32)
    h2 = _leaky_relu(jnp.dot(m1, w1))
    y = _leaky_relu(jnp.dot(h2, wf1))
    y = _leaky_relu(jnp.dot(y, wf2))
    seg = (jnp.arange(num_graphs)[:, None] == batch[None, :]).astype(jnp.float32)
    return jnp.dot(seg, y)


if __name__ == "__main__":
    # Module-consistent config: in=8, hide=[16,16,32], out=4, n_gcn=2.
    in_size, out_size, hide_size_list, n_gcn = 8, 4, [16, 16, 32], 2
    num_graphs = 3
    nodes_per_graph = 88
    N = num_graphs * nodes_per_graph          # 264 nodes -> padded to 384 with tile=128

    key = jax.random.PRNGKey(0)
    k_x, k_w = jax.random.split(key)
    x = jax.random.normal(k_x, (N, in_size), jnp.float32)

    # Ring graph per component (both directions), edge_index (2, E).
    src_list, dst_list = [], []
    for g in range(num_graphs):
        base = g * nodes_per_graph
        for i in range(nodes_per_graph):
            a = base + i
            b = base + (i + 1) % nodes_per_graph
            src_list += [a, b]
            dst_list += [b, a]
    edge_index = jnp.array([src_list, dst_list], dtype=jnp.int32)

    batch = jnp.repeat(jnp.arange(num_graphs, dtype=jnp.int32), nodes_per_graph)

    params = CriticParams(in_size, out_size, hide_size_list, n_gcn, k_w)
    params_tree = (params.gcn_w[0], params.gcn_w[1], params.fc1_w, params.fc2_w)

    # tile=128 keeps the example small while exercising the multi-row-tile grid, the
    # nonzero-only (nt, max_nnz) reduction, padded-step gating, and the DMA-dedup path.
    value = critic_forward(params_tree, x, edge_index, batch, num_graphs, tile=128)
    value = jax.block_until_ready(value)

    ref = reference_forward(params_tree, x, edge_index, batch, num_graphs)
    assert value.shape == (num_graphs, out_size)
    assert jnp.allclose(value, ref, atol=2e-3, rtol=2e-3), (value, ref)

    print("KERNEL_OK")
</pallas_src>

<mosaic_0001>
module attributes {stable_mosaic.version = 11 : i64} {
  func.func private @main(%arg0: i32) attributes {dimension_semantics = [#tpu.dimension_semantics<core_parallel>], iteration_bounds = array<i64: 2>, tpu.core_type = #tpu.core_type<sc_scalar_subcore>, window_params = []} {
    return
  }
}

module attributes {stable_mosaic.version = 11 : i64} {
  func.func private @main(%arg0: i32) attributes {dimension_semantics = [#tpu.dimension_semantics<core_parallel>], iteration_bounds = array<i64: 2>, tpu.core_type = #tpu.core_type<sc_scalar_subcore>, window_params = []} {
    return
  }
}

module attributes {stable_mosaic.version = 11 : i64} {
  func.func @_gcn1_head_kernel(%arg0: i32, %arg1: i32, %arg2: memref<9xi32, #tpu.memory_space<smem>>, %arg3: memref<3xi32, #tpu.memory_space<smem>>, %arg4: memref<128x128xbf16, #tpu.memory_space<vmem>>, %arg5: memref<128x16xbf16, #tpu.memory_space<vmem>>, %arg6: memref<16x16xbf16, #tpu.memory_space<vmem>>, %arg7: memref<16x32xbf16, #tpu.memory_space<vmem>>, %arg8: memref<32x4xbf16, #tpu.memory_space<vmem>>, %arg9: memref<1x128xi32, #tpu.memory_space<vmem>>, %arg10: memref<1x3x4xf32, #tpu.memory_space<vmem>>, %arg11: memref<128x16xf32, #tpu.memory_space<vmem>>) attributes {dimension_semantics = [#tpu.dimension_semantics<parallel>, #tpu.dimension_semantics<arbitrary>], iteration_bounds = array<i64: 3, 3>, scalar_prefetch = 2 : i64, scratch_operands = 1 : i64, tpu.core_type = #tpu.core_type<tc>, window_params = [{transform_indices = @transform_0, window_bounds = array<i64: 128, 128>}, {transform_indices = @transform_1, window_bounds = array<i64: 128, 16>}, {pipeline_mode = #tpu.pipeline_mode<synchronous>, transform_indices = @transform_2, window_bounds = array<i64: 16, 16>}, {pipeline_mode = #tpu.pipeline_mode<synchronous>, transform_indices = @transform_3, window_bounds = array<i64: 16, 32>}, {pipeline_mode = #tpu.pipeline_mode<synchronous>, transform_indices = @transform_4, window_bounds = array<i64: 32, 4>}, {transform_indices = @transform_5, window_bounds = array<i64: 1, 128>}, {transform_indices = @transform_6, window_bounds = array<i64: 1, 3, 4>}]} {
    %c0_i32 = arith.constant 0 : i32
    %0 = arith.cmpi eq, %arg1, %c0_i32 : i32
    %1 = arith.extui %0 : i1 to i32
    %c0_i32_0 = arith.constant 0 : i32
    %2 = arith.cmpi ne, %1, %c0_i32_0 : i32
    scf.if %2 {
      %cst = arith.constant 0.000000e+00 : f32
      %11 = vector.broadcast %cst : f32 to vector<128x16xf32>
      %c0 = arith.constant 0 : index
      %c0_3 = arith.constant 0 : index
      %12 = vector.load %arg11[%c0, %c0_3] : memref<128x16xf32, #tpu.memory_space<vmem>>, vector<128x16xf32>
      tpu.vector_store %arg11[%c0, %c0_3], %11 {strides = array<i32>} : memref<128x16xf32, #tpu.memory_space<vmem>>, vector<128x16xf32>,
    } else {
    }
    %3 = arith.index_cast %arg0 : i32 to index
    %4 = memref.load %arg3[%3] : memref<3xi32, #tpu.memory_space<smem>>
    %5 = arith.cmpi slt, %arg1, %4 : i32
    %6 = arith.extui %5 : i1 to i32
    %c0_i32_1 = arith.constant 0 : i32
    %7 = arith.cmpi ne, %6, %c0_i32_1 : i32
    scf.if %7 {
      %c0 = arith.constant 0 : index
      %c0_3 = arith.constant 0 : index
      %11 = vector.load %arg11[%c0, %c0_3] : memref<128x16xf32, #tpu.memory_space<vmem>>, vector<128x16xf32>
      %c0_4 = arith.constant 0 : index
      %c0_5 = arith.constant 0 : index
      %12 = vector.load %arg4[%c0_4, %c0_5] : memref<128x128xbf16, #tpu.memory_space<vmem>>, vector<128x128xbf16>
      %c0_6 = arith.constant 0 : index
      %c0_7 = arith.constant 0 : index
      %13 = vector.load %arg5[%c0_6, %c0_7] : memref<128x16xbf16, #tpu.memory_space<vmem>>, vector<128x16xbf16>
      %cst = arith.constant dense<0.000000e+00> : vector<128x16xf32>
      %14 = tpu.matmul %12, %13, %cst {dimension_numbers = #tpu.dot_dimension_numbers<[1], [0], [0], [1], [0, 0, 1, 1], [], []>} : vector<128x128xbf16>, vector<128x16xbf16>, vector<128x16xf32> -> vector<128x16xf32>
      %15 = arith.addf %11, %14 : vector<128x16xf32>
      %c0_8 = arith.constant 0 : index
      %c0_9 = arith.constant 0 : index
      %16 = vector.load %arg11[%c0_8, %c0_9] : memref<128x16xf32, #tpu.memory_space<vmem>>, vector<128x16xf32>
      tpu.vector_store %arg11[%c0_8, %c0_9], %15 {strides = array<i32>} : memref<128x16xf32, #tpu.memory_space<vmem>>, vector<128x16xf32>,
    } else {
    }
    %c2_i32 = arith.constant 2 : i32
    %8 = arith.cmpi eq, %arg1, %c2_i32 : i32
    %9 = arith.extui %8 : i1 to i32
    %c0_i32_2 = arith.constant 0 : i32
    %10 = arith.cmpi ne, %9, %c0_i32_2 : i32
    scf.if %10 {
      %c0 = arith.constant 0 : index
      %c0_3 = arith.constant 0 : index
      %11 = vector.load %arg6[%c0, %c0_3] : memref<16x16xbf16, #tpu.memory_space<vmem>>, vector<16x16xbf16>
      %12 = arith.extf %11 : vector<16x16xbf16> to vector<16x16xf32>
      %c0_4 = arith.constant 0 : index
      %c0_5 = arith.constant 0 : index
      %13 = vector.load %arg7[%c0_4, %c0_5] : memref<16x32xbf16, #tpu.memory_space<vmem>>, vector<16x32xbf16>
      %14 = arith.extf %13 : vector<16x32xbf16> to vector<16x32xf32>
      %c0_6 = arith.constant 0 : index
      %c0_7 = arith.constant 0 : index
      %15 = vector.load %arg8[%c0_6, %c0_7] : memref<32x4xbf16, #tpu.memory_space<vmem>>, vector<32x4xbf16>
      %16 = arith.extf %15 : vector<32x4xbf16> to vector<32x4xf32>
      %c0_8 = arith.constant 0 : index
      %c0_9 = arith.constant 0 : index
      %17 = vector.load %arg11[%c0_8, %c0_9] : memref<128x16xf32, #tpu.memory_space<vmem>>, vector<128x16xf32>
      %cst = arith.constant dense<0.000000e+00> : vector<128x16xf32>
      %18 = tpu.matmul %17, %12, %cst {dimension_numbers = #tpu.dot_dimension_numbers<[1], [0], [0], [1], [0, 0, 1, 1], [], []>} : vector<128x16xf32>, vector<16x16xf32>, vector<128x16xf32> -> vector<128x16xf32>
      %cst_10 = arith.constant 0.000000e+00 : f32
      %19 = vector.broadcast %cst_10 : f32 to vector<128x16xf32>
      %20 = arith.cmpf ogt, %18, %19 : vector<128x16xf32>
      %cst_11 = arith.constant 0.00999999977 : f32
      %21 = vector.broadcast %cst_11 : f32 to vector<128x16xf32>
      %22 = arith.mulf %21, %18 : vector<128x16xf32>
      %23 = arith.select %20, %18, %22 : vector<128x16xi1>, vector<128x16xf32>
      %cst_12 = arith.constant dense<0.000000e+00> : vector<128x32xf32>
      %24 = tpu.matmul %23, %14, %cst_12 {dimension_numbers = #tpu.dot_dimension_numbers<[1], [0], [0], [1], [0, 0, 1, 1], [], []>} : vector<128x16xf32>, vector<16x32xf32>, vector<128x32xf32> -> vector<128x32xf32>
      %cst_13 = arith.constant 0.000000e+00 : f32
      %25 = vector.broadcast %cst_13 : f32 to vector<128x32xf32>
      %26 = arith.cmpf ogt, %24, %25 : vector<128x32xf32>
      %cst_14 = arith.constant 0.00999999977 : f32
      %27 = vector.broadcast %cst_14 : f32 to vector<128x32xf32>
      %28 = arith.mulf %27, %24 : vector<128x32xf32>
      %29 = arith.select %26, %24, %28 : vector<128x32xi1>, vector<128x32xf32>
      %cst_15 = arith.constant dense<0.000000e+00> : vector<128x4xf32>
      %30 = tpu.matmul %29, %16, %cst_15 {dimension_numbers = #tpu.dot_dimension_numbers<[1], [0], [0], [1], [0, 0, 1, 1], [], []>} : vector<128x32xf32>, vector<32x4xf32>, vector<128x4xf32> -> vector<128x4xf32>
      %cst_16 = arith.constant 0.000000e+00 : f32
      %31 = vector.broadcast %cst_16 : f32 to vector<128x4xf32>
      %32 = arith.cmpf ogt, %30, %31 : vector<128x4xf32>
      %cst_17 = arith.constant 0.00999999977 : f32
      %33 = vector.broadcast %cst_17 : f32 to vector<128x4xf32>
      %34 = arith.mulf %33, %30 : vector<128x4xf32>
      %35 = arith.select %32, %30, %34 : vector<128x4xi1>, vector<128x4xf32>
      %c0_18 = arith.constant 0 : index
      %c0_19 = arith.constant 0 : index
      %36 = vector.load %arg9[%c0_18, %c0_19] : memref<1x128xi32, #tpu.memory_space<vmem>>, vector<1x128xi32>
      %37 = tpu.iota {dimensions = array<i32: 0>} : vector<3x128xi32>
      %38 = vector.broadcast %36 : vector<1x128xi32> to vector<3x128xi32>
      %39 = arith.cmpi eq, %37, %38 : vector<3x128xi32>
      %40 = arith.extui %39 : vector<3x128xi1> to vector<3x128xi32>
      %41 = arith.sitofp %40 : vector<3x128xi32> to vector<3x128xf32>
      %cst_20 = arith.constant dense<0.000000e+00> : vector<3x4xf32>
      %42 = tpu.matmul %41, %35, %cst_20 {dimension_numbers = #tpu.dot_dimension_numbers<[1], [0], [0], [1], [0, 0, 1, 1], [], []>} : vector<3x128xf32>, vector<128x4xf32>, vector<3x4xf32> -> vector<3x4xf32>
      %c0_21 = arith.constant 0 : index
      %c0_22 = arith.constant 0 : index
      %c0_23 = arith.constant 0 : index
      %43 = vector.load %arg10[%c0_21, %c0_22, %c0_23] : memref<1x3x4xf32, #tpu.memory_space<vmem>>, vector<1x3x4xf32>
      %44 = vector.shape_cast %43 : vector<1x3x4xf32> to vector<3x4xf32>
      %45 = vector.shape_cast %42 : vector<3x4xf32> to vector<1x3x4xf32>
      tpu.vector_store %arg10[%c0_21, %c0_22, %c0_23], %45 {strides = array<i32>} : memref<1x3x4xf32, #tpu.memory_space<vmem>>, vector<1x3x4xf32>,
    } else {
    }
    return
  }
  func.func @transform_0(%arg0: i32, %arg1: i32, %arg2: memref<9xi32, #tpu.memory_space<smem>>, %arg3: memref<3xi32, #tpu.memory_space<smem>>) -> (i32, i32) {
    %c3_i32 = arith.constant 3 : i32
    %0 = arith.muli %arg0, %c3_i32 : i32
    %1 = arith.addi %0, %arg1 : i32
    %2 = arith.index_cast %1 : i32 to index
    %3 = memref.load %arg2[%2] : memref<9xi32, #tpu.memory_space<smem>>
    %c0_i32 = arith.constant 0 : i32
    return %arg0, %3 : i32, i32
  }
  func.func @transform_1(%arg0: i32, %arg1: i32, %arg2: memref<9xi32, #tpu.memory_space<smem>>, %arg3: memref<3xi32, #tpu.memory_space<smem>>) -> (i32, i32) {
    %c3_i32 = arith.constant 3 : i32
    %0 = arith.muli %arg0, %c3_i32 : i32
    %1 = arith.addi %0, %arg1 : i32
    %2 = arith.index_cast %1 : i32 to index
    %3 = memref.load %arg2[%2] : memref<9xi32, #tpu.memory_space<smem>>
    %c0_i32 = arith.constant 0 : i32
    %c0_i32_0 = arith.constant 0 : i32
    return %3, %c0_i32 : i32, i32
  }
  func.func @transform_2(%arg0: i32, %arg1: i32, %arg2: memref<9xi32, #tpu.memory_space<smem>>, %arg3: memref<3xi32, #tpu.memory_space<smem>>) -> (i32, i32) {
    %c0_i32 = arith.constant 0 : i32
    %c0_i32_0 = arith.constant 0 : i32
    %c0_i32_1 = arith.constant 0 : i32
    return %c0_i32, %c0_i32_0 : i32, i32
  }
  func.func @transform_3(%arg0: i32, %arg1: i32, %arg2: memref<9xi32, #tpu.memory_space<smem>>, %arg3: memref<3xi32, #tpu.memory_space<smem>>) -> (i32, i32) {
    %c0_i32 = arith.constant 0 : i32
    %c0_i32_0 = arith.constant 0 : i32
    %c0_i32_1 = arith.constant 0 : i32
    return %c0_i32, %c0_i32_0 : i32, i32
  }
  func.func @transform_4(%arg0: i32, %arg1: i32, %arg2: memref<9xi32, #tpu.memory_space<smem>>, %arg3: memref<3xi32, #tpu.memory_space<smem>>) -> (i32, i32) {
    %c0_i32 = arith.constant 0 : i32
    %c0_i32_0 = arith.constant 0 : i32
    %c0_i32_1 = arith.constant 0 : i32
    return %c0_i32, %c0_i32_0 : i32, i32
  }
  func.func @transform_5(%arg0: i32, %arg1: i32, %arg2: memref<9xi32, #tpu.memory_space<smem>>, %arg3: memref<3xi32, #tpu.memory_space<smem>>) -> (i32, i32) {
    %c0_i32 = arith.constant 0 : i32
    %c0_i32_0 = arith.constant 0 : i32
    return %c0_i32, %arg0 : i32, i32
  }
  func.func @transform_6(%arg0: i32, %arg1: i32, %arg2: memref<9xi32, #tpu.memory_space<smem>>, %arg3: memref<3xi32, #tpu.memory_space<smem>>) -> (i32, i32, i32) {
    %c0_i32 = arith.constant 0 : i32
    %c0_i32_0 = arith.constant 0 : i32
    %c0_i32_1 = arith.constant 0 : i32
    return %arg0, %c0_i32, %c0_i32_0 : i32, i32, i32
  }
}

module attributes {stable_mosaic.version = 11 : i64} {
  func.func @_gcn0_kernel(%arg0: i32, %arg1: i32, %arg2: memref<9xi32, #tpu.memory_space<smem>>, %arg3: memref<3xi32, #tpu.memory_space<smem>>, %arg4: memref<128x128xbf16, #tpu.memory_space<vmem>>, %arg5: memref<128x8xbf16, #tpu.memory_space<vmem>>, %arg6: memref<8x16xbf16, #tpu.memory_space<vmem>>, %arg7: memref<128x16xbf16, #tpu.memory_space<vmem>>, %arg8: memref<128x8xf32, #tpu.memory_space<vmem>>) attributes {dimension_semantics = [#tpu.dimension_semantics<parallel>, #tpu.dimension_semantics<arbitrary>], iteration_bounds = array<i64: 3, 3>, scalar_prefetch = 2 : i64, scratch_operands = 1 : i64, tpu.core_type = #tpu.core_type<tc>, window_params = [{transform_indices = @transform_0, window_bounds = array<i64: 128, 128>}, {transform_indices = @transform_1, window_bounds = array<i64: 128, 8>}, {pipeline_mode = #tpu.pipeline_mode<synchronous>, transform_indices = @transform_2, window_bounds = array<i64: 8, 16>}, {transform_indices = @transform_3, window_bounds = array<i64: 128, 16>}]} {
    %c0_i32 = arith.constant 0 : i32
    %0 = arith.cmpi eq, %arg1, %c0_i32 : i32
    %1 = arith.extui %0 : i1 to i32
    %c0_i32_0 = arith.constant 0 : i32
    %2 = arith.cmpi ne, %1, %c0_i32_0 : i32
    scf.if %2 {
      %cst = arith.constant 0.000000e+00 : f32
      %11 = vector.broadcast %cst : f32 to vector<128x8xf32>
      %c0 = arith.constant 0 : index
      %c0_3 = arith.constant 0 : index
      %12 = vector.load %arg8[%c0, %c0_3] : memref<128x8xf32, #tpu.memory_space<vmem>>, vector<128x8xf32>
      tpu.vector_store %arg8[%c0, %c0_3], %11 {strides = array<i32>} : memref<128x8xf32, #tpu.memory_space<vmem>>, vector<128x8xf32>,
    } else {
    }
    %3 = arith.index_cast %arg0 : i32 to index
    %4 = memref.load %arg3[%3] : memref<3xi32, #tpu.memory_space<smem>>
    %5 = arith.cmpi slt, %arg1, %4 : i32
    %6 = arith.extui %5 : i1 to i32
    %c0_i32_1 = arith.constant 0 : i32
    %7 = arith.cmpi ne, %6, %c0_i32_1 : i32
    scf.if %7 {
      %c0 = arith.constant 0 : index
      %c0_3 = arith.constant 0 : index
      %11 = vector.load %arg8[%c0, %c0_3] : memref<128x8xf32, #tpu.memory_space<vmem>>, vector<128x8xf32>
      %c0_4 = arith.constant 0 : index
      %c0_5 = arith.constant 0 : index
      %12 = vector.load %arg4[%c0_4, %c0_5] : memref<128x128xbf16, #tpu.memory_space<vmem>>, vector<128x128xbf16>
      %c0_6 = arith.constant 0 : index
      %c0_7 = arith.constant 0 : index
      %13 = vector.load %arg5[%c0_6, %c0_7] : memref<128x8xbf16, #tpu.memory_space<vmem>>, vector<128x8xbf16>
      %cst = arith.constant dense<0.000000e+00> : vector<128x8xf32>
      %14 = tpu.matmul %12, %13, %cst {dimension_numbers = #tpu.dot_dimension_numbers<[1], [0], [0], [1], [0, 0, 1, 1], [], []>} : vector<128x128xbf16>, vector<128x8xbf16>, vector<128x8xf32> -> vector<128x8xf32>
      %15 = arith.addf %11, %14 : vector<128x8xf32>
      %c0_8 = arith.constant 0 : index
      %c0_9 = arith.constant 0 : index
      %16 = vector.load %arg8[%c0_8, %c0_9] : memref<128x8xf32, #tpu.memory_space<vmem>>, vector<128x8xf32>
      tpu.vector_store %arg8[%c0_8, %c0_9], %15 {strides = array<i32>} : memref<128x8xf32, #tpu.memory_space<vmem>>, vector<128x8xf32>,
    } else {
    }
    %c2_i32 = arith.constant 2 : i32
    %8 = arith.cmpi eq, %arg1, %c2_i32 : i32
    %9 = arith.extui %8 : i1 to i32
    %c0_i32_2 = arith.constant 0 : i32
    %10 = arith.cmpi ne, %9, %c0_i32_2 : i32
    scf.if %10 {
      %c0 = arith.constant 0 : index
      %c0_3 = arith.constant 0 : index
      %11 = vector.load %arg6[%c0, %c0_3] : memref<8x16xbf16, #tpu.memory_space<vmem>>, vector<8x16xbf16>
      %12 = arith.extf %11 : vector<8x16xbf16> to vector<8x16xf32>
      %c0_4 = arith.constant 0 : index
      %c0_5 = arith.constant 0 : index
      %13 = vector.load %arg8[%c0_4, %c0_5] : memref<128x8xf32, #tpu.memory_space<vmem>>, vector<128x8xf32>
      %cst = arith.constant dense<0.000000e+00> : vector<128x16xf32>
      %14 = tpu.matmul %13, %12, %cst {dimension_numbers = #tpu.dot_dimension_numbers<[1], [0], [0], [1], [0, 0, 1, 1], [], []>} : vector<128x8xf32>, vector<8x16xf32>, vector<128x16xf32> -> vector<128x16xf32>
      %cst_6 = arith.constant 0.000000e+00 : f32
      %15 = vector.broadcast %cst_6 : f32 to vector<128x16xf32>
      %16 = arith.cmpf ogt, %14, %15 : vector<128x16xf32>
      %cst_7 = arith.constant 0.00999999977 : f32
      %17 = vector.broadcast %cst_7 : f32 to vector<128x16xf32>
      %18 = arith.mulf %17, %14 : vector<128x16xf32>
      %19 = arith.select %16, %14, %18 : vector<128x16xi1>, vector<128x16xf32>
      %20 = arith.truncf %19 : vector<128x16xf32> to vector<128x16xbf16>
      %c0_8 = arith.constant 0 : index
      %c0_9 = arith.constant 0 : index
      %21 = vector.load %arg7[%c0_8, %c0_9] : memref<128x16xbf16, #tpu.memory_space<vmem>>, vector<128x16xbf16>
      tpu.vector_store %arg7[%c0_8, %c0_9], %20 {strides = array<i32>} : memref<128x16xbf16, #tpu.memory_space<vmem>>, vector<128x16xbf16>,
    } else {
    }
    return
  }
  func.func @transform_0(%arg0: i32, %arg1: i32, %arg2: memref<9xi32, #tpu.memory_space<smem>>, %arg3: memref<3xi32, #tpu.memory_space<smem>>) -> (i32, i32) {
    %c3_i32 = arith.constant 3 : i32
    %0 = arith.muli %arg0, %c3_i32 : i32
    %1 = arith.addi %0, %arg1 : i32
    %2 = arith.index_cast %1 : i32 to index
    %3 = memref.load %arg2[%2] : memref<9xi32, #tpu.memory_space<smem>>
    %c0_i32 = arith.constant 0 : i32
    return %arg0, %3 : i32, i32
  }
  func.func @transform_1(%arg0: i32, %arg1: i32, %arg2: memref<9xi32, #tpu.memory_space<smem>>, %arg3: memref<3xi32, #tpu.memory_space<smem>>) -> (i32, i32) {
    %c3_i32 = arith.constant 3 : i32
    %0 = arith.muli %arg0, %c3_i32 : i32
    %1 = arith.addi %0, %arg1 : i32
    %2 = arith.index_cast %1 : i32 to index
    %3 = memref.load %arg2[%2] : memref<9xi32, #tpu.memory_space<smem>>
    %c0_i32 = arith.constant 0 : i32
    %c0_i32_0 = arith.constant 0 : i32
    return %3, %c0_i32 : i32, i32
  }
  func.func @transform_2(%arg0: i32, %arg1: i32, %arg2: memref<9xi32, #tpu.memory_space<smem>>, %arg3: memref<3xi32, #tpu.memory_space<smem>>) -> (i32, i32) {
    %c0_i32 = arith.constant 0 : i32
    %c0_i32_0 = arith.constant 0 : i32
    %c0_i32_1 = arith.constant 0 : i32
    return %c0_i32, %c0_i32_0 : i32, i32
  }
  func.func @transform_3(%arg0: i32, %arg1: i32, %arg2: memref<9xi32, #tpu.memory_space<smem>>, %arg3: memref<3xi32, #tpu.memory_space<smem>>) -> (i32, i32) {
    %c0_i32 = arith.constant 0 : i32
    %c0_i32_0 = arith.constant 0 : i32
    return %arg0, %c0_i32 : i32, i32
  }
}

</mosaic_0001>

<llo_original>
// kernel: _critic_forward_impl.2
$region0: #{_critic_forward_impl.2}
  #allocation0 [shape = 'u32[]', space=smem, size = 0x4, offset = 0x4, fixed_abs, tag = 'smem constant byte address 0x4 - core index']
  #allocation1 [shape = 'u32[144,128]{1,0:T(1,128)}', space=vmem, size = 0x12000, scoped, tag = 'internal scratch']
  #allocation2 [shape = 'f32[128,8]{1,0:T(8,128)}', space=vmem, size = 0x10000, scoped, tag = 'scratch operand']
  #allocation3 [shape = 's32[1]{0}', space=sflag, size = 0x4, scoped, tag = 'scoped memory for _critic_forward_impl.2']
  #allocation4 [shape = 'u8[512]{0}', space=smem, size = 0x200, scoped, tag = 'prefetched SMEM operand 0']
  #allocation5 [shape = 'u8[512]{0}', space=smem, size = 0x200, scoped, tag = 'prefetched SMEM operand 1']
  %s0 = inlined_call_operand.vmem [shape: s32[9], index: 0, kind: input, shape index: {}]
  %s1 = inlined_call_operand.vmem [shape: s32[3], index: 1, kind: input, shape index: {}]
  %s2 = inlined_call_operand.vmem [shape: bf16[384,384], index: 2, kind: input, shape index: {}]
  %s3 = inlined_call_operand.vmem [shape: bf16[384,8], index: 3, kind: input, shape index: {}]
  %s4 = inlined_call_operand.vmem [shape: bf16[8,16], index: 4, kind: input, shape index: {}]
  %s5 = inlined_call_operand.vmem [shape: bf16[384,16], index: 5, kind: output, shape index: {}]
  %s6 = sld [smem:[#allocation0]]
  $region98: #{_critic_forward_impl.2} parent=0
    _
  %s8 = ssub.s32 1, %s6
  %s9 = scalar_select 0, %s8, %s6
  %s10 = sshll.u32 %s0, 4
  %s11 = int_to_ptr.vmem [resolvable:$true] %s10
  %13 = dma.vmem_to_smem %s11, 16, [#allocation4], [#allocation3]
  %s14 = sshll.u32 %s1, 4
  %s15 = int_to_ptr.vmem [resolvable:$true] %s14
  %17 = dma.vmem_to_smem %s15, 16, [#allocation5], [#allocation3]
  %18 = dma.done [#allocation3], 32
  %19 = sfence
  $region1: #{_critic_forward_impl.2} parent=0
    #allocation6 [shape = 'u8[65536]{0}', space=vmem, size = 0x10000, scoped, tag = 'input window, operand 2']
    loop: start=0, step=1, limit=11
    $region2: #{_critic_forward_impl.2} parent=1 // loop_pre_header
      _
    $region3: #{_critic_forward_impl.2} parent=1 // loop_header
      %s21 = sphi 0, %s25
      %p22 = scmp.ge.s32.totalorder %s21, 11
      %s28 = sphi 0, %s40
      %s29 = sphi 0, %s36
      %s30 = sphi 0, %s28
      %s31 = sphi 0, %s29
      %s32 = sphi 0, %s30
      %s33 = sphi 0, %s31
      %s51 = sphi 0, %s53
      %s54 = sphi 0, %s51
      %s55 = sphi 0, %s54
      %s71 = sphi 0, %s55
      %s83 = sphi 0, %s85
      %s86 = sphi 0, %s83
      %s87 = sphi 0, %s86
      %s103 = sphi 0, %s87
      %s107 = sphi 0, %s107
      %s109 = sphi 0, %s107
      %s110 = sphi 0, %s109
      %s124 = sphi 0, %s110
      %s130 = sphi 0, %s132
      %s133 = sphi 0, %s130
      %s134 = sphi 0, %s133
      %s150 = sphi 0, %s134
    $region4: #{_critic_forward_impl.2} parent=1 // loop_header_branch
      %24 = sbr.rel (%p22) target = $region8
    $region5: #{_critic_forward_impl.2} parent=1 // loop_body
      %s26 = ssub.s32 %s21, 1
      %s27 = ssub.s32 %s21, 2
      %s34 = sadd.s32 1, %s29
      %p35 = scmp.ge.s32.totalorder %s34, 3
      %s36 = scalar_select %p35, 0, %s34
      %s37 = sadd.s32 1, %s28
      %s38 = scalar_select %p35, %s37, %s28
      %p39 = scmp.ge.s32.totalorder %s38, 3
      %s40 = scalar_select %p39, 0, %s38
      %s41 = smul.u32 %s28, 3
      %s42 = sadd.s32 %s41, %s29
      %s43 = sld [smem:[#allocation4 + %s42]]
      %s44 = smul.u32 %s40, 3
      %s45 = sadd.s32 %s44, %s36
      %s46 = sld [smem:[#allocation4 + %s45]]
      %s47 = ssub.s32 %s28, %s40
      %s48 = ssub.s32 %s43, %s46
      %s49 = sor.u32 %s47, %s48
      %p50 = scmp.eq.s32.totalorder %s49, 0
      %s52 = sadd.s32 %s51, 1
      %s53 = scalar_select %p50, %s51, %s52
      %p56 = pneg %p50
      %p57 = scmp.eq.s32.totalorder %s21, 8
      %p58 = por %p56, %p57
      %p59 = scmp.ne.s32.totalorder %s51, %s54
      %p60 = scmp.eq.s32.totalorder %s21, 0
      %p61 = por %p59, %p60
      %p62 = scmp.ne.s32.totalorder %s51, %s54
      %p63 = scmp.eq.s32.totalorder %s26, 8
      %p64 = por %p62, %p63
      %p65 = scmp.ne.s32.totalorder %s54, %s55
      %p66 = scmp.eq.s32.totalorder %s26, 0
      %p67 = por %p65, %p66
      %p68 = scmp.ne.s32.totalorder %s54, %s55
      %p69 = scmp.eq.s32.totalorder %s27, 8
      %p70 = por %p68, %p69
      %p72 = scmp.ne.s32.totalorder %s55, %s71
      %p73 = scmp.eq.s32.totalorder %s27, 0
      %p74 = por %p72, %p73
      %s75 = smul.u32 %s28, 3
      %s76 = sadd.s32 %s75, %s29
      %s77 = sld [smem:[#allocation4 + %s76]]
      %s78 = smul.u32 %s40, 3
      %s79 = sadd.s32 %s78, %s36
      %s80 = sld [smem:[#allocation4 + %s79]]
      %s81 = ssub.s32 %s77, %s80
      %p82 = scmp.eq.s32.totalorder %s81, 0
      %s84 = sadd.s32 %s83, 1
      %s85 = scalar_select %p82, %s83, %s84
      %p88 = pneg %p82
      %p89 = scmp.eq.s32.totalorder %s21, 8
      %p90 = por %p88, %p89
      %p91 = scmp.ne.s32.totalorder %s83, %s86
      %p92 = scmp.eq.s32.totalorder %s21, 0
      %p93 = por %p91, %p92
      %p94 = scmp.ne.s32.totalorder %s83, %s86
      %p95 = scmp.eq.s32.totalorder %s26, 8
      %p96 = por %p94, %p95
      %p97 = scmp.ne.s32.totalorder %s86, %s87
      %p98 = scmp.eq.s32.totalorder %s26, 0
      %p99 = por %p97, %p98
      %p100 = scmp.ne.s32.totalorder %s86, %s87
      %p101 = scmp.eq.s32.totalorder %s27, 8
      %p102 = por %p100, %p101
      %p104 = scmp.ne.s32.totalorder %s87, %s103
      %p105 = scmp.eq.s32.totalorder %s27, 0
      %p106 = por %p104, %p105
      %s108 = sadd.s32 %s107, 1
      %p111 = scmp.eq.s32.totalorder %s21, 8
      %p112 = scmp.ne.s32.totalorder %s107, %s109
      %p113 = scmp.eq.s32.totalorder %s21, 0
      %p114 = por %p112, %p113
      %p115 = scmp.ne.s32.totalorder %s107, %s109
      %p116 = scmp.eq.s32.totalorder %s26, 8
      %p117 = por %p115, %p116
      %p118 = scmp.ne.s32.totalorder %s109, %s110
      %p119 = scmp.eq.s32.totalorder %s26, 0
      %p120 = por %p118, %p119
      %p121 = scmp.ne.s32.totalorder %s109, %s110
      %p122 = scmp.eq.s32.totalorder %s27, 8
      %p123 = por %p121, %p122
      %p125 = scmp.ne.s32.totalorder %s110, %s124
      %p126 = scmp.eq.s32.totalorder %s27, 0
      %p127 = por %p125, %p126
      %s128 = ssub.s32 %s28, %s40
      %p129 = scmp.eq.s32.totalorder %s128, 0
      %s131 = sadd.s32 %s130, 1
      %s132 = scalar_select %p129, %s130, %s131
      %p135 = pneg %p129
      %p136 = scmp.eq.s32.totalorder %s21, 8
      %p137 = por %p135, %p136
      %p138 = scmp.ne.s32.totalorder %s130, %s133
      %p139 = scmp.eq.s32.totalorder %s21, 0
      %p140 = por %p138, %p139
      %p141 = scmp.ne.s32.totalorder %s130, %s133
      %p142 = scmp.eq.s32.totalorder %s26, 8
      %p143 = por %p141, %p142
      %p144 = scmp.ne.s32.totalorder %s133, %s134
      %p145 = scmp.eq.s32.totalorder %s26, 0
      %p146 = por %p144, %p145
      %p147 = scmp.ne.s32.totalorder %s133, %s134
      %p148 = scmp.eq.s32.totalorder %s27, 8
      %p149 = por %p147, %p148
      %p151 = scmp.ne.s32.totalorder %s134, %s150
      %p152 = scmp.eq.s32.totalorder %s27, 0
      %p153 = por %p151, %p152
      %p154 = scmp.le.s32.totalorder 1, %s21
      %p155 = scmp.lt.s32.totalorder %s21, 10
      %p156 = pnand %p154, %p155
      %p157 = pneg %p156
      // Predicated region
      $region9: #{_critic_forward_impl.2} parent=5 // pred_check
        _
      $region10: #{_critic_forward_impl.2} parent=5 // pred_check_branch
        %159 = sbr.rel (%p156) target = $region12
      $region11: #{_critic_forward_impl.2} parent=5 // pred_region
        %s160 = ssub.s32 %s21, 1
        // Predicated region
        $region13: #{_critic_forward_impl.2} parent=11 // pred_check
          %p161 = pneg %p120
        $region14: #{_critic_forward_impl.2} parent=11 // pred_check_branch
          %163 = sbr.rel (%p161) target = $region16
        $region15: #{_critic_forward_impl.2} parent=11 // pred_region
          _
        $region16: #{_critic_forward_impl.2} parent=11 // pred_fallthru
          _
      $region12: #{_critic_forward_impl.2} parent=5 // pred_fallthru
        _
      %p164 = scmp.lt.s32.totalorder %s21, 9
      // Predicated region
      $region17: #{_critic_forward_impl.2} parent=5 // pred_check
        %p165 = pneg %p164
      $region18: #{_critic_forward_impl.2} parent=5 // pred_check_branch
        %167 = sbr.rel (%p165) target = $region20
      $region19: #{_critic_forward_impl.2} parent=5 // pred_region
        // Predicated region
        $region21: #{_critic_forward_impl.2} parent=19 // pred_check
          %p168 = pneg %p61
        $region22: #{_critic_forward_impl.2} parent=19 // pred_check_branch
          %170 = sbr.rel (%p168) target = $region24
        $region23: #{_critic_forward_impl.2} parent=19 // pred_region
          %s171 = sand.u32 %s51, 1
          %s172 = sand.u32 %s51, 1
          %s173 = smul.addr %s172, 64
          %s174 = scalar_lea.vmem [#allocation6], %s173
          %s175 = smul.u32 %s28, 3
          %s176 = sadd.s32 %s175, %s29
          %s177 = sld [smem:[#allocation4 + %s176]]
          %s178 = smul.u32 16, %s28
          %s179 = smul.addr %s178, 3
          %s180 = sadd.s32 %s177, %s179
          %s181 = smul.addr %s180, 4
          %s182 = scalar_lea.vmem %s2, %s181
          // Predicated region
          $region25: #{_critic_forward_impl.2} parent=23 // pred_check
            _
          $region26: #{_critic_forward_impl.2} parent=23 // pred_check_branch
            %184 = sbr.rel (0) target = $region28
          $region27: #{_critic_forward_impl.2} parent=23 // pred_region
            // Predicated region
            $region29: #{_critic_forward_impl.2} parent=27 // pred_check
              _
            $region30: #{_critic_forward_impl.2} parent=27 // pred_check_branch
              %186 = sbr.rel target = $region32
            $region31: #{_critic_forward_impl.2} parent=27 // pred_region
              // Predicated region
              $region44: #{_critic_forward_impl.2} parent=31 // pred_check
                _
              $region45: #{_critic_forward_impl.2} parent=31 // pred_check_branch
                %231 = sbr.rel (0) target = $region47
              $region46: #{_critic_forward_impl.2} parent=31 // pred_region
                loop: start=0, step=1, limit=1
                $region48: #{_critic_forward_impl.2} parent=46 // loop_pre_header
                  _
                $region49: #{_critic_forward_impl.2} parent=46 // loop_header
                  %s233 = sphi 0, %s237
                  %p234 = scmp.ge.s32.totalorder %s233, 1
                  %s238 = sphi %s182, %s182
                  %s239 = sphi %s174, %s174
                $region50: #{_critic_forward_impl.2} parent=46 // loop_header_branch
                  %236 = sbr.rel (%p234) target = $region54
                $region51: #{_critic_forward_impl.2} parent=46 // loop_body
                  _
                $region52: #{_critic_forward_impl.2} parent=46 // loop_footer
                  %s237 = sadd.s32 1, %s233
                $region53: #{_critic_forward_impl.2} parent=46 // loop_footer_branch
                  %232 = sbr.rel target = $region49
                $region54: #{_critic_forward_impl.2} parent=46 // loop_exit
                  _
                loop: start=0, step=1, limit=1
                $region55: #{_critic_forward_impl.2} parent=46 // loop_pre_header
                  _
                $region56: #{_critic_forward_impl.2} parent=46 // loop_header
                  %s242 = sphi 0, %s246
                  %p243 = scmp.ge.s32.totalorder %s242, 1
                  %s247 = sphi %s182, %s182
                  %s248 = sphi %s174, %s174
                $region57: #{_critic_forward_impl.2} parent=46 // loop_header_branch
                  %245 = sbr.rel (%p243) target = $region61
                $region58: #{_critic_forward_impl.2} parent=46 // loop_body
                  %v249 = vld [vmem:[%s247] sm:$0xf]
                  %250 = vst [vmem:[%s248] sm:$0xf] %v249
                  %v251 = vld [vmem:[%s247 + $0xc] sm:$0xf]
                  %252 = vst [vmem:[%s248 + $0x4] sm:$0xf] %v251
                  %v253 = vld [vmem:[%s247 + $0x18] sm:$0xf]
                  %254 = vst [vmem:[%s248 + $0x8] sm:$0xf] %v253
                  %v255 = vld [vmem:[%s247 + $0x24] sm:$0xf]
                  %256 = vst [vmem:[%s248 + $0xc] sm:$0xf] %v255
                  %v257 = vld [vmem:[%s247 + $0x30] sm:$0xf]
                  %258 = vst [vmem:[%s248 + $0x10] sm:$0xf] %v257
                  %v259 = vld [vmem:[%s247 + $0x3c] sm:$0xf]
                  %260 = vst [vmem:[%s248 + $0x14] sm:$0xf] %v259
                  %v261 = vld [vmem:[%s247 + $0x48] sm:$0xf]
                  %262 = vst [vmem:[%s248 + $0x18] sm:$0xf] %v261
                  %v263 = vld [vmem:[%s247 + $0x54] sm:$0xf]
                  %264 = vst [vmem:[%s248 + $0x1c] sm:$0xf] %v263
                  %v265 = vld [vmem:[%s247 + $0x60] sm:$0xf]
                  %266 = vst [vmem:[%s248 + $0x20] sm:$0xf] %v265
                  %v267 = vld [vmem:[%s247 + $0x6c] sm:$0xf]
                  %268 = vst [vmem:[%s248 + $0x24] sm:$0xf] %v267
                  %v269 = vld [vmem:[%s247 + $0x78] sm:$0xf]
                  %270 = vst [vmem:[%s248 + $0x28] sm:$0xf] %v269
                  %v271 = vld [vmem:[%s247 + $0x84] sm:$0xf]
                  %272 = vst [vmem:[%s248 + $0x2c] sm:$0xf] %v271
                  %v273 = vld [vmem:[%s247 + $0x90] sm:$0xf]
                  %274 = vst [vmem:[%s248 + $0x30] sm:$0xf] %v273
                  %v275 = vld [vmem:[%s247 + $0x9c] sm:$0xf]
                  %276 = vst [vmem:[%s248 + $0x34] sm:$0xf] %v275
                  %v277 = vld [vmem:[%s247 + $0xa8] sm:$0xf]
                  %278 = vst [vmem:[%s248 + $0x38] sm:$0xf] %v277
                  %v279 = vld [vmem:[%s247 + $0xb4] sm:$0xf]
                  %280 = vst [vmem:[%s248 + $0x3c] sm:$0xf] %v279
                $region59: #{_critic_forward_impl.2} parent=46 // loop_footer
                  %s246 = sadd.s32 1, %s242
                $region60: #{_critic_forward_impl.2} parent=46 // loop_footer_branch
                  %241 = sbr.rel target = $region56
                $region61: #{_critic_forward_impl.2} parent=46 // loop_exit
                  _
              $region47: #{_critic_forward_impl.2} parent=31 // pred_fallthru
                _
            $region32: #{_critic_forward_impl.2} parent=27 // pred_fallthru
              _
            // Predicated region
            $region33: #{_critic_forward_impl.2} parent=27 // pred_check
              _
            $region34: #{_critic_forward_impl.2} parent=27 // pred_check_branch
              %188 = sbr.rel (0) target = $region36
            $region35: #{_critic_forward_impl.2} parent=27 // pred_region
              loop: start=0, step=1, limit=1
              $region37: #{_critic_forward_impl.2} parent=35 // loop_pre_header
                _
              $region38: #{_critic_forward_impl.2} parent=35 // loop_header
                %s191 = sphi 0, %s195
                %p192 = scmp.ge.s32.totalorder %s191, 1
                %s196 = sphi %s182, %s182
                %s197 = sphi %s174, %s174
              $region39: #{_critic_forward_impl.2} parent=35 // loop_header_branch
                %194 = sbr.rel (%p192) target = $region43
              $region40: #{_critic_forward_impl.2} parent=35 // loop_body
                %v198 = vld [vmem:[%s196] sm:$0xf]
                %199 = vst [vmem:[%s197] sm:$0xf] %v198
                %v200 = vld [vmem:[%s196 + $0xc] sm:$0xf]
                %201 = vst [vmem:[%s197 + $0x4] sm:$0xf] %v200
                %v202 = vld [vmem:[%s196 + $0x18] sm:$0xf]
                %203 = vst [vmem:[%s197 + $0x8] sm:$0xf] %v202
                %v204 = vld [vmem:[%s196 + $0x24] sm:$0xf]
                %205 = vst [vmem:[%s197 + $0xc] sm:$0xf] %v204
                %v206 = vld [vmem:[%s196 + $0x30] sm:$0xf]
                %207 = vst [vmem:[%s197 + $0x10] sm:$0xf] %v206
                %v208 = vld [vmem:[%s196 + $0x3c] sm:$0xf]
                %209 = vst [vmem:[%s197 + $0x14] sm:$0xf] %v208
                %v210 = vld [vmem:[%s196 + $0x48] sm:$0xf]
                %211 = vst [vmem:[%s197 + $0x18] sm:$0xf] %v210
                %v212 = vld [vmem:[%s196 + $0x54] sm:$0xf]
                %213 = vst [vmem:[%s197 + $0x1c] sm:$0xf] %v212
                %v214 = vld [vmem:[%s196 + $0x60] sm:$0xf]
                %215 = vst [vmem:[%s197 + $0x20] sm:$0xf] %v214
                %v216 = vld [vmem:[%s196 + $0x6c] sm:$0xf]
                %217 = vst [vmem:[%s197 + $0x24] sm:$0xf] %v216
                %v218 = vld [vmem:[%s196 + $0x78] sm:$0xf]
                %219 = vst [vmem:[%s197 + $0x28] sm:$0xf] %v218
                %v220 = vld [vmem:[%s196 + $0x84] sm:$0xf]
                %221 = vst [vmem:[%s197 + $0x2c] sm:$0xf] %v220
                %v222 = vld [vmem:[%s196 + $0x90] sm:$0xf]
                %223 = vst [vmem:[%s197 + $0x30] sm:$0xf] %v222
                %v224 = vld [vmem:[%s196 + $0x9c] sm:$0xf]
                %225 = vst [vmem:[%s197 + $0x34] sm:$0xf] %v224
                %v226 = vld [vmem:[%s196 + $0xa8] sm:$0xf]
                %227 = vst [vmem:[%s197 + $0x38] sm:$0xf] %v226
                %v228 = vld [vmem:[%s196 + $0xb4] sm:$0xf]
                %229 = vst [vmem:[%s197 + $0x3c] sm:$0xf] %v228
              $region41: #{_critic_forward_impl.2} parent=35 // loop_footer
                %s195 = sadd.s32 1, %s191
              $region42: #{_critic_forward_impl.2} parent=35 // loop_footer_branch
                %190 = sbr.rel target = $region38
              $region43: #{_critic_forward_impl.2} parent=35 // loop_exit
                _
            $region36: #{_critic_forward_impl.2} parent=27 // pred_fallthru
              _
          $region28: #{_critic_forward_impl.2} parent=23 // pred_fallthru
            _
          %281 = vnop
        $region24: #{_critic_forward_impl.2} parent=19 // pred_fallthru
          _
        // Predicated region
        $region62: #{_critic_forward_impl.2} parent=19 // pred_check
          %p282 = pneg %p93
        $region63: #{_critic_forward_impl.2} parent=19 // pred_check_branch
          %284 = sbr.rel (%p282) target = $region65
        $region64: #{_critic_forward_impl.2} parent=19 // pred_region
          %s285 = smul.u32 %s28, 3
          %s286 = sadd.s32 %s285, %s29
          %s287 = sld [smem:[#allocation4 + %s286]]
          %s288 = smul.u32 16, %s287
          %p289 = scmp.lt.s32.totalorder %s288, 47
          %s290 = scalar_select %p289, %s288, 47
          %s291 = smul.addr %s290, 4
          %s292 = scalar_lea.vmem %s3, %s291
          %s293 = smul.u32 %s28, 3
          %s294 = sadd.s32 %s293, %s29
          %s295 = sld [smem:[#allocation4 + %s294]]
          %s296 = smul.u32 16, %s295
        $region65: #{_critic_forward_impl.2} parent=19 // pred_fallthru
          _
      $region20: #{_critic_forward_impl.2} parent=5 // pred_fallthru
        _
      %p297 = scmp.le.s32.totalorder 1, %s21
      %p298 = scmp.lt.s32.totalorder %s21, 10
      %p299 = pnand %p297, %p298
      %p300 = pneg %p299
      // Predicated region
      $region66: #{_critic_forward_impl.2} parent=5 // pred_check
        _
      $region67: #{_critic_forward_impl.2} parent=5 // pred_check_branch
        %302 = sbr.rel (%p299) target = $region69
      $region68: #{_critic_forward_impl.2} parent=5 // pred_region
        %s303 = ssub.s32 %s21, 1
        %s304 = sand.u32 %s54, 1
        %s305 = sand.u32 %s54, 1
        %s306 = smul.addr %s305, 64
        %s307 = scalar_lea.vmem [#allocation6], %s306
        // Predicated region
        $region70: #{_critic_forward_impl.2} parent=68 // pred_check
          %p308 = pneg %p67
        $region71: #{_critic_forward_impl.2} parent=68 // pred_check_branch
          %310 = sbr.rel (%p308) target = $region73
        $region72: #{_critic_forward_impl.2} parent=68 // pred_region
          _
        $region73: #{_critic_forward_impl.2} parent=68 // pred_fallthru
          _
        %s311 = sand.u32 %s54, 1
        %s312 = sand.u32 %s54, 1
        %s313 = smul.addr %s312, 64
        %s314 = scalar_lea.vmem [#allocation6], %s313
        %p315 = pneg %p67
        %p316 = pneg %p64
        %s317 = smul.u32 %s30, 3
        %s318 = sadd.s32 %s317, %s31
        %s319 = sld [smem:[#allocation4 + %s318]]
        %s320 = smul.u32 16, %s319
        %p321 = scmp.lt.s32.totalorder %s320, 47
        %s322 = scalar_select %p321, %s320, 47
        %s323 = smul.addr %s322, 4
        %s324 = scalar_lea.vmem %s3, %s323
        %p325 = pneg %p99
        %p326 = pneg %p96
        %p327 = pneg %p120
        %p328 = pneg %p117
        %p329 = pneg %p146
        %p330 = pneg %p143
        %s331 = smul.u32 16, %s30
        %p332 = scmp.lt.s32.totalorder %s331, 47
        %s333 = scalar_select %p332, %s331, 47
        %s334 = smul.addr %s333, 4
        %s335 = scalar_lea.vmem %s5, %s334
        %s336 = smul.u32 %s30, 3
        %s337 = sadd.s32 %s336, %s31
        %s338 = sld [smem:[#allocation4 + %s337]]
        %s339 = smul.u32 16, %s30
        %s340 = smul.u32 %s30, 3
        %s341 = sadd.s32 %s340, %s31
        %s342 = sld [smem:[#allocation4 + %s341]]
        %s343 = smul.u32 16, %s342
        %p344 = scmp.lt.s32.totalorder %s343, 47
        %s345 = scalar_select %p344, %s343, 47
        %s346 = smul.addr %s345, 4
        %s347 = scalar_lea.vmem %s3, %s346
        %s348 = smul.u32 %s30, 3
        %s349 = sadd.s32 %s348, %s31
        %s350 = sld [smem:[#allocation4 + %s349]]
        %s351 = smul.u32 16, %s350
        %s352 = smul.u32 16, %s30
        %p353 = scmp.lt.s32.totalorder %s352, 47
        %s354 = scalar_select %p353, %s352, 47
        %s355 = smul.addr %s354, 4
        %s356 = scalar_lea.vmem %s5, %s355
        %s357 = smul.u32 16, %s30
        %p359 = scmp.eq.s32.totalorder %s31, 0
        // Predicated region
        $region74: #{_critic_forward_impl.2} parent=68 // pred_check
          %p360 = pneg %p359
        $region75: #{_critic_forward_impl.2} parent=68 // pred_check_branch
          %362 = sbr.rel (%p360) target = $region77
        $region76: #{_critic_forward_impl.2} parent=68 // pred_region
          %vm363 = vcmask 64512
          %364 = vst.msk [vmem:[#allocation2] sm:$0xff] %vm363, 0.0
          %365 = vst.msk [vmem:[#allocation2 + $0x8] sm:$0xff] %vm363, 0.0
          %366 = vst.msk [vmem:[#allocation2 + $0x10] sm:$0xff] %vm363, 0.0
          %367 = vst.msk [vmem:[#allocation2 + $0x18] sm:$0xff] %vm363, 0.0
          %368 = vst.msk [vmem:[#allocation2 + $0x20] sm:$0xff] %vm363, 0.0
          %369 = vst.msk [vmem:[#allocation2 + $0x28] sm:$0xff] %vm363, 0.0
          %370 = vst.msk [vmem:[#allocation2 + $0x30] sm:$0xff] %vm363, 0.0
          %371 = vst.msk [vmem:[#allocation2 + $0x38] sm:$0xff] %vm363, 0.0
          %372 = vst.msk [vmem:[#allocation2 + $0x40] sm:$0xff] %vm363, 0.0
          %373 = vst.msk [vmem:[#allocation2 + $0x48] sm:$0xff] %vm363, 0.0
          %374 = vst.msk [vmem:[#allocation2 + $0x50] sm:$0xff] %vm363, 0.0
          %375 = vst.msk [vmem:[#allocation2 + $0x58] sm:$0xff] %vm363, 0.0
          %376 = vst.msk [vmem:[#allocation2 + $0x60] sm:$0xff] %vm363, 0.0
          %377 = vst.msk [vmem:[#allocation2 + $0x68] sm:$0xff] %vm363, 0.0
          %378 = vst.msk [vmem:[#allocation2 + $0x70] sm:$0xff] %vm363, 0.0
          %379 = vst.msk [vmem:[#allocation2 + $0x78] sm:$0xff] %vm363, 0.0
        $region77: #{_critic_forward_impl.2} parent=68 // pred_fallthru
          _
        %s380 = sld [smem:[#allocation5 + %s30]]
        %p381 = scmp.lt.s32.totalorder %s31, %s380
        // Predicated region
        $region78: #{_critic_forward_impl.2} parent=68 // pred_check
          %p382 = pneg %p381
        $region79: #{_critic_forward_impl.2} parent=68 // pred_check_branch
          %384 = sbr.rel (%p382) target = $region81
        $region80: #{_critic_forward_impl.2} parent=68 // pred_region
          %v385 = vld [vmem:[#allocation2] sm:$0xff]
          %v386 = vld [vmem:[#allocation2 + $0x8] sm:$0xff]
          %v387 = vld [vmem:[#allocation2 + $0x10] sm:$0xff]
          %v388 = vld [vmem:[#allocation2 + $0x18] sm:$0xff]
          %v389 = vld [vmem:[#allocation2 + $0x20] sm:$0xff]
          %v390 = vld [vmem:[#allocation2 + $0x28] sm:$0xff]
          %v391 = vld [vmem:[#allocation2 + $0x30] sm:$0xff]
          %v392 = vld [vmem:[#allocation2 + $0x38] sm:$0xff]
          %v393 = vld [vmem:[#allocation2 + $0x40] sm:$0xff]
          %v394 = vld [vmem:[#allocation2 + $0x48] sm:$0xff]
          %v395 = vld [vmem:[#allocation2 + $0x50] sm:$0xff]
          %v396 = vld [vmem:[#allocation2 + $0x58] sm:$0xff]
          %v397 = vld [vmem:[#allocation2 + $0x60] sm:$0xff]
          %v398 = vld [vmem:[#allocation2 + $0x68] sm:$0xff]
          %v399 = vld [vmem:[#allocation2 + $0x70] sm:$0xff]
          %v400 = vld [vmem:[#allocation2 + $0x78] sm:$0xff]
          %v401 = vld [vmem:[%s307] sm:$0xf]
          %v402 = vld [vmem:[%s307 + $0x4] sm:$0xf]
          %v403 = vld [vmem:[%s307 + $0x8] sm:$0xf]
          %v404 = vld [vmem:[%s307 + $0xc] sm:$0xf]
          %v405 = vld [vmem:[%s307 + $0x10] sm:$0xf]
          %v406 = vld [vmem:[%s307 + $0x14] sm:$0xf]
          %v407 = vld [vmem:[%s307 + $0x18] sm:$0xf]
          %v408 = vld [vmem:[%s307 + $0x1c] sm:$0xf]
          %v409 = vld [vmem:[%s307 + $0x20] sm:$0xf]
          %v410 = vld [vmem:[%s307 + $0x24] sm:$0xf]
          %v411 = vld [vmem:[%s307 + $0x28] sm:$0xf]
          %v412 = vld [vmem:[%s307 + $0x2c] sm:$0xf]
          %v413 = vld [vmem:[%s307 + $0x30] sm:$0xf]
          %v414 = vld [vmem:[%s307 + $0x34] sm:$0xf]
          %v415 = vld [vmem:[%s307 + $0x38] sm:$0xf]
          %v416 = vld [vmem:[%s307 + $0x3c] sm:$0xf]
          %v417 = vld [vmem:[%s347] sm:$0xf]
          %v418 = vld [vmem:[%s347 + $0x4] sm:$0xf]
          %v419 = vld [vmem:[%s347 + $0x8] sm:$0xf]
          %v420 = vld [vmem:[%s347 + $0xc] sm:$0xf]
          %v421 = vld [vmem:[%s347 + $0x10] sm:$0xf]
          %v422 = vld [vmem:[%s347 + $0x14] sm:$0xf]
          %v423 = vld [vmem:[%s347 + $0x18] sm:$0xf]
          %v424 = vld [vmem:[%s347 + $0x1c] sm:$0xf]
          %v425 = vld [vmem:[%s347 + $0x20] sm:$0xf]
          %v426 = vld [vmem:[%s347 + $0x24] sm:$0xf]
          %v427 = vld [vmem:[%s347 + $0x28] sm:$0xf]
          %v428 = vld [vmem:[%s347 + $0x2c] sm:$0xf]
          %v429 = vld [vmem:[%s347 + $0x30] sm:$0xf]
          %v430 = vld [vmem:[%s347 + $0x34] sm:$0xf]
          %v431 = vld [vmem:[%s347 + $0x38] sm:$0xf]
          %v432 = vld [vmem:[%s347 + $0x3c] sm:$0xf]
          %v449 = vunpack.c.l.b16 %v401
          %v450 = vunpack.c.l.b16 %v402
          %v451 = vunpack.c.l.b16 %v403
          %v452 = vunpack.c.l.b16 %v404
          %v453 = vunpack.c.l.b16 %v405
          %v454 = vunpack.c.l.b16 %v406
          %v455 = vunpack.c.l.b16 %v407
          %v456 = vunpack.c.l.b16 %v408
          %v457 = vunpack.c.l.b16 %v409
          %v458 = vunpack.c.l.b16 %v410
          %v459 = vunpack.c.l.b16 %v411
          %v460 = vunpack.c.l.b16 %v412
          %v461 = vunpack.c.l.b16 %v413
          %v462 = vunpack.c.l.b16 %v414
          %v463 = vunpack.c.l.b16 %v415
          %v464 = vunpack.c.l.b16 %v416
          %v465 = vpack.c.b16 %v450, %v449
          %v466 = vpack.c.b16 %v452, %v451
          %v467 = vpack.c.b16 %v454, %v453
          %v468 = vpack.c.b16 %v456, %v455
          %v469 = vpack.c.b16 %v458, %v457
          %v470 = vpack.c.b16 %v460, %v459
          %v471 = vpack.c.b16 %v462, %v461
          %v472 = vpack.c.b16 %v464, %v463
          %v497 = vunpack.c.l.b16 %v417
          %v498 = vunpack.c.l.b16 %v418
          %v499 = vunpack.c.l.b16 %v419
          %v500 = vunpack.c.l.b16 %v420
          %v501 = vunpack.c.l.b16 %v421
          %v502 = vunpack.c.l.b16 %v422
          %v503 = vunpack.c.l.b16 %v423
          %v504 = vunpack.c.l.b16 %v424
          %v505 = vunpack.c.l.b16 %v425
          %v506 = vunpack.c.l.b16 %v426
          %v507 = vunpack.c.l.b16 %v427
          %v508 = vunpack.c.l.b16 %v428
          %v509 = vunpack.c.l.b16 %v429
          %v510 = vunpack.c.l.b16 %v430
          %v511 = vunpack.c.l.b16 %v431
          %v512 = vunpack.c.l.b16 %v432
          %v513 = vpack.c.b16 %v498, %v497
          %v514 = vpack.c.b16 %v500, %v499
          %v515 = vpack.c.b16 %v502, %v501
          %v516 = vpack.c.b16 %v504, %v503
          %v517 = vpack.c.b16 %v506, %v505
          %v518 = vpack.c.b16 %v508, %v507
          %v519 = vpack.c.b16 %v510, %v509
          %v520 = vpack.c.b16 %v512, %v511
          %529 = vmatprep.subr.bf16.mxu0 0
          %530 = vmatpush1.bf16.msra.mxu0 %v513
          %531 = vmatprep.subr.bf16.mxu0 0
          %532 = vmatpush1.bf16.msra.mxu0 %v514
          %533 = vmatprep.subr.bf16.mxu0 0
          %534 = vmatpush1.bf16.msra.mxu0 %v515
          %535 = vmatprep.subr.bf16.mxu0 0
          %536 = vmatpush1.bf16.msra.mxu0 %v516
          %537 = vmatprep.subr.bf16.mxu0 0
          %538 = vmatpush1.bf16.msra.mxu0 %v517
          %539 = vmatprep.subr.bf16.mxu0 0
          %540 = vmatpush1.bf16.msra.mxu0 %v518
          %541 = vmatprep.subr.bf16.mxu0 0
          %542 = vmatpush1.bf16.msra.mxu0 %v519
          %543 = vmatprep.subr.bf16.mxu0 0
          %544 = vmatpush1.bf16.msra.mxu0 %v520
          %545 = vmatprep.subr.bf16.mxu0 0
          %546 = vmatpush1.bf16.msra.mxu0 0
          %547 = vmatprep.subr.bf16.mxu0 0
          %548 = vmatpush1.bf16.msra.mxu0 0
          %549 = vmatprep.subr.bf16.mxu0 0
          %550 = vmatpush1.bf16.msra.mxu0 0
          %551 = vmatprep.subr.bf16.mxu0 0
          %552 = vmatpush1.bf16.msra.mxu0 0
          %553 = vmatprep.subr.bf16.mxu0 0
          %554 = vmatpush1.bf16.msra.mxu0 0
          %555 = vmatprep.subr.bf16.mxu0 0
          %556 = vmatpush1.bf16.msra.mxu0 0
          %557 = vmatprep.subr.bf16.mxu0 0
          %558 = vmatpush1.bf16.msra.mxu0 0
          %559 = vmatprep.subr.bf16.mxu0 0
          %560 = vmatpush1.bf16.msra.mxu0 0
          %561 = vmatprep.mubr.bf16.mxu0 0
          %562 = vmatmul.mubr.bf16.gmra.mrb[0].mxu0 %v465
          %v563 = vpop.f32.mrb[0].mxu0
          %v564 = vadd.f32 0.0, %v563
          %v565 = vpop.f32.mrb[0].mxu0
          %v566 = vpop.f32.mrb[0].mxu0
          %v567 = vadd.f32 0.0, %v566
          %v568 = vpop.f32.mrb[0].mxu0
          %569 = vmatprep.mubr.bf16.mxu0 0
          %570 = vmatmul.mubr.bf16.gmra.mrb[0].mxu0 %v466
          %v571 = vpop.f32.mrb[0].mxu0
          %v572 = vadd.f32 0.0, %v571
          %v573 = vpop.f32.mrb[0].mxu0
          %v574 = vpop.f32.mrb[0].mxu0
          %v575 = vadd.f32 0.0, %v574
          %v576 = vpop.f32.mrb[0].mxu0
          %577 = vmatprep.mubr.bf16.mxu0 0
          %578 = vmatmul.mubr.bf16.gmra.mrb[0].mxu0 %v467
          %v579 = vpop.f32.mrb[0].mxu0
          %v580 = vadd.f32 0.0, %v579
          %v581 = vpop.f32.mrb[0].mxu0
          %v582 = vpop.f32.mrb[0].mxu0
          %v583 = vadd.f32 0.0, %v582
          %v584 = vpop.f32.mrb[0].mxu0
          %585 = vmatprep.mubr.bf16.mxu0 0
          %586 = vmatmul.mubr.bf16.gmra.mrb[0].mxu0 %v468
          %v587 = vpop.f32.mrb[0].mxu0
          %v588 = vadd.f32 0.0, %v587
          %v589 = vpop.f32.mrb[0].mxu0
          %v590 = vpop.f32.mrb[0].mxu0
          %v591 = vadd.f32 0.0, %v590
          %v592 = vpop.f32.mrb[0].mxu0
          %593 = vmatprep.mubr.bf16.mxu0 0
          %594 = vmatmul.mubr.bf16.gmra.mrb[0].mxu0 %v469
          %v595 = vpop.f32.mrb[0].mxu0
          %v596 = vadd.f32 0.0, %v595
          %v597 = vpop.f32.mrb[0].mxu0
          %v598 = vpop.f32.mrb[0].mxu0
          %v599 = vadd.f32 0.0, %v598
          %v600 = vpop.f32.mrb[0].mxu0
          %601 = vmatprep.mubr.bf16.mxu0 0
          %602 = vmatmul.mubr.bf16.gmra.mrb[0].mxu0 %v470
          %v603 = vpop.f32.mrb[0].mxu0
          %v604 = vadd.f32 0.0, %v603
          %v605 = vpop.f32.mrb[0].mxu0
          %v606 = vpop.f32.mrb[0].mxu0
          %v607 = vadd.f32 0.0, %v606
          %v608 = vpop.f32.mrb[0].mxu0
          %609 = vmatprep.mubr.bf16.mxu0 0
          %610 = vmatmul.mubr.bf16.gmra.mrb[0].mxu0 %v471
          %v611 = vpop.f32.mrb[0].mxu0
          %v612 = vadd.f32 0.0, %v611
          %v613 = vpop.f32.mrb[0].mxu0
          %v614 = vpop.f32.mrb[0].mxu0
          %v615 = vadd.f32 0.0, %v614
          %v616 = vpop.f32.mrb[0].mxu0
          %617 = vmatprep.mubr.bf16.mxu0 0
          %618 = vmatmul.mubr.bf16.gmra.mrb[0].mxu0 %v472
          %v619 = vpop.f32.mrb[0].mxu0
          %v620 = vadd.f32 0.0, %v619
          %v621 = vpop.f32.mrb[0].mxu0
          %v622 = vpop.f32.mrb[0].mxu0
          %v623 = vadd.f32 0.0, %v622
          %v624 = vpop.f32.mrb[0].mxu0
          %625 = vdwg.mxu0
          %v626 = vadd.f32 %v385, %v564
          %v627 = vadd.f32 %v386, %v567
          %v628 = vadd.f32 %v387, %v572
          %v629 = vadd.f32 %v388, %v575
          %v630 = vadd.f32 %v389, %v580
          %v631 = vadd.f32 %v390, %v583
          %v632 = vadd.f32 %v391, %v588
          %v633 = vadd.f32 %v392, %v591
          %v634 = vadd.f32 %v393, %v596
          %v635 = vadd.f32 %v394, %v599
          %v636 = vadd.f32 %v395, %v604
          %v637 = vadd.f32 %v396, %v607
          %v638 = vadd.f32 %v397, %v612
          %v639 = vadd.f32 %v398, %v615
          %v640 = vadd.f32 %v399, %v620
          %v641 = vadd.f32 %v400, %v623
          %vm642 = vcmask 64512
          %643 = vst.msk [vmem:[#allocation2] sm:$0xff] %vm642, %v626
          %644 = vst.msk [vmem:[#allocation2 + $0x8] sm:$0xff] %vm642, %v627
          %645 = vst.msk [vmem:[#allocation2 + $0x10] sm:$0xff] %vm642, %v628
          %646 = vst.msk [vmem:[#allocation2 + $0x18] sm:$0xff] %vm642, %v629
          %647 = vst.msk [vmem:[#allocation2 + $0x20] sm:$0xff] %vm642, %v630
          %648 = vst.msk [vmem:[#allocation2 + $0x28] sm:$0xff] %vm642, %v631
          %649 = vst.msk [vmem:[#allocation2 + $0x30] sm:$0xff] %vm642, %v632
          %650 = vst.msk [vmem:[#allocation2 + $0x38] sm:$0xff] %vm642, %v633
          %651 = vst.msk [vmem:[#allocation2 + $0x40] sm:$0xff] %vm642, %v634
          %652 = vst.msk [vmem:[#allocation2 + $0x48] sm:$0xff] %vm642, %v635
          %653 = vst.msk [vmem:[#allocation2 + $0x50] sm:$0xff] %vm642, %v636
          %654 = vst.msk [vmem:[#allocation2 + $0x58] sm:$0xff] %vm642, %v637
          %655 = vst.msk [vmem:[#allocation2 + $0x60] sm:$0xff] %vm642, %v638
          %656 = vst.msk [vmem:[#allocation2 + $0x68] sm:$0xff] %vm642, %v639
          %657 = vst.msk [vmem:[#allocation2 + $0x70] sm:$0xff] %vm642, %v640
          %658 = vst.msk [vmem:[#allocation2 + $0x78] sm:$0xff] %vm642, %v641
        $region81: #{_critic_forward_impl.2} parent=68 // pred_fallthru
          _
        %p659 = scmp.eq.s32.totalorder %s31, 2
        // Predicated region
        $region82: #{_critic_forward_impl.2} parent=68 // pred_check
          %p660 = pneg %p659
        $region83: #{_critic_forward_impl.2} parent=68 // pred_check_branch
          %662 = sbr.rel (%p660) target = $region85
        $region84: #{_critic_forward_impl.2} parent=68 // pred_region
          %v663 = vld [vmem:[%s4] sm:$0xf]
          %v664 = vunpack.c.l.bf16 %v663
          %v665 = vld [vmem:[#allocation2] sm:$0xff]
          %v666 = vld [vmem:[#allocation2 + $0x8] sm:$0xff]
          %v667 = vld [vmem:[#allocation2 + $0x10] sm:$0xff]
          %v668 = vld [vmem:[#allocation2 + $0x18] sm:$0xff]
          %v669 = vld [vmem:[#allocation2 + $0x20] sm:$0xff]
          %v670 = vld [vmem:[#allocation2 + $0x28] sm:$0xff]
          %v671 = vld [vmem:[#allocation2 + $0x30] sm:$0xff]
          %v672 = vld [vmem:[#allocation2 + $0x38] sm:$0xff]
          %v673 = vld [vmem:[#allocation2 + $0x40] sm:$0xff]
          %v674 = vld [vmem:[#allocation2 + $0x48] sm:$0xff]
          %v675 = vld [vmem:[#allocation2 + $0x50] sm:$0xff]
          %v676 = vld [vmem:[#allocation2 + $0x58] sm:$0xff]
          %v677 = vld [vmem:[#allocation2 + $0x60] sm:$0xff]
          %v678 = vld [vmem:[#allocation2 + $0x68] sm:$0xff]
          %v679 = vld [vmem:[#allocation2 + $0x70] sm:$0xff]
          %v680 = vld [vmem:[#allocation2 + $0x78] sm:$0xff]
          %vm681 = vcmask 64512
          %v683 = vsel %vm681, %v665, 0
          %v686 = vsel %vm681, %v666, 0
          %v689 = vsel %vm681, %v667, 0
          %v692 = vsel %vm681, %v668, 0
          %v695 = vsel %vm681, %v669, 0
          %v698 = vsel %vm681, %v670, 0
          %v701 = vsel %vm681, %v671, 0
          %v704 = vsel %vm681, %v672, 0
          %v707 = vsel %vm681, %v673, 0
          %v710 = vsel %vm681, %v674, 0
          %v713 = vsel %vm681, %v675, 0
          %v716 = vsel %vm681, %v676, 0
          %v719 = vsel %vm681, %v677, 0
          %v722 = vsel %vm681, %v678, 0
          %v725 = vsel %vm681, %v679, 0
          %v728 = vsel %vm681, %v680, 0
          %730 = vmatprep.subr.mxu0 0.0
          %731 = vmatpush1.msra.mxu0 %v664
          %732 = vmatprep.subr.mxu0 0.0
          %733 = vmatpush1.msra.mxu0 0.0
          %734 = vmatprep.subr.mxu0 0.0
          %735 = vmatpush1.msra.mxu0 0.0
          %736 = vmatprep.subr.mxu0 0.0
          %737 = vmatpush1.msra.mxu0 0.0
          %738 = vmatprep.subr.mxu0 0.0
          %739 = vmatpush1.msra.mxu0 0.0
          %740 = vmatprep.subr.mxu0 0.0
          %741 = vmatpush1.msra.mxu0 0.0
          %742 = vmatprep.subr.mxu0 0.0
          %743 = vmatpush1.msra.mxu0 0.0
          %744 = vmatprep.subr.mxu0 0.0
          %745 = vmatpush1.msra.mxu0 0.0
          %746 = vmatprep.subr.mxu0 0.0
          %747 = vmatpush1.msra.mxu0 0.0
          %748 = vmatprep.subr.mxu0 0.0
          %749 = vmatpush1.msra.mxu0 0.0
          %750 = vmatprep.subr.mxu0 0.0
          %751 = vmatpush1.msra.mxu0 0.0
          %752 = vmatprep.subr.mxu0 0.0
          %753 = vmatpush1.msra.mxu0 0.0
          %754 = vmatprep.subr.mxu0 0.0
          %755 = vmatpush1.msra.mxu0 0.0
          %756 = vmatprep.subr.mxu0 0.0
          %757 = vmatpush1.msra.mxu0 0.0
          %758 = vmatprep.subr.mxu0 0.0
          %759 = vmatpush1.msra.mxu0 0.0
          %760 = vmatprep.subr.mxu0 0.0
          %761 = vmatpush1.msra.mxu0 0.0
          %762 = vmatprep.subr.mxu0 0.0
          %763 = vmatpush1.msra.mxu0 0.0
          %764 = vmatprep.subr.mxu0 0.0
          %765 = vmatpush1.msra.mxu0 0.0
          %766 = vmatprep.subr.mxu0 0.0
          %767 = vmatpush1.msra.mxu0 0.0
          %768 = vmatprep.subr.mxu0 0.0
          %769 = vmatpush1.msra.mxu0 0.0
          %770 = vmatprep.subr.mxu0 0.0
          %771 = vmatpush1.msra.mxu0 0.0
          %772 = vmatprep.subr.mxu0 0.0
          %773 = vmatpush1.msra.mxu0 0.0
          %774 = vmatprep.subr.mxu0 0.0
          %775 = vmatpush1.msra.mxu0 0.0
          %776 = vmatprep.subr.mxu0 0.0
          %777 = vmatpush1.msra.mxu0 0.0
          %778 = vmatprep.subr.mxu0 0.0
          %779 = vmatpush1.msra.mxu0 0.0
          %780 = vmatprep.subr.mxu0 0.0
          %781 = vmatpush1.msra.mxu0 0.0
          %782 = vmatprep.subr.mxu0 0.0
          %783 = vmatpush1.msra.mxu0 0.0
          %784 = vmatprep.subr.mxu0 0.0
          %785 = vmatpush1.msra.mxu0 0.0
          %786 = vmatprep.subr.mxu0 0.0
          %787 = vmatpush1.msra.mxu0 0.0
          %788 = vmatprep.subr.mxu0 0.0
          %789 = vmatpush1.msra.mxu0 0.0
          %790 = vmatprep.subr.mxu0 0.0
          %791 = vmatpush1.msra.mxu0 0.0
          %792 = vmatprep.subr.mxu0 0.0
          %793 = vmatpush1.msra.mxu0 0.0
          %794 = vmatprep.mubr.f32.mxu0 0.0
          %795 = vmatmul.mubr.f32.gmra.mrb[0].mxu0 %v683
          %v796 = vpop.f32.mrb[0].mxu0
          %v797 = vadd.f32 0.0, %v796
          %v798 = vpop.f32.mrb[0].mxu0
          %799 = vmatprep.mubr.f32.mxu0 0.0
          %800 = vmatmul.mubr.f32.gmra.mrb[0].mxu0 %v686
          %v801 = vpop.f32.mrb[0].mxu0
          %v802 = vadd.f32 0.0, %v801
          %v803 = vpop.f32.mrb[0].mxu0
          %804 = vmatprep.mubr.f32.mxu0 0.0
          %805 = vmatmul.mubr.f32.gmra.mrb[0].mxu0 %v689
          %v806 = vpop.f32.mrb[0].mxu0
          %v807 = vadd.f32 0.0, %v806
          %v808 = vpop.f32.mrb[0].mxu0
          %809 = vmatprep.mubr.f32.mxu0 0.0
          %810 = vmatmul.mubr.f32.gmra.mrb[0].mxu0 %v692
          %v811 = vpop.f32.mrb[0].mxu0
          %v812 = vadd.f32 0.0, %v811
          %v813 = vpop.f32.mrb[0].mxu0
          %814 = vmatprep.mubr.f32.mxu0 0.0
          %815 = vmatmul.mubr.f32.gmra.mrb[0].mxu0 %v695
          %v816 = vpop.f32.mrb[0].mxu0
          %v817 = vadd.f32 0.0, %v816
          %v818 = vpop.f32.mrb[0].mxu0
          %819 = vmatprep.mubr.f32.mxu0 0.0
          %820 = vmatmul.mubr.f32.gmra.mrb[0].mxu0 %v698
          %v821 = vpop.f32.mrb[0].mxu0
          %v822 = vadd.f32 0.0, %v821
          %v823 = vpop.f32.mrb[0].mxu0
          %824 = vmatprep.mubr.f32.mxu0 0.0
          %825 = vmatmul.mubr.f32.gmra.mrb[0].mxu0 %v701
          %v826 = vpop.f32.mrb[0].mxu0
          %v827 = vadd.f32 0.0, %v826
          %v828 = vpop.f32.mrb[0].mxu0
          %829 = vmatprep.mubr.f32.mxu0 0.0
          %830 = vmatmul.mubr.f32.gmra.mrb[0].mxu0 %v704
          %v831 = vpop.f32.mrb[0].mxu0
          %v832 = vadd.f32 0.0, %v831
          %v833 = vpop.f32.mrb[0].mxu0
          %834 = vmatprep.mubr.f32.mxu0 0.0
          %835 = vmatmul.mubr.f32.gmra.mrb[0].mxu0 %v707
          %v836 = vpop.f32.mrb[0].mxu0
          %v837 = vadd.f32 0.0, %v836
          %v838 = vpop.f32.mrb[0].mxu0
          %839 = vmatprep.mubr.f32.mxu0 0.0
          %840 = vmatmul.mubr.f32.gmra.mrb[0].mxu0 %v710
          %v841 = vpop.f32.mrb[0].mxu0
          %v842 = vadd.f32 0.0, %v841
          %v843 = vpop.f32.mrb[0].mxu0
          %844 = vmatprep.mubr.f32.mxu0 0.0
          %845 = vmatmul.mubr.f32.gmra.mrb[0].mxu0 %v713
          %v846 = vpop.f32.mrb[0].mxu0
          %v847 = vadd.f32 0.0, %v846
          %v848 = vpop.f32.mrb[0].mxu0
          %849 = vmatprep.mubr.f32.mxu0 0.0
          %850 = vmatmul.mubr.f32.gmra.mrb[0].mxu0 %v716
          %v851 = vpop.f32.mrb[0].mxu0
          %v852 = vadd.f32 0.0, %v851
          %v853 = vpop.f32.mrb[0].mxu0
          %854 = vmatprep.mubr.f32.mxu0 0.0
          %855 = vmatmul.mubr.f32.gmra.mrb[0].mxu0 %v719
          %v856 = vpop.f32.mrb[0].mxu0
          %v857 = vadd.f32 0.0, %v856
          %v858 = vpop.f32.mrb[0].mxu0
          %859 = vmatprep.mubr.f32.mxu0 0.0
          %860 = vmatmul.mubr.f32.gmra.mrb[0].mxu0 %v722
          %v861 = vpop.f32.mrb[0].mxu0
          %v862 = vadd.f32 0.0, %v861
          %v863 = vpop.f32.mrb[0].mxu0
          %864 = vmatprep.mubr.f32.mxu0 0.0
          %865 = vmatmul.mubr.f32.gmra.mrb[0].mxu0 %v725
          %v866 = vpop.f32.mrb[0].mxu0
          %v867 = vadd.f32 0.0, %v866
          %v868 = vpop.f32.mrb[0].mxu0
          %869 = vmatprep.mubr.f32.mxu0 0.0
          %870 = vmatmul.mubr.f32.gmra.mrb[0].mxu0 %v728
          %v871 = vpop.f32.mrb[0].mxu0
          %v872 = vadd.f32 0.0, %v871
          %v873 = vpop.f32.mrb[0].mxu0
          %874 = vdwg.mxu0
          %vm875 = vcmp.gt.f32.partialorder %v797, 0.0
          %vm876 = vcmp.gt.f32.partialorder %v802, 0.0
          %vm877 = vcmp.gt.f32.partialorder %v807, 0.0
          %vm878 = vcmp.gt.f32.partialorder %v812, 0.0
          %vm879 = vcmp.gt.f32.partialorder %v817, 0.0
          %vm880 = vcmp.gt.f32.partialorder %v822, 0.0
          %vm881 = vcmp.gt.f32.partialorder %v827, 0.0
          %vm882 = vcmp.gt.f32.partialorder %v832, 0.0
          %vm883 = vcmp.gt.f32.partialorder %v837, 0.0
          %vm884 = vcmp.gt.f32.partialorder %v842, 0.0
          %vm885 = vcmp.gt.f32.partialorder %v847, 0.0
          %vm886 = vcmp.gt.f32.partialorder %v852, 0.0
          %vm887 = vcmp.gt.f32.partialorder %v857, 0.0
          %vm888 = vcmp.gt.f32.partialorder %v862, 0.0
          %vm889 = vcmp.gt.f32.partialorder %v867, 0.0
          %vm890 = vcmp.gt.f32.partialorder %v872, 0.0
          %v891 = vmul.f32 %v797, 0.01
          %v892 = vmul.f32 %v802, 0.01
          %v893 = vmul.f32 %v807, 0.01
          %v894 = vmul.f32 %v812, 0.01
          %v895 = vmul.f32 %v817, 0.01
          %v896 = vmul.f32 %v822, 0.01
          %v897 = vmul.f32 %v827, 0.01
          %v898 = vmul.f32 %v832, 0.01
          %v899 = vmul.f32 %v837, 0.01
          %v900 = vmul.f32 %v842, 0.01
          %v901 = vmul.f32 %v847, 0.01
          %v902 = vmul.f32 %v852, 0.01
          %v903 = vmul.f32 %v857, 0.01
          %v904 = vmul.f32 %v862, 0.01
          %v905 = vmul.f32 %v867, 0.01
          %v906 = vmul.f32 %v872, 0.01
          %v907 = vsel %vm875, %v797, %v891
          %v908 = vsel %vm876, %v802, %v892
          %v909 = vsel %vm877, %v807, %v893
          %v910 = vsel %vm878, %v812, %v894
          %v911 = vsel %vm879, %v817, %v895
          %v912 = vsel %vm880, %v822, %v896
          %v913 = vsel %vm881, %v827, %v897
          %v914 = vsel %vm882, %v832, %v898
          %v915 = vsel %vm883, %v837, %v899
          %v916 = vsel %vm884, %v842, %v900
          %v917 = vsel %vm885, %v847, %v901
          %v918 = vsel %vm886, %v852, %v902
          %v919 = vsel %vm887, %v857, %v903
          %v920 = vsel %vm888, %v862, %v904
          %v921 = vsel %vm889, %v867, %v905
          %v922 = vsel %vm890, %v872, %v906
          %v923 = vpack.c.bf16 %v908, %v907
          %v924 = vpack.c.bf16 %v910, %v909
          %v925 = vpack.c.bf16 %v912, %v911
          %v926 = vpack.c.bf16 %v914, %v913
          %v927 = vpack.c.bf16 %v916, %v915
          %v928 = vpack.c.bf16 %v918, %v917
          %v929 = vpack.c.bf16 %v920, %v919
          %v930 = vpack.c.bf16 %v922, %v921
          %v939 = vunpack.c.l.b16 %v923
          %v940 = vunpack.c.h.b16 %v923
          %v941 = vunpack.c.l.b16 %v924
          %v942 = vunpack.c.h.b16 %v924
          %v943 = vunpack.c.l.b16 %v925
          %v944 = vunpack.c.h.b16 %v925
          %v945 = vunpack.c.l.b16 %v926
          %v946 = vunpack.c.h.b16 %v926
          %v947 = vunpack.c.l.b16 %v927
          %v948 = vunpack.c.h.b16 %v927
          %v949 = vunpack.c.l.b16 %v928
          %v950 = vunpack.c.h.b16 %v928
          %v951 = vunpack.c.l.b16 %v929
          %v952 = vunpack.c.h.b16 %v929
          %v953 = vunpack.c.l.b16 %v930
          %v954 = vunpack.c.h.b16 %v930
          %v955 = vpack.c.b16 %v939, %v939
          %v956 = vpack.c.b16 %v940, %v940
          %v957 = vpack.c.b16 %v941, %v941
          %v958 = vpack.c.b16 %v942, %v942
          %v959 = vpack.c.b16 %v943, %v943
          %v960 = vpack.c.b16 %v944, %v944
          %v961 = vpack.c.b16 %v945, %v945
          %v962 = vpack.c.b16 %v946, %v946
          %v963 = vpack.c.b16 %v947, %v947
          %v964 = vpack.c.b16 %v948, %v948
          %v965 = vpack.c.b16 %v949, %v949
          %v966 = vpack.c.b16 %v950, %v950
          %v967 = vpack.c.b16 %v951, %v951
          %v968 = vpack.c.b16 %v952, %v952
          %v969 = vpack.c.b16 %v953, %v953
          %v970 = vpack.c.b16 %v954, %v954
          %vm987 = vcmask 125952
          %988 = vst.msk [vmem:[%s356] sm:$0xf] %vm987, %v955
          %989 = vst.msk [vmem:[%s356 + $0x4] sm:$0xf] %vm987, %v956
          %990 = vst.msk [vmem:[%s356 + $0x8] sm:$0xf] %vm987, %v957
          %991 = vst.msk [vmem:[%s356 + $0xc] sm:$0xf] %vm987, %v958
          %992 = vst.msk [vmem:[%s356 + $0x10] sm:$0xf] %vm987, %v959
          %993 = vst.msk [vmem:[%s356 + $0x14] sm:$0xf] %vm987, %v960
          %994 = vst.msk [vmem:[%s356 + $0x18] sm:$0xf] %vm987, %v961
          %995 = vst.msk [vmem:[%s356 + $0x1c] sm:$0xf] %vm987, %v962
          %996 = vst.msk [vmem:[%s356 + $0x20] sm:$0xf] %vm987, %v963
          %997 = vst.msk [vmem:[%s356 + $0x24] sm:$0xf] %vm987, %v964
          %998 = vst.msk [vmem:[%s356 + $0x28] sm:$0xf] %vm987, %v965
          %999 = vst.msk [vmem:[%s356 + $0x2c] sm:$0xf] %vm987, %v966
          %1000 = vst.msk [vmem:[%s356 + $0x30] sm:$0xf] %vm987, %v967
          %1001 = vst.msk [vmem:[%s356 + $0x34] sm:$0xf] %vm987, %v968
          %1002 = vst.msk [vmem:[%s356 + $0x38] sm:$0xf] %vm987, %v969
          %1003 = vst.msk [vmem:[%s356 + $0x3c] sm:$0xf] %vm987, %v970
        $region85: #{_critic_forward_impl.2} parent=68 // pred_fallthru
          _
        %s1004 = smul.u32 16, %s30
        %p1005 = scmp.lt.s32.totalorder %s1004, 47
        %s1006 = scalar_select %p1005, %s1004, 47
        %s1007 = smul.addr %s1006, 4
        %s1008 = scalar_lea.vmem %s5, %s1007
        // Predicated region
        $region86: #{_critic_forward_impl.2} parent=68 // pred_check
          %p1009 = pneg %p143
        $region87: #{_critic_forward_impl.2} parent=68 // pred_check_branch
          %1011 = sbr.rel (%p1009) target = $region89
        $region88: #{_critic_forward_impl.2} parent=68 // pred_region
          %s1012 = smul.u32 16, %s30
        $region89: #{_critic_forward_impl.2} parent=68 // pred_fallthru
          _
      $region69: #{_critic_forward_impl.2} parent=5 // pred_fallthru
        _
      %p1013 = scmp.le.s32.totalorder 2, %s21
      // Predicated region
      $region90: #{_critic_forward_impl.2} parent=5 // pred_check
        %p1014 = pneg %p1013
      $region91: #{_critic_forward_impl.2} parent=5 // pred_check_branch
        %1016 = sbr.rel (%p1014) target = $region93
      $region92: #{_critic_forward_impl.2} parent=5 // pred_region
        %s1017 = ssub.s32 %s21, 2
        // Predicated region
        $region94: #{_critic_forward_impl.2} parent=92 // pred_check
          %p1018 = pneg %p149
        $region95: #{_critic_forward_impl.2} parent=92 // pred_check_branch
          %1020 = sbr.rel (%p1018) target = $region97
        $region96: #{_critic_forward_impl.2} parent=92 // pred_region
          %s1021 = smul.u32 16, %s32
          %p1022 = scmp.lt.s32.totalorder %s1021, 47
          %s1023 = scalar_select %p1022, %s1021, 47
          %s1024 = smul.addr %s1023, 4
          %s1025 = scalar_lea.vmem %s5, %s1024
        $region97: #{_critic_forward_impl.2} parent=92 // pred_fallthru
          _
      $region93: #{_critic_forward_impl.2} parent=5 // pred_fallthru
        _
    $region6: #{_critic_forward_impl.2} parent=1 // loop_footer
      %s25 = sadd.s32 1, %s21
    $region7: #{_critic_forward_impl.2} parent=1 // loop_footer_branch
      %20 = sbr.rel target = $region3
    $region8: #{_critic_forward_impl.2} parent=1 // loop_exit
      _

// kernel: _critic_forward_impl.3
$region0: #{_critic_forward_impl.3}
  #allocation0 [shape = 'u32[]', space=smem, size = 0x4, offset = 0x4, fixed_abs, tag = 'smem constant byte address 0x4 - core index']
  #allocation1 [shape = 'u32[144,128]{1,0:T(1,128)}', space=vmem, size = 0x12000, scoped, tag = 'internal scratch']
  #allocation2 [shape = 'f32[128,16]{1,0:T(8,128)}', space=vmem, size = 0x10000, scoped, tag = 'scratch operand']
  #allocation3 [shape = 's32[1]{0}', space=sflag, size = 0x4, scoped, tag = 'scoped memory for _critic_forward_impl.3']
  #allocation4 [shape = 'u8[512]{0}', space=smem, size = 0x200, scoped, tag = 'prefetched SMEM operand 0']
  #allocation5 [shape = 'u8[512]{0}', space=smem, size = 0x200, scoped, tag = 'prefetched SMEM operand 1']
  %s0 = inlined_call_operand.vmem [shape: s32[9], index: 0, kind: input, shape index: {}]
  %s1 = inlined_call_operand.vmem [shape: s32[3], index: 1, kind: input, shape index: {}]
  %s2 = inlined_call_operand.vmem [shape: bf16[384,384], index: 2, kind: input, shape index: {}]
  %s3 = inlined_call_operand.vmem [shape: bf16[384,16], index: 3, kind: input, shape index: {}]
  %s4 = inlined_call_operand.vmem [shape: bf16[16,16], index: 4, kind: input, shape index: {}]
  %s5 = inlined_call_operand.vmem [shape: bf16[16,32], index: 5, kind: input, shape index: {}]
  %s6 = inlined_call_operand.vmem [shape: bf16[32,4], index: 6, kind: input, shape index: {}]
  %s7 = inlined_call_operand.vmem [shape: s32[1,384], index: 7, kind: input, shape index: {}]
  %s8 = inlined_call_operand.vmem [shape: f32[3,3,4], index: 8, kind: output, shape index: {}]
  %s9 = sld [smem:[#allocation0]]
  $region110: #{_critic_forward_impl.3} parent=0
    _
  %s11 = ssub.s32 1, %s9
  %s12 = scalar_select 0, %s11, %s9
  %s13 = sshll.u32 %s0, 4
  %s14 = int_to_ptr.vmem [resolvable:$true] %s13
  %16 = dma.vmem_to_smem %s14, 16, [#allocation4], [#allocation3]
  %s17 = sshll.u32 %s1, 4
  %s18 = int_to_ptr.vmem [resolvable:$true] %s17
  %20 = dma.vmem_to_smem %s18, 16, [#allocation5], [#allocation3]
  %21 = dma.done [#allocation3], 32
  %22 = sfence
  $region1: #{_critic_forward_impl.3} parent=0
    #allocation6 [shape = 'u8[65536]{0}', space=vmem, size = 0x10000, scoped, tag = 'input window, operand 2']
    loop: start=0, step=1, limit=11
    $region2: #{_critic_forward_impl.3} parent=1 // loop_pre_header
      _
    $region3: #{_critic_forward_impl.3} parent=1 // loop_header
      %s24 = sphi 0, %s28
      %p25 = scmp.ge.s32.totalorder %s24, 11
      %s31 = sphi 0, %s43
      %s32 = sphi 0, %s39
      %s33 = sphi 0, %s31
      %s34 = sphi 0, %s32
      %s35 = sphi 0, %s33
      %s36 = sphi 0, %s34
      %s54 = sphi 0, %s56
      %s57 = sphi 0, %s54
      %s58 = sphi 0, %s57
      %s74 = sphi 0, %s58
      %s86 = sphi 0, %s88
      %s89 = sphi 0, %s86
      %s90 = sphi 0, %s89
      %s106 = sphi 0, %s90
      %s110 = sphi 0, %s110
      %s112 = sphi 0, %s110
      %s113 = sphi 0, %s112
      %s127 = sphi 0, %s113
      %s131 = sphi 0, %s131
      %s133 = sphi 0, %s131
      %s134 = sphi 0, %s133
      %s148 = sphi 0, %s134
      %s152 = sphi 0, %s152
      %s154 = sphi 0, %s152
      %s155 = sphi 0, %s154
      %s169 = sphi 0, %s155
      %s175 = sphi 0, %s177
      %s178 = sphi 0, %s175
      %s179 = sphi 0, %s178
      %s195 = sphi 0, %s179
      %s201 = sphi 0, %s203
      %s204 = sphi 0, %s201
      %s205 = sphi 0, %s204
      %s221 = sphi 0, %s205
    $region4: #{_critic_forward_impl.3} parent=1 // loop_header_branch
      %27 = sbr.rel (%p25) target = $region8
    $region5: #{_critic_forward_impl.3} parent=1 // loop_body
      %s29 = ssub.s32 %s24, 1
      %s30 = ssub.s32 %s24, 2
      %s37 = sadd.s32 1, %s32
      %p38 = scmp.ge.s32.totalorder %s37, 3
      %s39 = scalar_select %p38, 0, %s37
      %s40 = sadd.s32 1, %s31
      %s41 = scalar_select %p38, %s40, %s31
      %p42 = scmp.ge.s32.totalorder %s41, 3
      %s43 = scalar_select %p42, 0, %s41
      %s44 = smul.u32 %s31, 3
      %s45 = sadd.s32 %s44, %s32
      %s46 = sld [smem:[#allocation4 + %s45]]
      %s47 = smul.u32 %s43, 3
      %s48 = sadd.s32 %s47, %s39
      %s49 = sld [smem:[#allocation4 + %s48]]
      %s50 = ssub.s32 %s31, %s43
      %s51 = ssub.s32 %s46, %s49
      %s52 = sor.u32 %s50, %s51
      %p53 = scmp.eq.s32.totalorder %s52, 0
      %s55 = sadd.s32 %s54, 1
      %s56 = scalar_select %p53, %s54, %s55
      %p59 = pneg %p53
      %p60 = scmp.eq.s32.totalorder %s24, 8
      %p61 = por %p59, %p60
      %p62 = scmp.ne.s32.totalorder %s54, %s57
      %p63 = scmp.eq.s32.totalorder %s24, 0
      %p64 = por %p62, %p63
      %p65 = scmp.ne.s32.totalorder %s54, %s57
      %p66 = scmp.eq.s32.totalorder %s29, 8
      %p67 = por %p65, %p66
      %p68 = scmp.ne.s32.totalorder %s57, %s58
      %p69 = scmp.eq.s32.totalorder %s29, 0
      %p70 = por %p68, %p69
      %p71 = scmp.ne.s32.totalorder %s57, %s58
      %p72 = scmp.eq.s32.totalorder %s30, 8
      %p73 = por %p71, %p72
      %p75 = scmp.ne.s32.totalorder %s58, %s74
      %p76 = scmp.eq.s32.totalorder %s30, 0
      %p77 = por %p75, %p76
      %s78 = smul.u32 %s31, 3
      %s79 = sadd.s32 %s78, %s32
      %s80 = sld [smem:[#allocation4 + %s79]]
      %s81 = smul.u32 %s43, 3
      %s82 = sadd.s32 %s81, %s39
      %s83 = sld [smem:[#allocation4 + %s82]]
      %s84 = ssub.s32 %s80, %s83
      %p85 = scmp.eq.s32.totalorder %s84, 0
      %s87 = sadd.s32 %s86, 1
      %s88 = scalar_select %p85, %s86, %s87
      %p91 = pneg %p85
      %p92 = scmp.eq.s32.totalorder %s24, 8
      %p93 = por %p91, %p92
      %p94 = scmp.ne.s32.totalorder %s86, %s89
      %p95 = scmp.eq.s32.totalorder %s24, 0
      %p96 = por %p94, %p95
      %p97 = scmp.ne.s32.totalorder %s86, %s89
      %p98 = scmp.eq.s32.totalorder %s29, 8
      %p99 = por %p97, %p98
      %p100 = scmp.ne.s32.totalorder %s89, %s90
      %p101 = scmp.eq.s32.totalorder %s29, 0
      %p102 = por %p100, %p101
      %p103 = scmp.ne.s32.totalorder %s89, %s90
      %p104 = scmp.eq.s32.totalorder %s30, 8
      %p105 = por %p103, %p104
      %p107 = scmp.ne.s32.totalorder %s90, %s106
      %p108 = scmp.eq.s32.totalorder %s30, 0
      %p109 = por %p107, %p108
      %s111 = sadd.s32 %s110, 1
      %p114 = scmp.eq.s32.totalorder %s24, 8
      %p115 = scmp.ne.s32.totalorder %s110, %s112
      %p116 = scmp.eq.s32.totalorder %s24, 0
      %p117 = por %p115, %p116
      %p118 = scmp.ne.s32.totalorder %s110, %s112
      %p119 = scmp.eq.s32.totalorder %s29, 8
      %p120 = por %p118, %p119
      %p121 = scmp.ne.s32.totalorder %s112, %s113
      %p122 = scmp.eq.s32.totalorder %s29, 0
      %p123 = por %p121, %p122
      %p124 = scmp.ne.s32.totalorder %s112, %s113
      %p125 = scmp.eq.s32.totalorder %s30, 8
      %p126 = por %p124, %p125
      %p128 = scmp.ne.s32.totalorder %s113, %s127
      %p129 = scmp.eq.s32.totalorder %s30, 0
      %p130 = por %p128, %p129
      %s132 = sadd.s32 %s131, 1
      %p135 = scmp.eq.s32.totalorder %s24, 8
      %p136 = scmp.ne.s32.totalorder %s131, %s133
      %p137 = scmp.eq.s32.totalorder %s24, 0
      %p138 = por %p136, %p137
      %p139 = scmp.ne.s32.totalorder %s131, %s133
      %p140 = scmp.eq.s32.totalorder %s29, 8
      %p141 = por %p139, %p140
      %p142 = scmp.ne.s32.totalorder %s133, %s134
      %p143 = scmp.eq.s32.totalorder %s29, 0
      %p144 = por %p142, %p143
      %p145 = scmp.ne.s32.totalorder %s133, %s134
      %p146 = scmp.eq.s32.totalorder %s30, 8
      %p147 = por %p145, %p146
      %p149 = scmp.ne.s32.totalorder %s134, %s148
      %p150 = scmp.eq.s32.totalorder %s30, 0
      %p151 = por %p149, %p150
      %s153 = sadd.s32 %s152, 1
      %p156 = scmp.eq.s32.totalorder %s24, 8
      %p157 = scmp.ne.s32.totalorder %s152, %s154
      %p158 = scmp.eq.s32.totalorder %s24, 0
      %p159 = por %p157, %p158
      %p160 = scmp.ne.s32.totalorder %s152, %s154
      %p161 = scmp.eq.s32.totalorder %s29, 8
      %p162 = por %p160, %p161
      %p163 = scmp.ne.s32.totalorder %s154, %s155
      %p164 = scmp.eq.s32.totalorder %s29, 0
      %p165 = por %p163, %p164
      %p166 = scmp.ne.s32.totalorder %s154, %s155
      %p167 = scmp.eq.s32.totalorder %s30, 8
      %p168 = por %p166, %p167
      %p170 = scmp.ne.s32.totalorder %s155, %s169
      %p171 = scmp.eq.s32.totalorder %s30, 0
      %p172 = por %p170, %p171
      %s173 = ssub.s32 %s31, %s43
      %p174 = scmp.eq.s32.totalorder %s173, 0
      %s176 = sadd.s32 %s175, 1
      %s177 = scalar_select %p174, %s175, %s176
      %p180 = pneg %p174
      %p181 = scmp.eq.s32.totalorder %s24, 8
      %p182 = por %p180, %p181
      %p183 = scmp.ne.s32.totalorder %s175, %s178
      %p184 = scmp.eq.s32.totalorder %s24, 0
      %p185 = por %p183, %p184
      %p186 = scmp.ne.s32.totalorder %s175, %s178
      %p187 = scmp.eq.s32.totalorder %s29, 8
      %p188 = por %p186, %p187
      %p189 = scmp.ne.s32.totalorder %s178, %s179
      %p190 = scmp.eq.s32.totalorder %s29, 0
      %p191 = por %p189, %p190
      %p192 = scmp.ne.s32.totalorder %s178, %s179
      %p193 = scmp.eq.s32.totalorder %s30, 8
      %p194 = por %p192, %p193
      %p196 = scmp.ne.s32.totalorder %s179, %s195
      %p197 = scmp.eq.s32.totalorder %s30, 0
      %p198 = por %p196, %p197
      %s199 = ssub.s32 %s31, %s43
      %p200 = scmp.eq.s32.totalorder %s199, 0
      %s202 = sadd.s32 %s201, 1
      %s203 = scalar_select %p200, %s201, %s202
      %p206 = pneg %p200
      %p207 = scmp.eq.s32.totalorder %s24, 8
      %p208 = por %p206, %p207
      %p209 = scmp.ne.s32.totalorder %s201, %s204
      %p210 = scmp.eq.s32.totalorder %s24, 0
      %p211 = por %p209, %p210
      %p212 = scmp.ne.s32.totalorder %s201, %s204
      %p213 = scmp.eq.s32.totalorder %s29, 8
      %p214 = por %p212, %p213
      %p215 = scmp.ne.s32.totalorder %s204, %s205
      %p216 = scmp.eq.s32.totalorder %s29, 0
      %p217 = por %p215, %p216
      %p218 = scmp.ne.s32.totalorder %s204, %s205
      %p219 = scmp.eq.s32.totalorder %s30, 8
      %p220 = por %p218, %p219
      %p222 = scmp.ne.s32.totalorder %s205, %s221
      %p223 = scmp.eq.s32.totalorder %s30, 0
      %p224 = por %p222, %p223
      %p225 = scmp.le.s32.totalorder 1, %s24
      %p226 = scmp.lt.s32.totalorder %s24, 10
      %p227 = pnand %p225, %p226
      %p228 = pneg %p227
      // Predicated region
      $region9: #{_critic_forward_impl.3} parent=5 // pred_check
        _
      $region10: #{_critic_forward_impl.3} parent=5 // pred_check_branch
        %230 = sbr.rel (%p227) target = $region12
      $region11: #{_critic_forward_impl.3} parent=5 // pred_region
        %s231 = ssub.s32 %s24, 1
        // Predicated region
        $region13: #{_critic_forward_impl.3} parent=11 // pred_check
          %p232 = pneg %p123
        $region14: #{_critic_forward_impl.3} parent=11 // pred_check_branch
          %234 = sbr.rel (%p232) target = $region16
        $region15: #{_critic_forward_impl.3} parent=11 // pred_region
          _
        $region16: #{_critic_forward_impl.3} parent=11 // pred_fallthru
          _
        // Predicated region
        $region17: #{_critic_forward_impl.3} parent=11 // pred_check
          %p235 = pneg %p144
        $region18: #{_critic_forward_impl.3} parent=11 // pred_check_branch
          %237 = sbr.rel (%p235) target = $region20
        $region19: #{_critic_forward_impl.3} parent=11 // pred_region
          _
        $region20: #{_critic_forward_impl.3} parent=11 // pred_fallthru
          _
        // Predicated region
        $region21: #{_critic_forward_impl.3} parent=11 // pred_check
          %p238 = pneg %p165
        $region22: #{_critic_forward_impl.3} parent=11 // pred_check_branch
          %240 = sbr.rel (%p238) target = $region24
        $region23: #{_critic_forward_impl.3} parent=11 // pred_region
          _
        $region24: #{_critic_forward_impl.3} parent=11 // pred_fallthru
          _
      $region12: #{_critic_forward_impl.3} parent=5 // pred_fallthru
        _
      %p241 = scmp.lt.s32.totalorder %s24, 9
      // Predicated region
      $region25: #{_critic_forward_impl.3} parent=5 // pred_check
        %p242 = pneg %p241
      $region26: #{_critic_forward_impl.3} parent=5 // pred_check_branch
        %244 = sbr.rel (%p242) target = $region28
      $region27: #{_critic_forward_impl.3} parent=5 // pred_region
        // Predicated region
        $region29: #{_critic_forward_impl.3} parent=27 // pred_check
          %p245 = pneg %p64
        $region30: #{_critic_forward_impl.3} parent=27 // pred_check_branch
          %247 = sbr.rel (%p245) target = $region32
        $region31: #{_critic_forward_impl.3} parent=27 // pred_region
          %s248 = sand.u32 %s54, 1
          %s249 = sand.u32 %s54, 1
          %s250 = smul.addr %s249, 64
          %s251 = scalar_lea.vmem [#allocation6], %s250
          %s252 = smul.u32 %s31, 3
          %s253 = sadd.s32 %s252, %s32
          %s254 = sld [smem:[#allocation4 + %s253]]
          %s255 = smul.u32 16, %s31
          %s256 = smul.addr %s255, 3
          %s257 = sadd.s32 %s254, %s256
          %s258 = smul.addr %s257, 4
          %s259 = scalar_lea.vmem %s2, %s258
          // Predicated region
          $region33: #{_critic_forward_impl.3} parent=31 // pred_check
            _
          $region34: #{_critic_forward_impl.3} parent=31 // pred_check_branch
            %261 = sbr.rel (0) target = $region36
          $region35: #{_critic_forward_impl.3} parent=31 // pred_region
            // Predicated region
            $region37: #{_critic_forward_impl.3} parent=35 // pred_check
              _
            $region38: #{_critic_forward_impl.3} parent=35 // pred_check_branch
              %263 = sbr.rel target = $region40
            $region39: #{_critic_forward_impl.3} parent=35 // pred_region
              // Predicated region
              $region52: #{_critic_forward_impl.3} parent=39 // pred_check
                _
              $region53: #{_critic_forward_impl.3} parent=39 // pred_check_branch
                %308 = sbr.rel (0) target = $region55
              $region54: #{_critic_forward_impl.3} parent=39 // pred_region
                loop: start=0, step=1, limit=1
                $region56: #{_critic_forward_impl.3} parent=54 // loop_pre_header
                  _
                $region57: #{_critic_forward_impl.3} parent=54 // loop_header
                  %s310 = sphi 0, %s314
                  %p311 = scmp.ge.s32.totalorder %s310, 1
                  %s315 = sphi %s259, %s259
                  %s316 = sphi %s251, %s251
                $region58: #{_critic_forward_impl.3} parent=54 // loop_header_branch
                  %313 = sbr.rel (%p311) target = $region62
                $region59: #{_critic_forward_impl.3} parent=54 // loop_body
                  _
                $region60: #{_critic_forward_impl.3} parent=54 // loop_footer
                  %s314 = sadd.s32 1, %s310
                $region61: #{_critic_forward_impl.3} parent=54 // loop_footer_branch
                  %309 = sbr.rel target = $region57
                $region62: #{_critic_forward_impl.3} parent=54 // loop_exit
                  _
                loop: start=0, step=1, limit=1
                $region63: #{_critic_forward_impl.3} parent=54 // loop_pre_header
                  _
                $region64: #{_critic_forward_impl.3} parent=54 // loop_header
                  %s319 = sphi 0, %s323
                  %p320 = scmp.ge.s32.totalorder %s319, 1
                  %s324 = sphi %s259, %s259
                  %s325 = sphi %s251, %s251
                $region65: #{_critic_forward_impl.3} parent=54 // loop_header_branch
                  %322 = sbr.rel (%p320) target = $region69
                $region66: #{_critic_forward_impl.3} parent=54 // loop_body
                  %v326 = vld [vmem:[%s324] sm:$0xf]
                  %327 = vst [vmem:[%s325] sm:$0xf] %v326
                  %v328 = vld [vmem:[%s324 + $0xc] sm:$0xf]
                  %329 = vst [vmem:[%s325 + $0x4] sm:$0xf] %v328
                  %v330 = vld [vmem:[%s324 + $0x18] sm:$0xf]
                  %331 = vst [vmem:[%s325 + $0x8] sm:$0xf] %v330
                  %v332 = vld [vmem:[%s324 + $0x24] sm:$0xf]
                  %333 = vst [vmem:[%s325 + $0xc] sm:$0xf] %v332
                  %v334 = vld [vmem:[%s324 + $0x30] sm:$0xf]
                  %335 = vst [vmem:[%s325 + $0x10] sm:$0xf] %v334
                  %v336 = vld [vmem:[%s324 + $0x3c] sm:$0xf]
                  %337 = vst [vmem:[%s325 + $0x14] sm:$0xf] %v336
                  %v338 = vld [vmem:[%s324 + $0x48] sm:$0xf]
                  %339 = vst [vmem:[%s325 + $0x18] sm:$0xf] %v338
                  %v340 = vld [vmem:[%s324 + $0x54] sm:$0xf]
                  %341 = vst [vmem:[%s325 + $0x1c] sm:$0xf] %v340
                  %v342 = vld [vmem:[%s324 + $0x60] sm:$0xf]
                  %343 = vst [vmem:[%s325 + $0x20] sm:$0xf] %v342
                  %v344 = vld [vmem:[%s324 + $0x6c] sm:$0xf]
                  %345 = vst [vmem:[%s325 + $0x24] sm:$0xf] %v344
                  %v346 = vld [vmem:[%s324 + $0x78] sm:$0xf]
                  %347 = vst [vmem:[%s325 + $0x28] sm:$0xf] %v346
                  %v348 = vld [vmem:[%s324 + $0x84] sm:$0xf]
                  %349 = vst [vmem:[%s325 + $0x2c] sm:$0xf] %v348
                  %v350 = vld [vmem:[%s324 + $0x90] sm:$0xf]
                  %351 = vst [vmem:[%s325 + $0x30] sm:$0xf] %v350
                  %v352 = vld [vmem:[%s324 + $0x9c] sm:$0xf]
                  %353 = vst [vmem:[%s325 + $0x34] sm:$0xf] %v352
                  %v354 = vld [vmem:[%s324 + $0xa8] sm:$0xf]
                  %355 = vst [vmem:[%s325 + $0x38] sm:$0xf] %v354
                  %v356 = vld [vmem:[%s324 + $0xb4] sm:$0xf]
                  %357 = vst [vmem:[%s325 + $0x3c] sm:$0xf] %v356
                $region67: #{_critic_forward_impl.3} parent=54 // loop_footer
                  %s323 = sadd.s32 1, %s319
                $region68: #{_critic_forward_impl.3} parent=54 // loop_footer_branch
                  %318 = sbr.rel target = $region64
                $region69: #{_critic_forward_impl.3} parent=54 // loop_exit
                  _
              $region55: #{_critic_forward_impl.3} parent=39 // pred_fallthru
                _
            $region40: #{_critic_forward_impl.3} parent=35 // pred_fallthru
              _
            // Predicated region
            $region41: #{_critic_forward_impl.3} parent=35 // pred_check
              _
            $region42: #{_critic_forward_impl.3} parent=35 // pred_check_branch
              %265 = sbr.rel (0) target = $region44
            $region43: #{_critic_forward_impl.3} parent=35 // pred_region
              loop: start=0, step=1, limit=1
              $region45: #{_critic_forward_impl.3} parent=43 // loop_pre_header
                _
              $region46: #{_critic_forward_impl.3} parent=43 // loop_header
                %s268 = sphi 0, %s272
                %p269 = scmp.ge.s32.totalorder %s268, 1
                %s273 = sphi %s259, %s259
                %s274 = sphi %s251, %s251
              $region47: #{_critic_forward_impl.3} parent=43 // loop_header_branch
                %271 = sbr.rel (%p269) target = $region51
              $region48: #{_critic_forward_impl.3} parent=43 // loop_body
                %v275 = vld [vmem:[%s273] sm:$0xf]
                %276 = vst [vmem:[%s274] sm:$0xf] %v275
                %v277 = vld [vmem:[%s273 + $0xc] sm:$0xf]
                %278 = vst [vmem:[%s274 + $0x4] sm:$0xf] %v277
                %v279 = vld [vmem:[%s273 + $0x18] sm:$0xf]
                %280 = vst [vmem:[%s274 + $0x8] sm:$0xf] %v279
                %v281 = vld [vmem:[%s273 + $0x24] sm:$0xf]
                %282 = vst [vmem:[%s274 + $0xc] sm:$0xf] %v281
                %v283 = vld [vmem:[%s273 + $0x30] sm:$0xf]
                %284 = vst [vmem:[%s274 + $0x10] sm:$0xf] %v283
                %v285 = vld [vmem:[%s273 + $0x3c] sm:$0xf]
                %286 = vst [vmem:[%s274 + $0x14] sm:$0xf] %v285
                %v287 = vld [vmem:[%s273 + $0x48] sm:$0xf]
                %288 = vst [vmem:[%s274 + $0x18] sm:$0xf] %v287
                %v289 = vld [vmem:[%s273 + $0x54] sm:$0xf]
                %290 = vst [vmem:[%s274 + $0x1c] sm:$0xf] %v289
                %v291 = vld [vmem:[%s273 + $0x60] sm:$0xf]
                %292 = vst [vmem:[%s274 + $0x20] sm:$0xf] %v291
                %v293 = vld [vmem:[%s273 + $0x6c] sm:$0xf]
                %294 = vst [vmem:[%s274 + $0x24] sm:$0xf] %v293
                %v295 = vld [vmem:[%s273 + $0x78] sm:$0xf]
                %296 = vst [vmem:[%s274 + $0x28] sm:$0xf] %v295
                %v297 = vld [vmem:[%s273 + $0x84] sm:$0xf]
                %298 = vst [vmem:[%s274 + $0x2c] sm:$0xf] %v297
                %v299 = vld [vmem:[%s273 + $0x90] sm:$0xf]
                %300 = vst [vmem:[%s274 + $0x30] sm:$0xf] %v299
                %v301 = vld [vmem:[%s273 + $0x9c] sm:$0xf]
                %302 = vst [vmem:[%s274 + $0x34] sm:$0xf] %v301
                %v303 = vld [vmem:[%s273 + $0xa8] sm:$0xf]
                %304 = vst [vmem:[%s274 + $0x38] sm:$0xf] %v303
                %v305 = vld [vmem:[%s273 + $0xb4] sm:$0xf]
                %306 = vst [vmem:[%s274 + $0x3c] sm:$0xf] %v305
              $region49: #{_critic_forward_impl.3} parent=43 // loop_footer
                %s272 = sadd.s32 1, %s268
              $region50: #{_critic_forward_impl.3} parent=43 // loop_footer_branch
                %267 = sbr.rel target = $region46
              $region51: #{_critic_forward_impl.3} parent=43 // loop_exit
                _
            $region44: #{_critic_forward_impl.3} parent=35 // pred_fallthru
              _
          $region36: #{_critic_forward_impl.3} parent=31 // pred_fallthru
            _
          %358 = vnop
        $region32: #{_critic_forward_impl.3} parent=27 // pred_fallthru
          _
        // Predicated region
        $region70: #{_critic_forward_impl.3} parent=27 // pred_check
          %p359 = pneg %p96
        $region71: #{_critic_forward_impl.3} parent=27 // pred_check_branch
          %361 = sbr.rel (%p359) target = $region73
        $region72: #{_critic_forward_impl.3} parent=27 // pred_region
          %s362 = smul.u32 %s31, 3
          %s363 = sadd.s32 %s362, %s32
          %s364 = sld [smem:[#allocation4 + %s363]]
          %s365 = smul.u32 16, %s364
          %p366 = scmp.lt.s32.totalorder %s365, 47
          %s367 = scalar_select %p366, %s365, 47
          %s368 = smul.addr %s367, 4
          %s369 = scalar_lea.vmem %s3, %s368
          %s370 = smul.u32 %s31, 3
          %s371 = sadd.s32 %s370, %s32
          %s372 = sld [smem:[#allocation4 + %s371]]
          %s373 = smul.u32 16, %s372
        $region73: #{_critic_forward_impl.3} parent=27 // pred_fallthru
          _
        // Predicated region
        $region74: #{_critic_forward_impl.3} parent=27 // pred_check
          %p374 = pneg %p185
        $region75: #{_critic_forward_impl.3} parent=27 // pred_check_branch
          %376 = sbr.rel (%p374) target = $region77
        $region76: #{_critic_forward_impl.3} parent=27 // pred_region
          %p377 = scmp.lt.s32.totalorder %s31, 2
          %s378 = scalar_select %p377, %s31, 2
          %s379 = scalar_lea.vmem %s7, %s378
        $region77: #{_critic_forward_impl.3} parent=27 // pred_fallthru
          _
      $region28: #{_critic_forward_impl.3} parent=5 // pred_fallthru
        _
      %p380 = scmp.le.s32.totalorder 1, %s24
      %p381 = scmp.lt.s32.totalorder %s24, 10
      %p382 = pnand %p380, %p381
      %p383 = pneg %p382
      // Predicated region
      $region78: #{_critic_forward_impl.3} parent=5 // pred_check
        _
      $region79: #{_critic_forward_impl.3} parent=5 // pred_check_branch
        %385 = sbr.rel (%p382) target = $region81
      $region80: #{_critic_forward_impl.3} parent=5 // pred_region
        %s386 = ssub.s32 %s24, 1
        %s387 = sand.u32 %s57, 1
        %s388 = sand.u32 %s57, 1
        %s389 = smul.addr %s388, 64
        %s390 = scalar_lea.vmem [#allocation6], %s389
        // Predicated region
        $region82: #{_critic_forward_impl.3} parent=80 // pred_check
          %p391 = pneg %p70
        $region83: #{_critic_forward_impl.3} parent=80 // pred_check_branch
          %393 = sbr.rel (%p391) target = $region85
        $region84: #{_critic_forward_impl.3} parent=80 // pred_region
          _
        $region85: #{_critic_forward_impl.3} parent=80 // pred_fallthru
          _
        %s394 = sand.u32 %s57, 1
        %s395 = sand.u32 %s57, 1
        %s396 = smul.addr %s395, 64
        %s397 = scalar_lea.vmem [#allocation6], %s396
        %p398 = pneg %p70
        %p399 = pneg %p67
        %s400 = smul.u32 %s33, 3
        %s401 = sadd.s32 %s400, %s34
        %s402 = sld [smem:[#allocation4 + %s401]]
        %s403 = smul.u32 16, %s402
        %p404 = scmp.lt.s32.totalorder %s403, 47
        %s405 = scalar_select %p404, %s403, 47
        %s406 = smul.addr %s405, 4
        %s407 = scalar_lea.vmem %s3, %s406
        %p408 = pneg %p102
        %p409 = pneg %p99
        %p410 = pneg %p123
        %p411 = pneg %p120
        %p412 = pneg %p144
        %p413 = pneg %p141
        %p414 = pneg %p165
        %p415 = pneg %p162
        %p416 = scmp.lt.s32.totalorder %s33, 2
        %s417 = scalar_select %p416, %s33, 2
        %s418 = scalar_lea.vmem %s7, %s417
        %p419 = pneg %p191
        %p420 = pneg %p188
        %p421 = pneg %p217
        %p422 = pneg %p214
        %p423 = scmp.lt.s32.totalorder %s33, 2
        %s424 = scalar_select %p423, %s33, 2
        %s425 = smul.addr %s424, 4
        %s426 = scalar_lea.vmem %s8, %s425
        %s427 = smul.u32 %s33, 3
        %s428 = sadd.s32 %s427, %s34
        %s429 = sld [smem:[#allocation4 + %s428]]
        %s430 = smul.u32 16, %s33
        %s431 = smul.u32 %s33, 3
        %s432 = sadd.s32 %s431, %s34
        %s433 = sld [smem:[#allocation4 + %s432]]
        %s434 = smul.u32 16, %s433
        %p435 = scmp.lt.s32.totalorder %s434, 47
        %s436 = scalar_select %p435, %s434, 47
        %s437 = smul.addr %s436, 4
        %s438 = scalar_lea.vmem %s3, %s437
        %s439 = smul.u32 %s33, 3
        %s440 = sadd.s32 %s439, %s34
        %s441 = sld [smem:[#allocation4 + %s440]]
        %s442 = smul.u32 16, %s441
        %p443 = scmp.lt.s32.totalorder %s33, 2
        %s444 = scalar_select %p443, %s33, 2
        %s445 = scalar_lea.vmem %s7, %s444
        %p446 = scmp.lt.s32.totalorder %s33, 2
        %s447 = scalar_select %p446, %s33, 2
        %s448 = smul.addr %s447, 4
        %s449 = scalar_lea.vmem %s8, %s448
        %p451 = scmp.eq.s32.totalorder %s34, 0
        // Predicated region
        $region86: #{_critic_forward_impl.3} parent=80 // pred_check
          %p452 = pneg %p451
        $region87: #{_critic_forward_impl.3} parent=80 // pred_check_branch
          %454 = sbr.rel (%p452) target = $region89
        $region88: #{_critic_forward_impl.3} parent=80 // pred_region
          %vm455 = vcmask 130048
          %456 = vst.msk [vmem:[#allocation2] sm:$0xff] %vm455, 0.0
          %457 = vst.msk [vmem:[#allocation2 + $0x8] sm:$0xff] %vm455, 0.0
          %458 = vst.msk [vmem:[#allocation2 + $0x10] sm:$0xff] %vm455, 0.0
          %459 = vst.msk [vmem:[#allocation2 + $0x18] sm:$0xff] %vm455, 0.0
          %460 = vst.msk [vmem:[#allocation2 + $0x20] sm:$0xff] %vm455, 0.0
          %461 = vst.msk [vmem:[#allocation2 + $0x28] sm:$0xff] %vm455, 0.0
          %462 = vst.msk [vmem:[#allocation2 + $0x30] sm:$0xff] %vm455, 0.0
          %463 = vst.msk [vmem:[#allocation2 + $0x38] sm:$0xff] %vm455, 0.0
          %464 = vst.msk [vmem:[#allocation2 + $0x40] sm:$0xff] %vm455, 0.0
          %465 = vst.msk [vmem:[#allocation2 + $0x48] sm:$0xff] %vm455, 0.0
          %466 = vst.msk [vmem:[#allocation2 + $0x50] sm:$0xff] %vm455, 0.0
          %467 = vst.msk [vmem:[#allocation2 + $0x58] sm:$0xff] %vm455, 0.0
          %468 = vst.msk [vmem:[#allocation2 + $0x60] sm:$0xff] %vm455, 0.0
          %469 = vst.msk [vmem:[#allocation2 + $0x68] sm:$0xff] %vm455, 0.0
          %470 = vst.msk [vmem:[#allocation2 + $0x70] sm:$0xff] %vm455, 0.0
          %471 = vst.msk [vmem:[#allocation2 + $0x78] sm:$0xff] %vm455, 0.0
        $region89: #{_critic_forward_impl.3} parent=80 // pred_fallthru
          _
        %s472 = sld [smem:[#allocation5 + %s33]]
        %p473 = scmp.lt.s32.totalorder %s34, %s472
        // Predicated region
        $region90: #{_critic_forward_impl.3} parent=80 // pred_check
          %p474 = pneg %p473
        $region91: #{_critic_forward_impl.3} parent=80 // pred_check_branch
          %476 = sbr.rel (%p474) target = $region93
        $region92: #{_critic_forward_impl.3} parent=80 // pred_region
          %v477 = vld [vmem:[#allocation2] sm:$0xff]
          %v478 = vld [vmem:[#allocation2 + $0x8] sm:$0xff]
          %v479 = vld [vmem:[#allocation2 + $0x10] sm:$0xff]
          %v480 = vld [vmem:[#allocation2 + $0x18] sm:$0xff]
          %v481 = vld [vmem:[#allocation2 + $0x20] sm:$0xff]
          %v482 = vld [vmem:[#allocation2 + $0x28] sm:$0xff]
          %v483 = vld [vmem:[#allocation2 + $0x30] sm:$0xff]
          %v484 = vld [vmem:[#allocation2 + $0x38] sm:$0xff]
          %v485 = vld [vmem:[#allocation2 + $0x40] sm:$0xff]
          %v486 = vld [vmem:[#allocation2 + $0x48] sm:$0xff]
          %v487 = vld [vmem:[#allocation2 + $0x50] sm:$0xff]
          %v488 = vld [vmem:[#allocation2 + $0x58] sm:$0xff]
          %v489 = vld [vmem:[#allocation2 + $0x60] sm:$0xff]
          %v490 = vld [vmem:[#allocation2 + $0x68] sm:$0xff]
          %v491 = vld [vmem:[#allocation2 + $0x70] sm:$0xff]
          %v492 = vld [vmem:[#allocation2 + $0x78] sm:$0xff]
          %v493 = vld [vmem:[%s390] sm:$0xf]
          %v494 = vld [vmem:[%s390 + $0x4] sm:$0xf]
          %v495 = vld [vmem:[%s390 + $0x8] sm:$0xf]
          %v496 = vld [vmem:[%s390 + $0xc] sm:$0xf]
          %v497 = vld [vmem:[%s390 + $0x10] sm:$0xf]
          %v498 = vld [vmem:[%s390 + $0x14] sm:$0xf]
          %v499 = vld [vmem:[%s390 + $0x18] sm:$0xf]
          %v500 = vld [vmem:[%s390 + $0x1c] sm:$0xf]
          %v501 = vld [vmem:[%s390 + $0x20] sm:$0xf]
          %v502 = vld [vmem:[%s390 + $0x24] sm:$0xf]
          %v503 = vld [vmem:[%s390 + $0x28] sm:$0xf]
          %v504 = vld [vmem:[%s390 + $0x2c] sm:$0xf]
          %v505 = vld [vmem:[%s390 + $0x30] sm:$0xf]
          %v506 = vld [vmem:[%s390 + $0x34] sm:$0xf]
          %v507 = vld [vmem:[%s390 + $0x38] sm:$0xf]
          %v508 = vld [vmem:[%s390 + $0x3c] sm:$0xf]
          %v509 = vld [vmem:[%s438] sm:$0xf]
          %v510 = vld [vmem:[%s438 + $0x4] sm:$0xf]
          %v511 = vld [vmem:[%s438 + $0x8] sm:$0xf]
          %v512 = vld [vmem:[%s438 + $0xc] sm:$0xf]
          %v513 = vld [vmem:[%s438 + $0x10] sm:$0xf]
          %v514 = vld [vmem:[%s438 + $0x14] sm:$0xf]
          %v515 = vld [vmem:[%s438 + $0x18] sm:$0xf]
          %v516 = vld [vmem:[%s438 + $0x1c] sm:$0xf]
          %v517 = vld [vmem:[%s438 + $0x20] sm:$0xf]
          %v518 = vld [vmem:[%s438 + $0x24] sm:$0xf]
          %v519 = vld [vmem:[%s438 + $0x28] sm:$0xf]
          %v520 = vld [vmem:[%s438 + $0x2c] sm:$0xf]
          %v521 = vld [vmem:[%s438 + $0x30] sm:$0xf]
          %v522 = vld [vmem:[%s438 + $0x34] sm:$0xf]
          %v523 = vld [vmem:[%s438 + $0x38] sm:$0xf]
          %v524 = vld [vmem:[%s438 + $0x3c] sm:$0xf]
          %v541 = vunpack.c.l.b16 %v493
          %v542 = vunpack.c.l.b16 %v494
          %v543 = vunpack.c.l.b16 %v495
          %v544 = vunpack.c.l.b16 %v496
          %v545 = vunpack.c.l.b16 %v497
          %v546 = vunpack.c.l.b16 %v498
          %v547 = vunpack.c.l.b16 %v499
          %v548 = vunpack.c.l.b16 %v500
          %v549 = vunpack.c.l.b16 %v501
          %v550 = vunpack.c.l.b16 %v502
          %v551 = vunpack.c.l.b16 %v503
          %v552 = vunpack.c.l.b16 %v504
          %v553 = vunpack.c.l.b16 %v505
          %v554 = vunpack.c.l.b16 %v506
          %v555 = vunpack.c.l.b16 %v507
          %v556 = vunpack.c.l.b16 %v508
          %v557 = vpack.c.b16 %v542, %v541
          %v558 = vpack.c.b16 %v544, %v543
          %v559 = vpack.c.b16 %v546, %v545
          %v560 = vpack.c.b16 %v548, %v547
          %v561 = vpack.c.b16 %v550, %v549
          %v562 = vpack.c.b16 %v552, %v551
          %v563 = vpack.c.b16 %v554, %v553
          %v564 = vpack.c.b16 %v556, %v555
          %v589 = vunpack.c.l.b16 %v509
          %v590 = vunpack.c.l.b16 %v510
          %v591 = vunpack.c.l.b16 %v511
          %v592 = vunpack.c.l.b16 %v512
          %v593 = vunpack.c.l.b16 %v513
          %v594 = vunpack.c.l.b16 %v514
          %v595 = vunpack.c.l.b16 %v515
          %v596 = vunpack.c.l.b16 %v516
          %v597 = vunpack.c.l.b16 %v517
          %v598 = vunpack.c.l.b16 %v518
          %v599 = vunpack.c.l.b16 %v519
          %v600 = vunpack.c.l.b16 %v520
          %v601 = vunpack.c.l.b16 %v521
          %v602 = vunpack.c.l.b16 %v522
          %v603 = vunpack.c.l.b16 %v523
          %v604 = vunpack.c.l.b16 %v524
          %v605 = vpack.c.b16 %v590, %v589
          %v606 = vpack.c.b16 %v592, %v591
          %v607 = vpack.c.b16 %v594, %v593
          %v608 = vpack.c.b16 %v596, %v595
          %v609 = vpack.c.b16 %v598, %v597
          %v610 = vpack.c.b16 %v600, %v599
          %v611 = vpack.c.b16 %v602, %v601
          %v612 = vpack.c.b16 %v604, %v603
          %621 = vmatprep.subr.bf16.mxu0 0
          %622 = vmatpush1.bf16.msra.mxu0 %v605
          %623 = vmatprep.subr.bf16.mxu0 0
          %624 = vmatpush1.bf16.msra.mxu0 %v606
          %625 = vmatprep.subr.bf16.mxu0 0
          %626 = vmatpush1.bf16.msra.mxu0 %v607
          %627 = vmatprep.subr.bf16.mxu0 0
          %628 = vmatpush1.bf16.msra.mxu0 %v608
          %629 = vmatprep.subr.bf16.mxu0 0
          %630 = vmatpush1.bf16.msra.mxu0 %v609
          %631 = vmatprep.subr.bf16.mxu0 0
          %632 = vmatpush1.bf16.msra.mxu0 %v610
          %633 = vmatprep.subr.bf16.mxu0 0
          %634 = vmatpush1.bf16.msra.mxu0 %v611
          %635 = vmatprep.subr.bf16.mxu0 0
          %636 = vmatpush1.bf16.msra.mxu0 %v612
          %637 = vmatprep.subr.bf16.mxu0 0
          %638 = vmatpush1.bf16.msra.mxu0 0
          %639 = vmatprep.subr.bf16.mxu0 0
          %640 = vmatpush1.bf16.msra.mxu0 0
          %641 = vmatprep.subr.bf16.mxu0 0
          %642 = vmatpush1.bf16.msra.mxu0 0
          %643 = vmatprep.subr.bf16.mxu0 0
          %644 = vmatpush1.bf16.msra.mxu0 0
          %645 = vmatprep.subr.bf16.mxu0 0
          %646 = vmatpush1.bf16.msra.mxu0 0
          %647 = vmatprep.subr.bf16.mxu0 0
          %648 = vmatpush1.bf16.msra.mxu0 0
          %649 = vmatprep.subr.bf16.mxu0 0
          %650 = vmatpush1.bf16.msra.mxu0 0
          %651 = vmatprep.subr.bf16.mxu0 0
          %652 = vmatpush1.bf16.msra.mxu0 0
          %653 = vmatprep.mubr.bf16.mxu0 0
          %654 = vmatmul.mubr.bf16.gmra.mrb[0].mxu0 %v557
          %v655 = vpop.f32.mrb[0].mxu0
          %v656 = vadd.f32 0.0, %v655
          %v657 = vpop.f32.mrb[0].mxu0
          %v658 = vpop.f32.mrb[0].mxu0
          %v659 = vadd.f32 0.0, %v658
          %v660 = vpop.f32.mrb[0].mxu0
          %661 = vmatprep.mubr.bf16.mxu0 0
          %662 = vmatmul.mubr.bf16.gmra.mrb[0].mxu0 %v558
          %v663 = vpop.f32.mrb[0].mxu0
          %v664 = vadd.f32 0.0, %v663
          %v665 = vpop.f32.mrb[0].mxu0
          %v666 = vpop.f32.mrb[0].mxu0
          %v667 = vadd.f32 0.0, %v666
          %v668 = vpop.f32.mrb[0].mxu0
          %669 = vmatprep.mubr.bf16.mxu0 0
          %670 = vmatmul.mubr.bf16.gmra.mrb[0].mxu0 %v559
          %v671 = vpop.f32.mrb[0].mxu0
          %v672 = vadd.f32 0.0, %v671
          %v673 = vpop.f32.mrb[0].mxu0
          %v674 = vpop.f32.mrb[0].mxu0
          %v675 = vadd.f32 0.0, %v674
          %v676 = vpop.f32.mrb[0].mxu0
          %677 = vmatprep.mubr.bf16.mxu0 0
          %678 = vmatmul.mubr.bf16.gmra.mrb[0].mxu0 %v560
          %v679 = vpop.f32.mrb[0].mxu0
          %v680 = vadd.f32 0.0, %v679
          %v681 = vpop.f32.mrb[0].mxu0
          %v682 = vpop.f32.mrb[0].mxu0
          %v683 = vadd.f32 0.0, %v682
          %v684 = vpop.f32.mrb[0].mxu0
          %685 = vmatprep.mubr.bf16.mxu0 0
          %686 = vmatmul.mubr.bf16.gmra.mrb[0].mxu0 %v561
          %v687 = vpop.f32.mrb[0].mxu0
          %v688 = vadd.f32 0.0, %v687
          %v689 = vpop.f32.mrb[0].mxu0
          %v690 = vpop.f32.mrb[0].mxu0
          %v691 = vadd.f32 0.0, %v690
          %v692 = vpop.f32.mrb[0].mxu0
          %693 = vmatprep.mubr.bf16.mxu0 0
          %694 = vmatmul.mubr.bf16.gmra.mrb[0].mxu0 %v562
          %v695 = vpop.f32.mrb[0].mxu0
          %v696 = vadd.f32 0.0, %v695
          %v697 = vpop.f32.mrb[0].mxu0
          %v698 = vpop.f32.mrb[0].mxu0
          %v699 = vadd.f32 0.0, %v698
          %v700 = vpop.f32.mrb[0].mxu0
          %701 = vmatprep.mubr.bf16.mxu0 0
          %702 = vmatmul.mubr.bf16.gmra.mrb[0].mxu0 %v563
          %v703 = vpop.f32.mrb[0].mxu0
          %v704 = vadd.f32 0.0, %v703
          %v705 = vpop.f32.mrb[0].mxu0
          %v706 = vpop.f32.mrb[0].mxu0
          %v707 = vadd.f32 0.0, %v706
          %v708 = vpop.f32.mrb[0].mxu0
          %709 = vmatprep.mubr.bf16.mxu0 0
          %710 = vmatmul.mubr.bf16.gmra.mrb[0].mxu0 %v564
          %v711 = vpop.f32.mrb[0].mxu0
          %v712 = vadd.f32 0.0, %v711
          %v713 = vpop.f32.mrb[0].mxu0
          %v714 = vpop.f32.mrb[0].mxu0
          %v715 = vadd.f32 0.0, %v714
          %v716 = vpop.f32.mrb[0].mxu0
          %717 = vdwg.mxu0
          %v718 = vadd.f32 %v477, %v656
          %v719 = vadd.f32 %v478, %v659
          %v720 = vadd.f32 %v479, %v664
          %v721 = vadd.f32 %v480, %v667
          %v722 = vadd.f32 %v481, %v672
          %v723 = vadd.f32 %v482, %v675
          %v724 = vadd.f32 %v483, %v680
          %v725 = vadd.f32 %v484, %v683
          %v726 = vadd.f32 %v485, %v688
          %v727 = vadd.f32 %v486, %v691
          %v728 = vadd.f32 %v487, %v696
          %v729 = vadd.f32 %v488, %v699
          %v730 = vadd.f32 %v489, %v704
          %v731 = vadd.f32 %v490, %v707
          %v732 = vadd.f32 %v491, %v712
          %v733 = vadd.f32 %v492, %v715
          %vm734 = vcmask 130048
          %735 = vst.msk [vmem:[#allocation2] sm:$0xff] %vm734, %v718
          %736 = vst.msk [vmem:[#allocation2 + $0x8] sm:$0xff] %vm734, %v719
          %737 = vst.msk [vmem:[#allocation2 + $0x10] sm:$0xff] %vm734, %v720
          %738 = vst.msk [vmem:[#allocation2 + $0x18] sm:$0xff] %vm734, %v721
          %739 = vst.msk [vmem:[#allocation2 + $0x20] sm:$0xff] %vm734, %v722
          %740 = vst.msk [vmem:[#allocation2 + $0x28] sm:$0xff] %vm734, %v723
          %741 = vst.msk [vmem:[#allocation2 + $0x30] sm:$0xff] %vm734, %v724
          %742 = vst.msk [vmem:[#allocation2 + $0x38] sm:$0xff] %vm734, %v725
          %743 = vst.msk [vmem:[#allocation2 + $0x40] sm:$0xff] %vm734, %v726
          %744 = vst.msk [vmem:[#allocation2 + $0x48] sm:$0xff] %vm734, %v727
          %745 = vst.msk [vmem:[#allocation2 + $0x50] sm:$0xff] %vm734, %v728
          %746 = vst.msk [vmem:[#allocation2 + $0x58] sm:$0xff] %vm734, %v729
          %747 = vst.msk [vmem:[#allocation2 + $0x60] sm:$0xff] %vm734, %v730
          %748 = vst.msk [vmem:[#allocation2 + $0x68] sm:$0xff] %vm734, %v731
          %749 = vst.msk [vmem:[#allocation2 + $0x70] sm:$0xff] %vm734, %v732
          %750 = vst.msk [vmem:[#allocation2 + $0x78] sm:$0xff] %vm734, %v733
        $region93: #{_critic_forward_impl.3} parent=80 // pred_fallthru
          _
        %p751 = scmp.eq.s32.totalorder %s34, 2
        // Predicated region
        $region94: #{_critic_forward_impl.3} parent=80 // pred_check
          %p752 = pneg %p751
        $region95: #{_critic_forward_impl.3} parent=80 // pred_check_branch
          %754 = sbr.rel (%p752) target = $region97
        $region96: #{_critic_forward_impl.3} parent=80 // pred_region
          %v755 = vld [vmem:[%s4] sm:$0xf]
          %v756 = vld [vmem:[%s4 + $0x4] sm:$0xf]
          %v757 = vunpack.c.l.bf16 %v755
          %v758 = vunpack.c.l.bf16 %v756
          %v759 = vld [vmem:[%s5] sm:$0xf]
          %v760 = vld [vmem:[%s5 + $0x4] sm:$0xf]
          %v761 = vunpack.c.l.bf16 %v759
          %v762 = vunpack.c.l.bf16 %v760
          %v763 = vld [vmem:[%s6] sm:$0xf]
          %v764 = vld [vmem:[%s6 + $0x4] sm:$0xf]
          %v765 = vld [vmem:[%s6 + $0x8] sm:$0xf]
          %v766 = vld [vmem:[%s6 + $0xc] sm:$0xf]
          %v767 = vunpack.c.l.bf16 %v763
          %v768 = vunpack.c.l.bf16 %v764
          %v769 = vunpack.c.l.bf16 %v765
          %v770 = vunpack.c.l.bf16 %v766
          %v771 = vld [vmem:[#allocation2] sm:$0xff]
          %v772 = vld [vmem:[#allocation2 + $0x8] sm:$0xff]
          %v773 = vld [vmem:[#allocation2 + $0x10] sm:$0xff]
          %v774 = vld [vmem:[#allocation2 + $0x18] sm:$0xff]
          %v775 = vld [vmem:[#allocation2 + $0x20] sm:$0xff]
          %v776 = vld [vmem:[#allocation2 + $0x28] sm:$0xff]
          %v777 = vld [vmem:[#allocation2 + $0x30] sm:$0xff]
          %v778 = vld [vmem:[#allocation2 + $0x38] sm:$0xff]
          %v779 = vld [vmem:[#allocation2 + $0x40] sm:$0xff]
          %v780 = vld [vmem:[#allocation2 + $0x48] sm:$0xff]
          %v781 = vld [vmem:[#allocation2 + $0x50] sm:$0xff]
          %v782 = vld [vmem:[#allocation2 + $0x58] sm:$0xff]
          %v783 = vld [vmem:[#allocation2 + $0x60] sm:$0xff]
          %v784 = vld [vmem:[#allocation2 + $0x68] sm:$0xff]
          %v785 = vld [vmem:[#allocation2 + $0x70] sm:$0xff]
          %v786 = vld [vmem:[#allocation2 + $0x78] sm:$0xff]
          %vm787 = vcmask 130048
          %v789 = vsel %vm787, %v771, 0
          %v792 = vsel %vm787, %v772, 0
          %v795 = vsel %vm787, %v773, 0
          %v798 = vsel %vm787, %v774, 0
          %v801 = vsel %vm787, %v775, 0
          %v804 = vsel %vm787, %v776, 0
          %v807 = vsel %vm787, %v777, 0
          %v810 = vsel %vm787, %v778, 0
          %v813 = vsel %vm787, %v779, 0
          %v816 = vsel %vm787, %v780, 0
          %v819 = vsel %vm787, %v781, 0
          %v822 = vsel %vm787, %v782, 0
          %v825 = vsel %vm787, %v783, 0
          %v828 = vsel %vm787, %v784, 0
          %v831 = vsel %vm787, %v785, 0
          %v834 = vsel %vm787, %v786, 0
          %836 = vmatprep.subr.mxu0 0.0
          %837 = vmatpush1.msra.mxu0 %v757
          %838 = vmatprep.subr.mxu0 0.0
          %839 = vmatpush1.msra.mxu0 %v758
          %840 = vmatprep.subr.mxu0 0.0
          %841 = vmatpush1.msra.mxu0 0.0
          %842 = vmatprep.subr.mxu0 0.0
          %843 = vmatpush1.msra.mxu0 0.0
          %844 = vmatprep.subr.mxu0 0.0
          %845 = vmatpush1.msra.mxu0 0.0
          %846 = vmatprep.subr.mxu0 0.0
          %847 = vmatpush1.msra.mxu0 0.0
          %848 = vmatprep.subr.mxu0 0.0
          %849 = vmatpush1.msra.mxu0 0.0
          %850 = vmatprep.subr.mxu0 0.0
          %851 = vmatpush1.msra.mxu0 0.0
          %852 = vmatprep.subr.mxu0 0.0
          %853 = vmatpush1.msra.mxu0 0.0
          %854 = vmatprep.subr.mxu0 0.0
          %855 = vmatpush1.msra.mxu0 0.0
          %856 = vmatprep.subr.mxu0 0.0
          %857 = vmatpush1.msra.mxu0 0.0
          %858 = vmatprep.subr.mxu0 0.0
          %859 = vmatpush1.msra.mxu0 0.0
          %860 = vmatprep.subr.mxu0 0.0
          %861 = vmatpush1.msra.mxu0 0.0
          %862 = vmatprep.subr.mxu0 0.0
          %863 = vmatpush1.msra.mxu0 0.0
          %864 = vmatprep.subr.mxu0 0.0
          %865 = vmatpush1.msra.mxu0 0.0
          %866 = vmatprep.subr.mxu0 0.0
          %867 = vmatpush1.msra.mxu0 0.0
          %868 = vmatprep.subr.mxu0 0.0
          %869 = vmatpush1.msra.mxu0 0.0
          %870 = vmatprep.subr.mxu0 0.0
          %871 = vmatpush1.msra.mxu0 0.0
          %872 = vmatprep.subr.mxu0 0.0
          %873 = vmatpush1.msra.mxu0 0.0
          %874 = vmatprep.subr.mxu0 0.0
          %875 = vmatpush1.msra.mxu0 0.0
          %876 = vmatprep.subr.mxu0 0.0
          %877 = vmatpush1.msra.mxu0 0.0
          %878 = vmatprep.subr.mxu0 0.0
          %879 = vmatpush1.msra.mxu0 0.0
          %880 = vmatprep.subr.mxu0 0.0
          %881 = vmatpush1.msra.mxu0 0.0
          %882 = vmatprep.subr.mxu0 0.0
          %883 = vmatpush1.msra.mxu0 0.0
          %884 = vmatprep.subr.mxu0 0.0
          %885 = vmatpush1.msra.mxu0 0.0
          %886 = vmatprep.subr.mxu0 0.0
          %887 = vmatpush1.msra.mxu0 0.0
          %888 = vmatprep.subr.mxu0 0.0
          %889 = vmatpush1.msra.mxu0 0.0
          %890 = vmatprep.subr.mxu0 0.0
          %891 = vmatpush1.msra.mxu0 0.0
          %892 = vmatprep.subr.mxu0 0.0
          %893 = vmatpush1.msra.mxu0 0.0
          %894 = vmatprep.subr.mxu0 0.0
          %895 = vmatpush1.msra.mxu0 0.0
          %896 = vmatprep.subr.mxu0 0.0
          %897 = vmatpush1.msra.mxu0 0.0
          %898 = vmatprep.subr.mxu0 0.0
          %899 = vmatpush1.msra.mxu0 0.0
          %900 = vmatprep.mubr.f32.mxu0 0.0
          %901 = vmatmul.mubr.f32.gmra.mrb[0].mxu0 %v789
          %v902 = vpop.f32.mrb[0].mxu0
          %v903 = vadd.f32 0.0, %v902
          %v904 = vpop.f32.mrb[0].mxu0
          %905 = vmatprep.mubr.f32.mxu0 0.0
          %906 = vmatmul.mubr.f32.gmra.mrb[0].mxu0 %v792
          %v907 = vpop.f32.mrb[0].mxu0
          %v908 = vadd.f32 0.0, %v907
          %v909 = vpop.f32.mrb[0].mxu0
          %910 = vmatprep.mubr.f32.mxu0 0.0
          %911 = vmatmul.mubr.f32.gmra.mrb[0].mxu0 %v795
          %v912 = vpop.f32.mrb[0].mxu0
          %v913 = vadd.f32 0.0, %v912
          %v914 = vpop.f32.mrb[0].mxu0
          %915 = vmatprep.mubr.f32.mxu0 0.0
          %916 = vmatmul.mubr.f32.gmra.mrb[0].mxu0 %v798
          %v917 = vpop.f32.mrb[0].mxu0
          %v918 = vadd.f32 0.0, %v917
          %v919 = vpop.f32.mrb[0].mxu0
          %920 = vmatprep.mubr.f32.mxu0 0.0
          %921 = vmatmul.mubr.f32.gmra.mrb[0].mxu0 %v801
          %v922 = vpop.f32.mrb[0].mxu0
          %v923 = vadd.f32 0.0, %v922
          %v924 = vpop.f32.mrb[0].mxu0
          %925 = vmatprep.mubr.f32.mxu0 0.0
          %926 = vmatmul.mubr.f32.gmra.mrb[0].mxu0 %v804
          %v927 = vpop.f32.mrb[0].mxu0
          %v928 = vadd.f32 0.0, %v927
          %v929 = vpop.f32.mrb[0].mxu0
          %930 = vmatprep.mubr.f32.mxu0 0.0
          %931 = vmatmul.mubr.f32.gmra.mrb[0].mxu0 %v807
          %v932 = vpop.f32.mrb[0].mxu0
          %v933 = vadd.f32 0.0, %v932
          %v934 = vpop.f32.mrb[0].mxu0
          %935 = vmatprep.mubr.f32.mxu0 0.0
          %936 = vmatmul.mubr.f32.gmra.mrb[0].mxu0 %v810
          %v937 = vpop.f32.mrb[0].mxu0
          %v938 = vadd.f32 0.0, %v937
          %v939 = vpop.f32.mrb[0].mxu0
          %940 = vmatprep.mubr.f32.mxu0 0.0
          %941 = vmatmul.mubr.f32.gmra.mrb[0].mxu0 %v813
          %v942 = vpop.f32.mrb[0].mxu0
          %v943 = vadd.f32 0.0, %v942
          %v944 = vpop.f32.mrb[0].mxu0
          %945 = vmatprep.mubr.f32.mxu0 0.0
          %946 = vmatmul.mubr.f32.gmra.mrb[0].mxu0 %v816
          %v947 = vpop.f32.mrb[0].mxu0
          %v948 = vadd.f32 0.0, %v947
          %v949 = vpop.f32.mrb[0].mxu0
          %950 = vmatprep.mubr.f32.mxu0 0.0
          %951 = vmatmul.mubr.f32.gmra.mrb[0].mxu0 %v819
          %v952 = vpop.f32.mrb[0].mxu0
          %v953 = vadd.f32 0.0, %v952
          %v954 = vpop.f32.mrb[0].mxu0
          %955 = vmatprep.mubr.f32.mxu0 0.0
          %956 = vmatmul.mubr.f32.gmra.mrb[0].mxu0 %v822
          %v957 = vpop.f32.mrb[0].mxu0
          %v958 = vadd.f32 0.0, %v957
          %v959 = vpop.f32.mrb[0].mxu0
          %960 = vmatprep.mubr.f32.mxu0 0.0
          %961 = vmatmul.mubr.f32.gmra.mrb[0].mxu0 %v825
          %v962 = vpop.f32.mrb[0].mxu0
          %v963 = vadd.f32 0.0, %v962
          %v964 = vpop.f32.mrb[0].mxu0
          %965 = vmatprep.mubr.f32.mxu0 0.0
          %966 = vmatmul.mubr.f32.gmra.mrb[0].mxu0 %v828
          %v967 = vpop.f32.mrb[0].mxu0
          %v968 = vadd.f32 0.0, %v967
          %v969 = vpop.f32.mrb[0].mxu0
          %970 = vmatprep.mubr.f32.mxu0 0.0
          %971 = vmatmul.mubr.f32.gmra.mrb[0].mxu0 %v831
          %v972 = vpop.f32.mrb[0].mxu0
          %v973 = vadd.f32 0.0, %v972
          %v974 = vpop.f32.mrb[0].mxu0
          %975 = vmatprep.mubr.f32.mxu0 0.0
          %976 = vmatmul.mubr.f32.gmra.mrb[0].mxu0 %v834
          %v977 = vpop.f32.mrb[0].mxu0
          %v978 = vadd.f32 0.0, %v977
          %v979 = vpop.f32.mrb[0].mxu0
          %980 = vdwg.mxu0
          %vm981 = vcmp.gt.f32.partialorder %v903, 0.0
          %vm982 = vcmp.gt.f32.partialorder %v908, 0.0
          %vm983 = vcmp.gt.f32.partialorder %v913, 0.0
          %vm984 = vcmp.gt.f32.partialorder %v918, 0.0
          %vm985 = vcmp.gt.f32.partialorder %v923, 0.0
          %vm986 = vcmp.gt.f32.partialorder %v928, 0.0
          %vm987 = vcmp.gt.f32.partialorder %v933, 0.0
          %vm988 = vcmp.gt.f32.partialorder %v938, 0.0
          %vm989 = vcmp.gt.f32.partialorder %v943, 0.0
          %vm990 = vcmp.gt.f32.partialorder %v948, 0.0
          %vm991 = vcmp.gt.f32.partialorder %v953, 0.0
          %vm992 = vcmp.gt.f32.partialorder %v958, 0.0
          %vm993 = vcmp.gt.f32.partialorder %v963, 0.0
          %vm994 = vcmp.gt.f32.partialorder %v968, 0.0
          %vm995 = vcmp.gt.f32.partialorder %v973, 0.0
          %vm996 = vcmp.gt.f32.partialorder %v978, 0.0
          %v997 = vmul.f32 %v903, 0.01
          %v998 = vmul.f32 %v908, 0.01
          %v999 = vmul.f32 %v913, 0.01
          %v1000 = vmul.f32 %v918, 0.01
          %v1001 = vmul.f32 %v923, 0.01
          %v1002 = vmul.f32 %v928, 0.01
          %v1003 = vmul.f32 %v933, 0.01
          %v1004 = vmul.f32 %v938, 0.01
          %v1005 = vmul.f32 %v943, 0.01
          %v1006 = vmul.f32 %v948, 0.01
          %v1007 = vmul.f32 %v953, 0.01
          %v1008 = vmul.f32 %v958, 0.01
          %v1009 = vmul.f32 %v963, 0.01
          %v1010 = vmul.f32 %v968, 0.01
          %v1011 = vmul.f32 %v973, 0.01
          %v1012 = vmul.f32 %v978, 0.01
          %v1013 = vsel %vm981, %v903, %v997
          %v1014 = vsel %vm982, %v908, %v998
          %v1015 = vsel %vm983, %v913, %v999
          %v1016 = vsel %vm984, %v918, %v1000
          %v1017 = vsel %vm985, %v923, %v1001
          %v1018 = vsel %vm986, %v928, %v1002
          %v1019 = vsel %vm987, %v933, %v1003
          %v1020 = vsel %vm988, %v938, %v1004
          %v1021 = vsel %vm989, %v943, %v1005
          %v1022 = vsel %vm990, %v948, %v1006
          %v1023 = vsel %vm991, %v953, %v1007
          %v1024 = vsel %vm992, %v958, %v1008
          %v1025 = vsel %vm993, %v963, %v1009
          %v1026 = vsel %vm994, %v968, %v1010
          %v1027 = vsel %vm995, %v973, %v1011
          %v1028 = vsel %vm996, %v978, %v1012
          %v1030 = vsel %vm787, %v1013, 0
          %v1033 = vsel %vm787, %v1014, 0
          %v1036 = vsel %vm787, %v1015, 0
          %v1039 = vsel %vm787, %v1016, 0
          %v1042 = vsel %vm787, %v1017, 0
          %v1045 = vsel %vm787, %v1018, 0
          %v1048 = vsel %vm787, %v1019, 0
          %v1051 = vsel %vm787, %v1020, 0
          %v1054 = vsel %vm787, %v1021, 0
          %v1057 = vsel %vm787, %v1022, 0
          %v1060 = vsel %vm787, %v1023, 0
          %v1063 = vsel %vm787, %v1024, 0
          %v1066 = vsel %vm787, %v1025, 0
          %v1069 = vsel %vm787, %v1026, 0
          %v1072 = vsel %vm787, %v1027, 0
          %v1075 = vsel %vm787, %v1028, 0
          %1077 = vmatprep.subr.mxu0 0.0
          %1078 = vmatpush1.msra.mxu0 %v761
          %1079 = vmatprep.subr.mxu0 0.0
          %1080 = vmatpush1.msra.mxu0 %v762
          %1081 = vmatprep.subr.mxu0 0.0
          %1082 = vmatpush1.msra.mxu0 0.0
          %1083 = vmatprep.subr.mxu0 0.0
          %1084 = vmatpush1.msra.mxu0 0.0
          %1085 = vmatprep.subr.mxu0 0.0
          %1086 = vmatpush1.msra.mxu0 0.0
          %1087 = vmatprep.subr.mxu0 0.0
          %1088 = vmatpush1.msra.mxu0 0.0
          %1089 = vmatprep.subr.mxu0 0.0
          %1090 = vmatpush1.msra.mxu0 0.0
          %1091 = vmatprep.subr.mxu0 0.0
          %1092 = vmatpush1.msra.mxu0 0.0
          %1093 = vmatprep.subr.mxu0 0.0
          %1094 = vmatpush1.msra.mxu0 0.0
          %1095 = vmatprep.subr.mxu0 0.0
          %1096 = vmatpush1.msra.mxu0 0.0
          %1097 = vmatprep.subr.mxu0 0.0
          %1098 = vmatpush1.msra.mxu0 0.0
          %1099 = vmatprep.subr.mxu0 0.0
          %1100 = vmatpush1.msra.mxu0 0.0
          %1101 = vmatprep.subr.mxu0 0.0
          %1102 = vmatpush1.msra.mxu0 0.0
          %1103 = vmatprep.subr.mxu0 0.0
          %1104 = vmatpush1.msra.mxu0 0.0
          %1105 = vmatprep.subr.mxu0 0.0
          %1106 = vmatpush1.msra.mxu0 0.0
          %1107 = vmatprep.subr.mxu0 0.0
          %1108 = vmatpush1.msra.mxu0 0.0
          %1109 = vmatprep.subr.mxu0 0.0
          %1110 = vmatpush1.msra.mxu0 0.0
          %1111 = vmatprep.subr.mxu0 0.0
          %1112 = vmatpush1.msra.mxu0 0.0
          %1113 = vmatprep.subr.mxu0 0.0
          %1114 = vmatpush1.msra.mxu0 0.0
          %1115 = vmatprep.subr.mxu0 0.0
          %1116 = vmatpush1.msra.mxu0 0.0
          %1117 = vmatprep.subr.mxu0 0.0
          %1118 = vmatpush1.msra.mxu0 0.0
          %1119 = vmatprep.subr.mxu0 0.0
          %1120 = vmatpush1.msra.mxu0 0.0
          %1121 = vmatprep.subr.mxu0 0.0
          %1122 = vmatpush1.msra.mxu0 0.0
          %1123 = vmatprep.subr.mxu0 0.0
          %1124 = vmatpush1.msra.mxu0 0.0
          %1125 = vmatprep.subr.mxu0 0.0
          %1126 = vmatpush1.msra.mxu0 0.0
          %1127 = vmatprep.subr.mxu0 0.0
          %1128 = vmatpush1.msra.mxu0 0.0
          %1129 = vmatprep.subr.mxu0 0.0
          %1130 = vmatpush1.msra.mxu0 0.0
          %1131 = vmatprep.subr.mxu0 0.0
          %1132 = vmatpush1.msra.mxu0 0.0
          %1133 = vmatprep.subr.mxu0 0.0
          %1134 = vmatpush1.msra.mxu0 0.0
          %1135 = vmatprep.subr.mxu0 0.0
          %1136 = vmatpush1.msra.mxu0 0.0
          %1137 = vmatprep.subr.mxu0 0.0
          %1138 = vmatpush1.msra.mxu0 0.0
          %1139 = vmatprep.subr.mxu0 0.0
          %1140 = vmatpush1.msra.mxu0 0.0
          %1141 = vmatprep.mubr.f32.mxu0 0.0
          %1142 = vmatmul.mubr.f32.gmra.mrb[0].mxu0 %v1030
          %v1143 = vpop.f32.mrb[0].mxu0
          %v1144 = vadd.f32 0.0, %v1143
          %v1145 = vpop.f32.mrb[0].mxu0
          %1146 = vmatprep.mubr.f32.mxu0 0.0
          %1147 = vmatmul.mubr.f32.gmra.mrb[0].mxu0 %v1033
          %v1148 = vpop.f32.mrb[0].mxu0
          %v1149 = vadd.f32 0.0, %v1148
          %v1150 = vpop.f32.mrb[0].mxu0
          %1151 = vmatprep.mubr.f32.mxu0 0.0
          %1152 = vmatmul.mubr.f32.gmra.mrb[0].mxu0 %v1036
          %v1153 = vpop.f32.mrb[0].mxu0
          %v1154 = vadd.f32 0.0, %v1153
          %v1155 = vpop.f32.mrb[0].mxu0
          %1156 = vmatprep.mubr.f32.mxu0 0.0
          %1157 = vmatmul.mubr.f32.gmra.mrb[0].mxu0 %v1039
          %v1158 = vpop.f32.mrb[0].mxu0
          %v1159 = vadd.f32 0.0, %v1158
          %v1160 = vpop.f32.mrb[0].mxu0
          %1161 = vmatprep.mubr.f32.mxu0 0.0
          %1162 = vmatmul.mubr.f32.gmra.mrb[0].mxu0 %v1042
          %v1163 = vpop.f32.mrb[0].mxu0
          %v1164 = vadd.f32 0.0, %v1163
          %v1165 = vpop.f32.mrb[0].mxu0
          %1166 = vmatprep.mubr.f32.mxu0 0.0
          %1167 = vmatmul.mubr.f32.gmra.mrb[0].mxu0 %v1045
          %v1168 = vpop.f32.mrb[0].mxu0
          %v1169 = vadd.f32 0.0, %v1168
          %v1170 = vpop.f32.mrb[0].mxu0
          %1171 = vmatprep.mubr.f32.mxu0 0.0
          %1172 = vmatmul.mubr.f32.gmra.mrb[0].mxu0 %v1048
          %v1173 = vpop.f32.mrb[0].mxu0
          %v1174 = vadd.f32 0.0, %v1173
          %v1175 = vpop.f32.mrb[0].mxu0
          %1176 = vmatprep.mubr.f32.mxu0 0.0
          %1177 = vmatmul.mubr.f32.gmra.mrb[0].mxu0 %v1051
          %v1178 = vpop.f32.mrb[0].mxu0
          %v1179 = vadd.f32 0.0, %v1178
          %v1180 = vpop.f32.mrb[0].mxu0
          %1181 = vmatprep.mubr.f32.mxu0 0.0
          %1182 = vmatmul.mubr.f32.gmra.mrb[0].mxu0 %v1054
          %v1183 = vpop.f32.mrb[0].mxu0
          %v1184 = vadd.f32 0.0, %v1183
          %v1185 = vpop.f32.mrb[0].mxu0
          %1186 = vmatprep.mubr.f32.mxu0 0.0
          %1187 = vmatmul.mubr.f32.gmra.mrb[0].mxu0 %v1057
          %v1188 = vpop.f32.mrb[0].mxu0
          %v1189 = vadd.f32 0.0, %v1188
          %v1190 = vpop.f32.mrb[0].mxu0
          %1191 = vmatprep.mubr.f32.mxu0 0.0
          %1192 = vmatmul.mubr.f32.gmra.mrb[0].mxu0 %v1060
          %v1193 = vpop.f32.mrb[0].mxu0
          %v1194 = vadd.f32 0.0, %v1193
          %v1195 = vpop.f32.mrb[0].mxu0
          %1196 = vmatprep.mubr.f32.mxu0 0.0
          %1197 = vmatmul.mubr.f32.gmra.mrb[0].mxu0 %v1063
          %v1198 = vpop.f32.mrb[0].mxu0
          %v1199 = vadd.f32 0.0, %v1198
          %v1200 = vpop.f32.mrb[0].mxu0
          %1201 = vmatprep.mubr.f32.mxu0 0.0
          %1202 = vmatmul.mubr.f32.gmra.mrb[0].mxu0 %v1066
          %v1203 = vpop.f32.mrb[0].mxu0
          %v1204 = vadd.f32 0.0, %v1203
          %v1205 = vpop.f32.mrb[0].mxu0
          %1206 = vmatprep.mubr.f32.mxu0 0.0
          %1207 = vmatmul.mubr.f32.gmra.mrb[0].mxu0 %v1069
          %v1208 = vpop.f32.mrb[0].mxu0
          %v1209 = vadd.f32 0.0, %v1208
          %v1210 = vpop.f32.mrb[0].mxu0
          %1211 = vmatprep.mubr.f32.mxu0 0.0
          %1212 = vmatmul.mubr.f32.gmra.mrb[0].mxu0 %v1072
          %v1213 = vpop.f32.mrb[0].mxu0
          %v1214 = vadd.f32 0.0, %v1213
          %v1215 = vpop.f32.mrb[0].mxu0
          %1216 = vmatprep.mubr.f32.mxu0 0.0
          %1217 = vmatmul.mubr.f32.gmra.mrb[0].mxu0 %v1075
          %v1218 = vpop.f32.mrb[0].mxu0
          %v1219 = vadd.f32 0.0, %v1218
          %v1220 = vpop.f32.mrb[0].mxu0
          %1221 = vdwg.mxu0
          %vm1222 = vcmp.gt.f32.partialorder %v1144, 0.0
          %vm1223 = vcmp.gt.f32.partialorder %v1149, 0.0
          %vm1224 = vcmp.gt.f32.partialorder %v1154, 0.0
          %vm1225 = vcmp.gt.f32.partialorder %v1159, 0.0
          %vm1226 = vcmp.gt.f32.partialorder %v1164, 0.0
          %vm1227 = vcmp.gt.f32.partialorder %v1169, 0.0
          %vm1228 = vcmp.gt.f32.partialorder %v1174, 0.0
          %vm1229 = vcmp.gt.f32.partialorder %v1179, 0.0
          %vm1230 = vcmp.gt.f32.partialorder %v1184, 0.0
          %vm1231 = vcmp.gt.f32.partialorder %v1189, 0.0
          %vm1232 = vcmp.gt.f32.partialorder %v1194, 0.0
          %vm1233 = vcmp.gt.f32.partialorder %v1199, 0.0
          %vm1234 = vcmp.gt.f32.partialorder %v1204, 0.0
          %vm1235 = vcmp.gt.f32.partialorder %v1209, 0.0
          %vm1236 = vcmp.gt.f32.partialorder %v1214, 0.0
          %vm1237 = vcmp.gt.f32.partialorder %v1219, 0.0
          %v1238 = vmul.f32 %v1144, 0.01
          %v1239 = vmul.f32 %v1149, 0.01
          %v1240 = vmul.f32 %v1154, 0.01
          %v1241 = vmul.f32 %v1159, 0.01
          %v1242 = vmul.f32 %v1164, 0.01
          %v1243 = vmul.f32 %v1169, 0.01
          %v1244 = vmul.f32 %v1174, 0.01
          %v1245 = vmul.f32 %v1179, 0.01
          %v1246 = vmul.f32 %v1184, 0.01
          %v1247 = vmul.f32 %v1189, 0.01
          %v1248 = vmul.f32 %v1194, 0.01
          %v1249 = vmul.f32 %v1199, 0.01
          %v1250 = vmul.f32 %v1204, 0.01
          %v1251 = vmul.f32 %v1209, 0.01
          %v1252 = vmul.f32 %v1214, 0.01
          %v1253 = vmul.f32 %v1219, 0.01
          %v1254 = vsel %vm1222, %v1144, %v1238
          %v1255 = vsel %vm1223, %v1149, %v1239
          %v1256 = vsel %vm1224, %v1154, %v1240
          %v1257 = vsel %vm1225, %v1159, %v1241
          %v1258 = vsel %vm1226, %v1164, %v1242
          %v1259 = vsel %vm1227, %v1169, %v1243
          %v1260 = vsel %vm1228, %v1174, %v1244
          %v1261 = vsel %vm1229, %v1179, %v1245
          %v1262 = vsel %vm1230, %v1184, %v1246
          %v1263 = vsel %vm1231, %v1189, %v1247
          %v1264 = vsel %vm1232, %v1194, %v1248
          %v1265 = vsel %vm1233, %v1199, %v1249
          %v1266 = vsel %vm1234, %v1204, %v1250
          %v1267 = vsel %vm1235, %v1209, %v1251
          %v1268 = vsel %vm1236, %v1214, %v1252
          %v1269 = vsel %vm1237, %v1219, %v1253
          %vm1270 = vcmask 261120
          %v1272 = vsel %vm1270, %v1254, 0
          %v1275 = vsel %vm1270, %v1255, 0
          %v1278 = vsel %vm1270, %v1256, 0
          %v1281 = vsel %vm1270, %v1257, 0
          %v1284 = vsel %vm1270, %v1258, 0
          %v1287 = vsel %vm1270, %v1259, 0
          %v1290 = vsel %vm1270, %v1260, 0
          %v1293 = vsel %vm1270, %v1261, 0
          %v1296 = vsel %vm1270, %v1262, 0
          %v1299 = vsel %vm1270, %v1263, 0
          %v1302 = vsel %vm1270, %v1264, 0
          %v1305 = vsel %vm1270, %v1265, 0
          %v1308 = vsel %vm1270, %v1266, 0
          %v1311 = vsel %vm1270, %v1267, 0
          %v1314 = vsel %vm1270, %v1268, 0
          %v1317 = vsel %vm1270, %v1269, 0
          %1319 = vmatprep.subr.mxu0 0.0
          %1320 = vmatpush1.msra.mxu0 %v767
          %1321 = vmatprep.subr.mxu0 0.0
          %1322 = vmatpush1.msra.mxu0 %v768
          %1323 = vmatprep.subr.mxu0 0.0
          %1324 = vmatpush1.msra.mxu0 %v769
          %1325 = vmatprep.subr.mxu0 0.0
          %1326 = vmatpush1.msra.mxu0 %v770
          %1327 = vmatprep.subr.mxu0 0.0
          %1328 = vmatpush1.msra.mxu0 0.0
          %1329 = vmatprep.subr.mxu0 0.0
          %1330 = vmatpush1.msra.mxu0 0.0
          %1331 = vmatprep.subr.mxu0 0.0
          %1332 = vmatpush1.msra.mxu0 0.0
          %1333 = vmatprep.subr.mxu0 0.0
          %1334 = vmatpush1.msra.mxu0 0.0
          %1335 = vmatprep.subr.mxu0 0.0
          %1336 = vmatpush1.msra.mxu0 0.0
          %1337 = vmatprep.subr.mxu0 0.0
          %1338 = vmatpush1.msra.mxu0 0.0
          %1339 = vmatprep.subr.mxu0 0.0
          %1340 = vmatpush1.msra.mxu0 0.0
          %1341 = vmatprep.subr.mxu0 0.0
          %1342 = vmatpush1.msra.mxu0 0.0
          %1343 = vmatprep.subr.mxu0 0.0
          %1344 = vmatpush1.msra.mxu0 0.0
          %1345 = vmatprep.subr.mxu0 0.0
          %1346 = vmatpush1.msra.mxu0 0.0
          %1347 = vmatprep.subr.mxu0 0.0
          %1348 = vmatpush1.msra.mxu0 0.0
          %1349 = vmatprep.subr.mxu0 0.0
          %1350 = vmatpush1.msra.mxu0 0.0
          %1351 = vmatprep.subr.mxu0 0.0
          %1352 = vmatpush1.msra.mxu0 0.0
          %1353 = vmatprep.subr.mxu0 0.0
          %1354 = vmatpush1.msra.mxu0 0.0
          %1355 = vmatprep.subr.mxu0 0.0
          %1356 = vmatpush1.msra.mxu0 0.0
          %1357 = vmatprep.subr.mxu0 0.0
          %1358 = vmatpush1.msra.mxu0 0.0
          %1359 = vmatprep.subr.mxu0 0.0
          %1360 = vmatpush1.msra.mxu0 0.0
          %1361 = vmatprep.subr.mxu0 0.0
          %1362 = vmatpush1.msra.mxu0 0.0
          %1363 = vmatprep.subr.mxu0 0.0
          %1364 = vmatpush1.msra.mxu0 0.0
          %1365 = vmatprep.subr.mxu0 0.0
          %1366 = vmatpush1.msra.mxu0 0.0
          %1367 = vmatprep.subr.mxu0 0.0
          %1368 = vmatpush1.msra.mxu0 0.0
          %1369 = vmatprep.subr.mxu0 0.0
          %1370 = vmatpush1.msra.mxu0 0.0
          %1371 = vmatprep.subr.mxu0 0.0
          %1372 = vmatpush1.msra.mxu0 0.0
          %1373 = vmatprep.subr.mxu0 0.0
          %1374 = vmatpush1.msra.mxu0 0.0
          %1375 = vmatprep.subr.mxu0 0.0
          %1376 = vmatpush1.msra.mxu0 0.0
          %1377 = vmatprep.subr.mxu0 0.0
          %1378 = vmatpush1.msra.mxu0 0.0
          %1379 = vmatprep.subr.mxu0 0.0
          %1380 = vmatpush1.msra.mxu0 0.0
          %1381 = vmatprep.subr.mxu0 0.0
          %1382 = vmatpush1.msra.mxu0 0.0
          %1383 = vmatprep.mubr.f32.mxu0 0.0
          %1384 = vmatmul.mubr.f32.gmra.mrb[0].mxu0 %v1272
          %v1385 = vpop.f32.mrb[0].mxu0
          %v1386 = vadd.f32 0.0, %v1385
          %v1387 = vpop.f32.mrb[0].mxu0
          %1388 = vmatprep.mubr.f32.mxu0 0.0
          %1389 = vmatmul.mubr.f32.gmra.mrb[0].mxu0 %v1275
          %v1390 = vpop.f32.mrb[0].mxu0
          %v1391 = vadd.f32 0.0, %v1390
          %v1392 = vpop.f32.mrb[0].mxu0
          %1393 = vmatprep.mubr.f32.mxu0 0.0
          %1394 = vmatmul.mubr.f32.gmra.mrb[0].mxu0 %v1278
          %v1395 = vpop.f32.mrb[0].mxu0
          %v1396 = vadd.f32 0.0, %v1395
          %v1397 = vpop.f32.mrb[0].mxu0
          %1398 = vmatprep.mubr.f32.mxu0 0.0
          %1399 = vmatmul.mubr.f32.gmra.mrb[0].mxu0 %v1281
          %v1400 = vpop.f32.mrb[0].mxu0
          %v1401 = vadd.f32 0.0, %v1400
          %v1402 = vpop.f32.mrb[0].mxu0
          %1403 = vmatprep.mubr.f32.mxu0 0.0
          %1404 = vmatmul.mubr.f32.gmra.mrb[0].mxu0 %v1284
          %v1405 = vpop.f32.mrb[0].mxu0
          %v1406 = vadd.f32 0.0, %v1405
          %v1407 = vpop.f32.mrb[0].mxu0
          %1408 = vmatprep.mubr.f32.mxu0 0.0
          %1409 = vmatmul.mubr.f32.gmra.mrb[0].mxu0 %v1287
          %v1410 = vpop.f32.mrb[0].mxu0
          %v1411 = vadd.f32 0.0, %v1410
          %v1412 = vpop.f32.mrb[0].mxu0
          %1413 = vmatprep.mubr.f32.mxu0 0.0
          %1414 = vmatmul.mubr.f32.gmra.mrb[0].mxu0 %v1290
          %v1415 = vpop.f32.mrb[0].mxu0
          %v1416 = vadd.f32 0.0, %v1415
          %v1417 = vpop.f32.mrb[0].mxu0
          %1418 = vmatprep.mubr.f32.mxu0 0.0
          %1419 = vmatmul.mubr.f32.gmra.mrb[0].mxu0 %v1293
          %v1420 = vpop.f32.mrb[0].mxu0
          %v1421 = vadd.f32 0.0, %v1420
          %v1422 = vpop.f32.mrb[0].mxu0
          %1423 = vmatprep.mubr.f32.mxu0 0.0
          %1424 = vmatmul.mubr.f32.gmra.mrb[0].mxu0 %v1296
          %v1425 = vpop.f32.mrb[0].mxu0
          %v1426 = vadd.f32 0.0, %v1425
          %v1427 = vpop.f32.mrb[0].mxu0
          %1428 = vmatprep.mubr.f32.mxu0 0.0
          %1429 = vmatmul.mubr.f32.gmra.mrb[0].mxu0 %v1299
          %v1430 = vpop.f32.mrb[0].mxu0
          %v1431 = vadd.f32 0.0, %v1430
          %v1432 = vpop.f32.mrb[0].mxu0
          %1433 = vmatprep.mubr.f32.mxu0 0.0
          %1434 = vmatmul.mubr.f32.gmra.mrb[0].mxu0 %v1302
          %v1435 = vpop.f32.mrb[0].mxu0
          %v1436 = vadd.f32 0.0, %v1435
          %v1437 = vpop.f32.mrb[0].mxu0
          %1438 = vmatprep.mubr.f32.mxu0 0.0
          %1439 = vmatmul.mubr.f32.gmra.mrb[0].mxu0 %v1305
          %v1440 = vpop.f32.mrb[0].mxu0
          %v1441 = vadd.f32 0.0, %v1440
          %v1442 = vpop.f32.mrb[0].mxu0
          %1443 = vmatprep.mubr.f32.mxu0 0.0
          %1444 = vmatmul.mubr.f32.gmra.mrb[0].mxu0 %v1308
          %v1445 = vpop.f32.mrb[0].mxu0
          %v1446 = vadd.f32 0.0, %v1445
          %v1447 = vpop.f32.mrb[0].mxu0
          %1448 = vmatprep.mubr.f32.mxu0 0.0
          %1449 = vmatmul.mubr.f32.gmra.mrb[0].mxu0 %v1311
          %v1450 = vpop.f32.mrb[0].mxu0
          %v1451 = vadd.f32 0.0, %v1450
          %v1452 = vpop.f32.mrb[0].mxu0
          %1453 = vmatprep.mubr.f32.mxu0 0.0
          %1454 = vmatmul.mubr.f32.gmra.mrb[0].mxu0 %v1314
          %v1455 = vpop.f32.mrb[0].mxu0
          %v1456 = vadd.f32 0.0, %v1455
          %v1457 = vpop.f32.mrb[0].mxu0
          %1458 = vmatprep.mubr.f32.mxu0 0.0
          %1459 = vmatmul.mubr.f32.gmra.mrb[0].mxu0 %v1317
          %v1460 = vpop.f32.mrb[0].mxu0
          %v1461 = vadd.f32 0.0, %v1460
          %v1462 = vpop.f32.mrb[0].mxu0
          %1463 = vdwg.mxu0
          %vm1464 = vcmp.gt.f32.partialorder %v1386, 0.0
          %vm1465 = vcmp.gt.f32.partialorder %v1391, 0.0
          %vm1466 = vcmp.gt.f32.partialorder %v1396, 0.0
          %vm1467 = vcmp.gt.f32.partialorder %v1401, 0.0
          %vm1468 = vcmp.gt.f32.partialorder %v1406, 0.0
          %vm1469 = vcmp.gt.f32.partialorder %v1411, 0.0
          %vm1470 = vcmp.gt.f32.partialorder %v1416, 0.0
          %vm1471 = vcmp.gt.f32.partialorder %v1421, 0.0
          %vm1472 = vcmp.gt.f32.partialorder %v1426, 0.0
          %vm1473 = vcmp.gt.f32.partialorder %v1431, 0.0
          %vm1474 = vcmp.gt.f32.partialorder %v1436, 0.0
          %vm1475 = vcmp.gt.f32.partialorder %v1441, 0.0
          %vm1476 = vcmp.gt.f32.partialorder %v1446, 0.0
          %vm1477 = vcmp.gt.f32.partialorder %v1451, 0.0
          %vm1478 = vcmp.gt.f32.partialorder %v1456, 0.0
          %vm1479 = vcmp.gt.f32.partialorder %v1461, 0.0
          %v1480 = vmul.f32 %v1386, 0.01
          %v1481 = vmul.f32 %v1391, 0.01
          %v1482 = vmul.f32 %v1396, 0.01
          %v1483 = vmul.f32 %v1401, 0.01
          %v1484 = vmul.f32 %v1406, 0.01
          %v1485 = vmul.f32 %v1411, 0.01
          %v1486 = vmul.f32 %v1416, 0.01
          %v1487 = vmul.f32 %v1421, 0.01
          %v1488 = vmul.f32 %v1426, 0.01
          %v1489 = vmul.f32 %v1431, 0.01
          %v1490 = vmul.f32 %v1436, 0.01
          %v1491 = vmul.f32 %v1441, 0.01
          %v1492 = vmul.f32 %v1446, 0.01
          %v1493 = vmul.f32 %v1451, 0.01
          %v1494 = vmul.f32 %v1456, 0.01
          %v1495 = vmul.f32 %v1461, 0.01
          %v1496 = vsel %vm1464, %v1386, %v1480
          %v1497 = vsel %vm1465, %v1391, %v1481
          %v1498 = vsel %vm1466, %v1396, %v1482
          %v1499 = vsel %vm1467, %v1401, %v1483
          %v1500 = vsel %vm1468, %v1406, %v1484
          %v1501 = vsel %vm1469, %v1411, %v1485
          %v1502 = vsel %vm1470, %v1416, %v1486
          %v1503 = vsel %vm1471, %v1421, %v1487
          %v1504 = vsel %vm1472, %v1426, %v1488
          %v1505 = vsel %vm1473, %v1431, %v1489
          %v1506 = vsel %vm1474, %v1436, %v1490
          %v1507 = vsel %vm1475, %v1441, %v1491
          %v1508 = vsel %vm1476, %v1446, %v1492
          %v1509 = vsel %vm1477, %v1451, %v1493
          %v1510 = vsel %vm1478, %v1456, %v1494
          %v1511 = vsel %vm1479, %v1461, %v1495
          %v1512 = vld [vmem:[%s445] sm:$0x1]
          %v1513 = vlaneseq
          %v1514 = vshrl.u32 %v1513, 7
          %v1515 = vlaneseq
          %v1516 = vshrl.u32 %v1515, 7
          %v1517 = vsub.s32 0, %v1516
          %v1518 = vrot.slane %v1512, %v1517
          %vm1519 = vcmp.eq.s32.totalorder %v1514, %v1518
          %v1520 = vsel %vm1519, 1, 0
          %v1521 = vcvt.s32.f32 %v1520
          %1522 = vmatprep.subr.mxu0 0.0
          %1523 = vmatpush1.msra.mxu0 %v1496
          %1524 = vmatprep.subr.mxu0 0.0
          %1525 = vmatpush1.msra.mxu0 %v1497
          %1526 = vmatprep.subr.mxu0 0.0
          %1527 = vmatpush1.msra.mxu0 %v1498
          %1528 = vmatprep.subr.mxu0 0.0
          %1529 = vmatpush1.msra.mxu0 %v1499
          %1530 = vmatprep.subr.mxu0 0.0
          %1531 = vmatpush1.msra.mxu0 %v1500
          %1532 = vmatprep.subr.mxu0 0.0
          %1533 = vmatpush1.msra.mxu0 %v1501
          %1534 = vmatprep.subr.mxu0 0.0
          %1535 = vmatpush1.msra.mxu0 %v1502
          %1536 = vmatprep.subr.mxu0 0.0
          %1537 = vmatpush1.msra.mxu0 %v1503
          %1538 = vmatprep.subr.mxu0 0.0
          %1539 = vmatpush1.msra.mxu0 %v1504
          %1540 = vmatprep.subr.mxu0 0.0
          %1541 = vmatpush1.msra.mxu0 %v1505
          %1542 = vmatprep.subr.mxu0 0.0
          %1543 = vmatpush1.msra.mxu0 %v1506
          %1544 = vmatprep.subr.mxu0 0.0
          %1545 = vmatpush1.msra.mxu0 %v1507
          %1546 = vmatprep.subr.mxu0 0.0
          %1547 = vmatpush1.msra.mxu0 %v1508
          %1548 = vmatprep.subr.mxu0 0.0
          %1549 = vmatpush1.msra.mxu0 %v1509
          %1550 = vmatprep.subr.mxu0 0.0
          %1551 = vmatpush1.msra.mxu0 %v1510
          %1552 = vmatprep.subr.mxu0 0.0
          %1553 = vmatpush1.msra.mxu0 %v1511
          %1554 = vmatprep.subr.mxu0 0.0
          %1555 = vmatpush1.msra.mxu0 0.0
          %1556 = vmatprep.subr.mxu0 0.0
          %1557 = vmatpush1.msra.mxu0 0.0
          %1558 = vmatprep.subr.mxu0 0.0
          %1559 = vmatpush1.msra.mxu0 0.0
          %1560 = vmatprep.subr.mxu0 0.0
          %1561 = vmatpush1.msra.mxu0 0.0
          %1562 = vmatprep.subr.mxu0 0.0
          %1563 = vmatpush1.msra.mxu0 0.0
          %1564 = vmatprep.subr.mxu0 0.0
          %1565 = vmatpush1.msra.mxu0 0.0
          %1566 = vmatprep.subr.mxu0 0.0
          %1567 = vmatpush1.msra.mxu0 0.0
          %1568 = vmatprep.subr.mxu0 0.0
          %1569 = vmatpush1.msra.mxu0 0.0
          %1570 = vmatprep.subr.mxu0 0.0
          %1571 = vmatpush1.msra.mxu0 0.0
          %1572 = vmatprep.subr.mxu0 0.0
          %1573 = vmatpush1.msra.mxu0 0.0
          %1574 = vmatprep.subr.mxu0 0.0
          %1575 = vmatpush1.msra.mxu0 0.0
          %1576 = vmatprep.subr.mxu0 0.0
          %1577 = vmatpush1.msra.mxu0 0.0
          %1578 = vmatprep.subr.mxu0 0.0
          %1579 = vmatpush1.msra.mxu0 0.0
          %1580 = vmatprep.subr.mxu0 0.0
          %1581 = vmatpush1.msra.mxu0 0.0
          %1582 = vmatprep.subr.mxu0 0.0
          %1583 = vmatpush1.msra.mxu0 0.0
          %1584 = vmatprep.subr.mxu0 0.0
          %1585 = vmatpush1.msra.mxu0 0.0
          %1586 = vmatprep.mubr.f32.mxu0 0.0
          %1587 = vmatmul.mubr.f32.gmra.mrb[0].mxu0 %v1521
          %v1588 = vpop.f32.mrb[0].mxu0
          %v1589 = vadd.f32 0.0, %v1588
          %v1590 = vpop.f32.mrb[0].mxu0
          %1591 = vdwg.mxu0
          %vm1592 = vcmask 26624
          %1593 = vst.msk [vmem:[%s449] sm:$0x7] %vm1592, %v1589
        $region97: #{_critic_forward_impl.3} parent=80 // pred_fallthru
          _
        %p1594 = scmp.lt.s32.totalorder %s33, 2
        %s1595 = scalar_select %p1594, %s33, 2
        %s1596 = smul.addr %s1595, 4
        %s1597 = scalar_lea.vmem %s8, %s1596
        // Predicated region
        $region98: #{_critic_forward_impl.3} parent=80 // pred_check
          %p1598 = pneg %p214
        $region99: #{_critic_forward_impl.3} parent=80 // pred_check_branch
          %1600 = sbr.rel (%p1598) target = $region101
        $region100: #{_critic_forward_impl.3} parent=80 // pred_region
          _
        $region101: #{_critic_forward_impl.3} parent=80 // pred_fallthru
          _
      $region81: #{_critic_forward_impl.3} parent=5 // pred_fallthru
        _
      %p1601 = scmp.le.s32.totalorder 2, %s24
      // Predicated region
      $region102: #{_critic_forward_impl.3} parent=5 // pred_check
        %p1602 = pneg %p1601
      $region103: #{_critic_forward_impl.3} parent=5 // pred_check_branch
        %1604 = sbr.rel (%p1602) target = $region105
      $region104: #{_critic_forward_impl.3} parent=5 // pred_region
        %s1605 = ssub.s32 %s24, 2
        // Predicated region
        $region106: #{_critic_forward_impl.3} parent=104 // pred_check
          %p1606 = pneg %p220
        $region107: #{_critic_forward_impl.3} parent=104 // pred_check_branch
          %1608 = sbr.rel (%p1606) target = $region109
        $region108: #{_critic_forward_impl.3} parent=104 // pred_region
          %p1609 = scmp.lt.s32.totalorder %s35, 2
          %s1610 = scalar_select %p1609, %s35, 2
          %s1611 = smul.addr %s1610, 4
          %s1612 = scalar_lea.vmem %s8, %s1611
        $region109: #{_critic_forward_impl.3} parent=104 // pred_fallthru
          _
      $region105: #{_critic_forward_impl.3} parent=5 // pred_fallthru
        _
    $region6: #{_critic_forward_impl.3} parent=1 // loop_footer
      %s28 = sadd.s32 1, %s24
    $region7: #{_critic_forward_impl.3} parent=1 // loop_footer_branch
      %23 = sbr.rel target = $region3
    $region8: #{_critic_forward_impl.3} parent=1 // loop_exit
      _

</llo_original>
